<compile_context>
chip_gen: v7x
topology: tpu7x:2x2x1
jax: 0.10.0
libtpu: 0.0.40
codegen_flags: <defaults>
</compile_context>

<pallas_src>
import functools

import jax
import jax.numpy as jnp
from jax import lax
from jax.experimental import pallas as pl
from jax.experimental.pallas import tpu as pltpu


# ------------------------------ fused kernel --------------------------------


def _dense_layer_kernel(nblk, th, W, Wp,
                        xc_ref, xh_ref, s1_ref, b1_ref, w1_ref,
                        b2_ref, w2_ref, o_ref, z_scr, r_scr):
    """One grid step = one (image n, th-row block b) spatial tile.

    xc_ref: (1, 1, th*W, Cin)   core rows of the tile (flattened spatial), f32
    xh_ref: (1, 1, 2*W, Cin)    row above / row below the tile (halo), f32
    s1/b1:  (1, Cin)            folded BN1 scale / bias (f32)
    w1_ref: (Cin, Cmid)         1x1 conv weight with BN2 scale folded in, bf16
    b2_ref: (1, Cmid)           folded BN2 bias (f32)
    w2_ref: (Cmid, 9*Cout)      3x3 conv weights grouped by tap t = kh*3+kw, bf16
    o_ref:  (1, 1, th*Wp, Cout) conv2 output, rows padded W -> Wp
    z_scr:  ((th+4)*Wp, Cmid)   f32 zero-padded BN2-ReLU activations
                                layout row r = flat rows [r*Wp, (r+1)*Wp):
                                r=0 guard, r=1 top halo, r=2..th+1 core,
                                r=th+2 bottom halo, r=th+3 guard
    r_scr:  ((th+4)*Wp, 9*Cout) f32 per-tap conv partials
    """
    cmid = w1_ref.shape[1]
    cout = w2_ref.shape[1] // 9
    rows = th + 4
    blk = pl.program_id(1)

    def brc1(x2d):
        # BN1 -> ReLU -> conv1x1 (BN2 scale pre-folded) -> +BN2 bias -> ReLU
        y = jnp.maximum(x2d * s1_ref[...] + b1_ref[...], 0.0)
        y1 = jnp.dot(y.astype(jnp.bfloat16), w1_ref[...],
                     preferred_element_type=jnp.float32)
        return jnp.maximum(y1 + b2_ref[...], 0.0)

    # ---- zero only the padding ring of the z scratch (not the whole buffer).
    zero_row = jnp.zeros((Wp, cmid), jnp.float32)
    zero_tail = jnp.zeros((Wp - W, cmid), jnp.float32)
    z_scr[0:Wp, :] = zero_row                               # leading guard row
    z_scr[(rows - 1) * Wp:rows * Wp, :] = zero_row          # trailing guard row
    for r in range(1, rows - 1):                            # row tails
        z_scr[r * Wp + W:(r + 1) * Wp, :] = zero_tail

    # ---- stage 1 for the tile's core rows: ONE matmul with M = th*W.
    z_core = brc1(xc_ref[0, 0])                             # (th*W, Cmid) f32
    for hh in range(th):
        z_scr[(2 + hh) * Wp:(2 + hh) * Wp + W, :] = z_core[hh * W:(hh + 1) * W, :]

    # ---- stage 1 for the two halo rows: ONE matmul with M = 2*W.
    # At image borders the halo rows are the 'SAME' zero padding (scalar mask).
    z_halo = brc1(xh_ref[0, 0])                             # (2*W, Cmid) f32
    top_mask = (blk > 0).astype(jnp.float32)
    bot_mask = (blk < nblk - 1).astype(jnp.float32)
    z_scr[Wp:Wp + W, :] = z_halo[:W, :] * top_mask
    z_scr[(th + 2) * Wp:(th + 2) * Wp + W, :] = z_halo[W:, :] * bot_mask

    # ---- 3x3 conv: one lane-dense matmul against tap-grouped weights ...
    r_scr[...] = jnp.dot(z_scr[...].astype(jnp.bfloat16), w2_ref[...],
                         preferred_element_type=jnp.float32)

    # ... then 9 whole-tile shifted adds (constant flat offset per tap).
    acc = jnp.zeros((th * Wp, cout), jnp.float32)
    for kh in range(3):
        for kw in range(3):
            t = kh * 3 + kw
            off = (kh + 1) * Wp + (kw - 1)
            acc = acc + r_scr[off:off + th * Wp, t * cout:(t + 1) * cout]

    # One store per step; the wrapper strips the Wp-W pad columns while it is
    # transposing back to NCHW anyway.
    # TODO(synk): lane-dense (th, W*Cout) output layout would further cut the
    #             masked-vst writeback cost when W*Cout % 128 == 0.
    o_ref[0, 0] = acc.astype(o_ref.dtype)


# --------------------------- parameters / glue -------------------------------


def fold_bn(gamma, beta, mean, var, eps=1e-5):
    scale = gamma / jnp.sqrt(var + eps)
    bias = beta - mean * scale
    return scale, bias


def _round_up(x, m):
    return ((x + m - 1) // m) * m


def _vmem_estimate(th, W, Wp, cin, cmid, cout):
    """Rough per-core VMEM footprint (bytes), incl. lane padding + temps."""
    lane = lambda c: _round_up(c, 128)
    sub = lambda r: _round_up(max(r, 1), 8)
    rows = th + 4
    b = 0
    b += 2 * sub(th * W) * lane(cin) * 4          # x core block (double buffer)
    b += 2 * sub(2 * W) * lane(cin) * 4           # halo block
    b += 2 * sub(th * Wp) * lane(cout) * 4        # output block
    b += 2 * sub(cin) * lane(cmid) * 2            # w1 (bf16)
    b += 2 * sub(cmid) * lane(9 * cout) * 2       # w2g (bf16)
    b += 2 * 3 * 8 * (2 * lane(cin) + lane(cmid)) * 4   # scales / biases
    b += sub(rows * Wp) * lane(cmid) * 4          # z scratch
    b += sub(rows * Wp) * lane(9 * cout) * 4      # r scratch
    b += sub(th * W) * lane(cmid) * 4             # z_core value
    b += sub(2 * W) * lane(cmid) * 4              # z_halo value
    b += sub(th * Wp) * lane(cout) * 4            # acc value
    b += sub(rows * Wp) * lane(cmid) * 2          # z bf16 copy
    return b


def _pick_tile_rows(H, W, cin, cmid, cout, budget=20 << 20):
    """Largest row-tile th that divides H and fits the VMEM budget."""
    cand = [t for t in (32, 16, 8, 4, 2, 1) if H % t == 0]
    Wp = _round_up(W + 1, 8)
    for th in cand:
        if _vmem_estimate(th, W, Wp, cin, cmid, cout) <= budget:
            return th
    return cand[-1]


def init_params(key, n_channels, growth_rate):
    c_mid = 4 * growth_rate
    ks = jax.random.split(key, 10)
    params = {
        "bn1": dict(
            gamma=jax.random.uniform(ks[0], (n_channels,), jnp.float32, 0.5, 1.5),
            beta=0.1 * jax.random.normal(ks[1], (n_channels,), jnp.float32),
            mean=0.1 * jax.random.normal(ks[2], (n_channels,), jnp.float32),
            var=jax.random.uniform(ks[3], (n_channels,), jnp.float32, 0.5, 1.5),
        ),
        # torch Conv2d weight (out, in, 1, 1) stored here as (in, out)
        "w1": jax.random.normal(ks[4], (n_channels, c_mid), jnp.float32)
        / jnp.sqrt(float(n_channels)),
        "bn2": dict(
            gamma=jax.random.uniform(ks[5], (c_mid,), jnp.float32, 0.5, 1.5),
            beta=0.1 * jax.random.normal(ks[6], (c_mid,), jnp.float32),
            mean=0.1 * jax.random.normal(ks[7], (c_mid,), jnp.float32),
            var=jax.random.uniform(ks[8], (c_mid,), jnp.float32, 0.5, 1.5),
        ),
        # torch Conv2d weight (out, in, 3, 3) stored here as (3, 3, in, out) [HWIO]
        "w2": jax.random.normal(ks[9], (3, 3, c_mid, growth_rate), jnp.float32)
        / jnp.sqrt(float(c_mid * 9)),
    }
    return params


@jax.jit
def dense_layer_forward(x_nchw, params):
    N, cin, H, W = x_nchw.shape
    cmid = params["w1"].shape[1]
    cout = params["w2"].shape[3]

    s1, b1 = fold_bn(**params["bn1"])
    s2, b2 = fold_bn(**params["bn2"])
    # Fold BN2's scale into the 1x1 weight (in f32, before the bf16 cast).
    w1 = (params["w1"] * s2[None, :]).astype(jnp.bfloat16)        # (Cin, Cmid)
    w2g = (jnp.transpose(params["w2"], (2, 0, 1, 3))
           .reshape(cmid, 9 * cout).astype(jnp.bfloat16))         # (Cmid, 9*Cout)

    x_nhwc = jnp.transpose(x_nchw, (0, 2, 3, 1))                  # NCHW -> NHWC

    th = _pick_tile_rows(H, W, cin, cmid, cout)
    nblk = H // th
    Wp = _round_up(W + 1, 8)

    # Core rows per tile (free reshape).
    x_core = x_nhwc.reshape(N, nblk, th * W, cin)
    # Halo rows (row above / below each tile): tiny gathers, no full pad copy.
    idx = jnp.arange(nblk)
    top = jnp.take(x_nhwc, jnp.maximum(idx * th - 1, 0), axis=1)  # (N,nblk,W,Cin)
    bot = jnp.take(x_nhwc, jnp.minimum(idx * th + th, H - 1), axis=1)
    x_halo = jnp.concatenate([top, bot], axis=2)                  # (N,nblk,2W,Cin)

    vmem_est = _vmem_estimate(th, W, Wp, cin, cmid, cout)
    vmem_limit = min(60 << 20, max(int(1.5 * vmem_est) + (4 << 20), 32 << 20))

    kern = functools.partial(_dense_layer_kernel, nblk, th, W, Wp)
    y2p = pl.pallas_call(
        kern,
        out_shape=jax.ShapeDtypeStruct((N, nblk, th * Wp, cout), x_nchw.dtype),
        grid_spec=pltpu.PrefetchScalarGridSpec(
            num_scalar_prefetch=0,
            grid=(N, nblk),
            in_specs=[
                pl.BlockSpec((1, 1, th * W, cin), lambda n, b: (n, b, 0, 0)),
                pl.BlockSpec((1, 1, 2 * W, cin), lambda n, b: (n, b, 0, 0)),
                pl.BlockSpec((1, cin), lambda n, b: (0, 0)),
                pl.BlockSpec((1, cin), lambda n, b: (0, 0)),
                pl.BlockSpec((cin, cmid), lambda n, b: (0, 0)),
                pl.BlockSpec((1, cmid), lambda n, b: (0, 0)),
                pl.BlockSpec((cmid, 9 * cout), lambda n, b: (0, 0)),
            ],
            out_specs=pl.BlockSpec((1, 1, th * Wp, cout),
                                   lambda n, b: (n, b, 0, 0)),
            scratch_shapes=[
                pltpu.VMEM(((th + 4) * Wp, cmid), jnp.float32),
                pltpu.VMEM(((th + 4) * Wp, 9 * cout), jnp.float32),
            ],
        ),
        compiler_params=pltpu.CompilerParams(
            dimension_semantics=("parallel", "parallel"),
            vmem_limit_bytes=vmem_limit),
    )(x_core, x_halo,
      s1.reshape(1, cin), b1.reshape(1, cin), w1,
      b2.reshape(1, cmid), w2g)

    # Strip the row pad while transposing back to NCHW (one fused XLA pass).
    y2 = y2p.reshape(N, nblk, th, Wp, cout)[:, :, :, :W, :]
    y2_nchw = jnp.transpose(y2, (0, 4, 1, 2, 3)).reshape(N, cout, H, W)
    return jnp.concatenate([x_nchw, y2_nchw], axis=1)


# ----------------------------- reference (pure JAX) ---------------------------


def reference_forward(x_nchw, params):
    # Same math / same bf16 quantization points as the kernel (BN2 scale folded
    # into w1, bf16 MXU inputs, f32 accumulation) so only reduction order differs.
    x = jnp.transpose(x_nchw, (0, 2, 3, 1))
    s1, b1 = fold_bn(**params["bn1"])
    s2, b2 = fold_bn(**params["bn2"])
    w1 = (params["w1"] * s2[None, :]).astype(jnp.bfloat16)[None, None]  # HWIO
    w2 = params["w2"].astype(jnp.bfloat16)                              # HWIO

    y = jnp.maximum(x * s1 + b1, 0.0).astype(jnp.bfloat16)
    y = lax.conv_general_dilated(
        y, w1, (1, 1), "VALID",
        dimension_numbers=("NHWC", "HWIO", "NHWC"),
        preferred_element_type=jnp.float32)
    y = jnp.maximum(y + b2, 0.0).astype(jnp.bfloat16)
    y = lax.conv_general_dilated(
        y, w2, (1, 1), "SAME",
        dimension_numbers=("NHWC", "HWIO", "NHWC"),
        preferred_element_type=jnp.float32)
    y = y.astype(x_nchw.dtype)
    return jnp.concatenate([x_nchw, jnp.transpose(y, (0, 3, 1, 2))], axis=1)


if __name__ == "__main__":
    key = jax.random.PRNGKey(0)
    k_x, k_p = jax.random.split(key)

    N, C, H, W = 2, 8, 16, 16
    growth_rate = 8

    x = jax.random.normal(k_x, (N, C, H, W), jnp.float32)
    params = init_params(k_p, C, growth_rate)

    out = jax.block_until_ready(dense_layer_forward(x, params))
    assert out.shape == (N, C + growth_rate, H, W), out.shape

    ref = reference_forward(x, params)
    max_err = float(jnp.max(jnp.abs(out - ref)))
    assert max_err < 1e-2, f"mismatch vs reference: {max_err}"

    print("KERNEL_OK")
</pallas_src>

<mosaic_0001>
module attributes {stable_mosaic.version = 11 : i64} {
  func.func @_dense_layer_kernel(%arg0: i32, %arg1: i32, %arg2: memref<1x1x256x8xf32, #tpu.memory_space<vmem>>, %arg3: memref<1x1x32x8xf32, #tpu.memory_space<vmem>>, %arg4: memref<1x8xf32, #tpu.memory_space<vmem>>, %arg5: memref<1x8xf32, #tpu.memory_space<vmem>>, %arg6: memref<8x32xbf16, #tpu.memory_space<vmem>>, %arg7: memref<1x32xf32, #tpu.memory_space<vmem>>, %arg8: memref<32x72xbf16, #tpu.memory_space<vmem>>, %arg9: memref<1x1x384x8xf32, #tpu.memory_space<vmem>>, %arg10: memref<480x32xf32, #tpu.memory_space<vmem>>, %arg11: memref<480x72xf32, #tpu.memory_space<vmem>>) attributes {dimension_semantics = [#tpu.dimension_semantics<parallel>, #tpu.dimension_semantics<parallel>], iteration_bounds = array<i64: 2, 1>, scalar_prefetch = 0 : i64, scratch_operands = 2 : i64, tpu.core_type = #tpu.core_type<tc>, window_params = [{transform_indices = @transform_0, window_bounds = array<i64: 1, 1, 256, 8>}, {transform_indices = @transform_1, window_bounds = array<i64: 1, 1, 32, 8>}, {pipeline_mode = #tpu.pipeline_mode<synchronous>, transform_indices = @transform_2, window_bounds = array<i64: 1, 8>}, {pipeline_mode = #tpu.pipeline_mode<synchronous>, transform_indices = @transform_3, window_bounds = array<i64: 1, 8>}, {pipeline_mode = #tpu.pipeline_mode<synchronous>, transform_indices = @transform_4, window_bounds = array<i64: 8, 32>}, {pipeline_mode = #tpu.pipeline_mode<synchronous>, transform_indices = @transform_5, window_bounds = array<i64: 1, 32>}, {pipeline_mode = #tpu.pipeline_mode<synchronous>, transform_indices = @transform_6, window_bounds = array<i64: 32, 72>}, {transform_indices = @transform_7, window_bounds = array<i64: 1, 1, 384, 8>}]} {
    %cst = arith.constant 0.000000e+00 : f32
    %0 = vector.broadcast %cst : f32 to vector<24x32xf32>
    %cst_0 = arith.constant 0.000000e+00 : f32
    %1 = vector.broadcast %cst_0 : f32 to vector<8x32xf32>
    %c0 = arith.constant 0 : index
    %c0_1 = arith.constant 0 : index
    %2 = vector.load %arg10[%c0, %c0_1] : memref<480x32xf32, #tpu.memory_space<vmem>>, vector<24x32xf32>
    tpu.vector_store %arg10[%c0, %c0_1], %0 {strides = array<i32>} : memref<480x32xf32, #tpu.memory_space<vmem>>, vector<24x32xf32>,
    %c456 = arith.constant 456 : index
    %c0_2 = arith.constant 0 : index
    %3 = vector.load %arg10[%c456, %c0_2] : memref<480x32xf32, #tpu.memory_space<vmem>>, vector<24x32xf32>
    tpu.vector_store %arg10[%c456, %c0_2], %0 {strides = array<i32>} : memref<480x32xf32, #tpu.memory_space<vmem>>, vector<24x32xf32>,
    %c40 = arith.constant 40 : index
    %c0_3 = arith.constant 0 : index
    %4 = vector.load %arg10[%c40, %c0_3] : memref<480x32xf32, #tpu.memory_space<vmem>>, vector<8x32xf32>
    tpu.vector_store %arg10[%c40, %c0_3], %1 {strides = array<i32>} : memref<480x32xf32, #tpu.memory_space<vmem>>, vector<8x32xf32>,
    %c64 = arith.constant 64 : index
    %c0_4 = arith.constant 0 : index
    %5 = vector.load %arg10[%c64, %c0_4] : memref<480x32xf32, #tpu.memory_space<vmem>>, vector<8x32xf32>
    tpu.vector_store %arg10[%c64, %c0_4], %1 {strides = array<i32>} : memref<480x32xf32, #tpu.memory_space<vmem>>, vector<8x32xf32>,
    %c88 = arith.constant 88 : index
    %c0_5 = arith.constant 0 : index
    %6 = vector.load %arg10[%c88, %c0_5] : memref<480x32xf32, #tpu.memory_space<vmem>>, vector<8x32xf32>
    tpu.vector_store %arg10[%c88, %c0_5], %1 {strides = array<i32>} : memref<480x32xf32, #tpu.memory_space<vmem>>, vector<8x32xf32>,
    %c112 = arith.constant 112 : index
    %c0_6 = arith.constant 0 : index
    %7 = vector.load %arg10[%c112, %c0_6] : memref<480x32xf32, #tpu.memory_space<vmem>>, vector<8x32xf32>
    tpu.vector_store %arg10[%c112, %c0_6], %1 {strides = array<i32>} : memref<480x32xf32, #tpu.memory_space<vmem>>, vector<8x32xf32>,
    %c136 = arith.constant 136 : index
    %c0_7 = arith.constant 0 : index
    %8 = vector.load %arg10[%c136, %c0_7] : memref<480x32xf32, #tpu.memory_space<vmem>>, vector<8x32xf32>
    tpu.vector_store %arg10[%c136, %c0_7], %1 {strides = array<i32>} : memref<480x32xf32, #tpu.memory_space<vmem>>, vector<8x32xf32>,
    %c160 = arith.constant 160 : index
    %c0_8 = arith.constant 0 : index
    %9 = vector.load %arg10[%c160, %c0_8] : memref<480x32xf32, #tpu.memory_space<vmem>>, vector<8x32xf32>
    tpu.vector_store %arg10[%c160, %c0_8], %1 {strides = array<i32>} : memref<480x32xf32, #tpu.memory_space<vmem>>, vector<8x32xf32>,
    %c184 = arith.constant 184 : index
    %c0_9 = arith.constant 0 : index
    %10 = vector.load %arg10[%c184, %c0_9] : memref<480x32xf32, #tpu.memory_space<vmem>>, vector<8x32xf32>
    tpu.vector_store %arg10[%c184, %c0_9], %1 {strides = array<i32>} : memref<480x32xf32, #tpu.memory_space<vmem>>, vector<8x32xf32>,
    %c208 = arith.constant 208 : index
    %c0_10 = arith.constant 0 : index
    %11 = vector.load %arg10[%c208, %c0_10] : memref<480x32xf32, #tpu.memory_space<vmem>>, vector<8x32xf32>
    tpu.vector_store %arg10[%c208, %c0_10], %1 {strides = array<i32>} : memref<480x32xf32, #tpu.memory_space<vmem>>, vector<8x32xf32>,
    %c232 = arith.constant 232 : index
    %c0_11 = arith.constant 0 : index
    %12 = vector.load %arg10[%c232, %c0_11] : memref<480x32xf32, #tpu.memory_space<vmem>>, vector<8x32xf32>
    tpu.vector_store %arg10[%c232, %c0_11], %1 {strides = array<i32>} : memref<480x32xf32, #tpu.memory_space<vmem>>, vector<8x32xf32>,
    %c256 = arith.constant 256 : index
    %c0_12 = arith.constant 0 : index
    %13 = vector.load %arg10[%c256, %c0_12] : memref<480x32xf32, #tpu.memory_space<vmem>>, vector<8x32xf32>
    tpu.vector_store %arg10[%c256, %c0_12], %1 {strides = array<i32>} : memref<480x32xf32, #tpu.memory_space<vmem>>, vector<8x32xf32>,
    %c280 = arith.constant 280 : index
    %c0_13 = arith.constant 0 : index
    %14 = vector.load %arg10[%c280, %c0_13] : memref<480x32xf32, #tpu.memory_space<vmem>>, vector<8x32xf32>
    tpu.vector_store %arg10[%c280, %c0_13], %1 {strides = array<i32>} : memref<480x32xf32, #tpu.memory_space<vmem>>, vector<8x32xf32>,
    %c304 = arith.constant 304 : index
    %c0_14 = arith.constant 0 : index
    %15 = vector.load %arg10[%c304, %c0_14] : memref<480x32xf32, #tpu.memory_space<vmem>>, vector<8x32xf32>
    tpu.vector_store %arg10[%c304, %c0_14], %1 {strides = array<i32>} : memref<480x32xf32, #tpu.memory_space<vmem>>, vector<8x32xf32>,
    %c328 = arith.constant 328 : index
    %c0_15 = arith.constant 0 : index
    %16 = vector.load %arg10[%c328, %c0_15] : memref<480x32xf32, #tpu.memory_space<vmem>>, vector<8x32xf32>
    tpu.vector_store %arg10[%c328, %c0_15], %1 {strides = array<i32>} : memref<480x32xf32, #tpu.memory_space<vmem>>, vector<8x32xf32>,
    %c352 = arith.constant 352 : index
    %c0_16 = arith.constant 0 : index
    %17 = vector.load %arg10[%c352, %c0_16] : memref<480x32xf32, #tpu.memory_space<vmem>>, vector<8x32xf32>
    tpu.vector_store %arg10[%c352, %c0_16], %1 {strides = array<i32>} : memref<480x32xf32, #tpu.memory_space<vmem>>, vector<8x32xf32>,
    %c376 = arith.constant 376 : index
    %c0_17 = arith.constant 0 : index
    %18 = vector.load %arg10[%c376, %c0_17] : memref<480x32xf32, #tpu.memory_space<vmem>>, vector<8x32xf32>
    tpu.vector_store %arg10[%c376, %c0_17], %1 {strides = array<i32>} : memref<480x32xf32, #tpu.memory_space<vmem>>, vector<8x32xf32>,
    %c400 = arith.constant 400 : index
    %c0_18 = arith.constant 0 : index
    %19 = vector.load %arg10[%c400, %c0_18] : memref<480x32xf32, #tpu.memory_space<vmem>>, vector<8x32xf32>
    tpu.vector_store %arg10[%c400, %c0_18], %1 {strides = array<i32>} : memref<480x32xf32, #tpu.memory_space<vmem>>, vector<8x32xf32>,
    %c424 = arith.constant 424 : index
    %c0_19 = arith.constant 0 : index
    %20 = vector.load %arg10[%c424, %c0_19] : memref<480x32xf32, #tpu.memory_space<vmem>>, vector<8x32xf32>
    tpu.vector_store %arg10[%c424, %c0_19], %1 {strides = array<i32>} : memref<480x32xf32, #tpu.memory_space<vmem>>, vector<8x32xf32>,
    %c448 = arith.constant 448 : index
    %c0_20 = arith.constant 0 : index
    %21 = vector.load %arg10[%c448, %c0_20] : memref<480x32xf32, #tpu.memory_space<vmem>>, vector<8x32xf32>
    tpu.vector_store %arg10[%c448, %c0_20], %1 {strides = array<i32>} : memref<480x32xf32, #tpu.memory_space<vmem>>, vector<8x32xf32>,
    %c0_21 = arith.constant 0 : index
    %c0_22 = arith.constant 0 : index
    %c0_23 = arith.constant 0 : index
    %c0_24 = arith.constant 0 : index
    %22 = vector.load %arg2[%c0_21, %c0_22, %c0_23, %c0_24] : memref<1x1x256x8xf32, #tpu.memory_space<vmem>>, vector<1x1x256x8xf32>
    %23 = vector.shape_cast %22 : vector<1x1x256x8xf32> to vector<256x8xf32>
    %c0_25 = arith.constant 0 : index
    %c0_26 = arith.constant 0 : index
    %24 = vector.load %arg4[%c0_25, %c0_26] : memref<1x8xf32, #tpu.memory_space<vmem>>, vector<1x8xf32>
    %25 = vector.broadcast %24 : vector<1x8xf32> to vector<256x8xf32>
    %26 = arith.mulf %23, %25 : vector<256x8xf32>
    %c0_27 = arith.constant 0 : index
    %c0_28 = arith.constant 0 : index
    %27 = vector.load %arg5[%c0_27, %c0_28] : memref<1x8xf32, #tpu.memory_space<vmem>>, vector<1x8xf32>
    %28 = vector.broadcast %27 : vector<1x8xf32> to vector<256x8xf32>
    %29 = arith.addf %26, %28 : vector<256x8xf32>
    %cst_29 = arith.constant 0.000000e+00 : f32
    %30 = vector.broadcast %cst_29 : f32 to vector<256x8xf32>
    %31 = arith.maximumf %29, %30 : vector<256x8xf32>
    %32 = arith.truncf %31 : vector<256x8xf32> to vector<256x8xbf16>
    %c0_30 = arith.constant 0 : index
    %c0_31 = arith.constant 0 : index
    %33 = vector.load %arg6[%c0_30, %c0_31] : memref<8x32xbf16, #tpu.memory_space<vmem>>, vector<8x32xbf16>
    %cst_32 = arith.constant dense<0.000000e+00> : vector<256x32xf32>
    %34 = tpu.matmul %32, %33, %cst_32 {dimension_numbers = #tpu.dot_dimension_numbers<[1], [0], [0], [1], [0, 0, 1, 1], [], []>} : vector<256x8xbf16>, vector<8x32xbf16>, vector<256x32xf32> -> vector<256x32xf32>
    %c0_33 = arith.constant 0 : index
    %c0_34 = arith.constant 0 : index
    %35 = vector.load %arg7[%c0_33, %c0_34] : memref<1x32xf32, #tpu.memory_space<vmem>>, vector<1x32xf32>
    %36 = vector.broadcast %35 : vector<1x32xf32> to vector<256x32xf32>
    %37 = arith.addf %34, %36 : vector<256x32xf32>
    %cst_35 = arith.constant 0.000000e+00 : f32
    %38 = vector.broadcast %cst_35 : f32 to vector<256x32xf32>
    %39 = arith.maximumf %37, %38 : vector<256x32xf32>
    %40 = vector.extract_strided_slice %39 {offsets = [0, 0], sizes = [16, 32], strides = [1, 1]} : vector<256x32xf32> to vector<16x32xf32>
    %c48 = arith.constant 48 : index
    %c0_36 = arith.constant 0 : index
    %41 = vector.load %arg10[%c48, %c0_36] : memref<480x32xf32, #tpu.memory_space<vmem>>, vector<16x32xf32>
    tpu.vector_store %arg10[%c48, %c0_36], %40 {strides = array<i32>} : memref<480x32xf32, #tpu.memory_space<vmem>>, vector<16x32xf32>,
    %42 = vector.extract_strided_slice %39 {offsets = [16, 0], sizes = [16, 32], strides = [1, 1]} : vector<256x32xf32> to vector<16x32xf32>
    %c72 = arith.constant 72 : index
    %c0_37 = arith.constant 0 : index
    %43 = vector.load %arg10[%c72, %c0_37] : memref<480x32xf32, #tpu.memory_space<vmem>>, vector<16x32xf32>
    tpu.vector_store %arg10[%c72, %c0_37], %42 {strides = array<i32>} : memref<480x32xf32, #tpu.memory_space<vmem>>, vector<16x32xf32>,
    %44 = vector.extract_strided_slice %39 {offsets = [32, 0], sizes = [16, 32], strides = [1, 1]} : vector<256x32xf32> to vector<16x32xf32>
    %c96 = arith.constant 96 : index
    %c0_38 = arith.constant 0 : index
    %45 = vector.load %arg10[%c96, %c0_38] : memref<480x32xf32, #tpu.memory_space<vmem>>, vector<16x32xf32>
    tpu.vector_store %arg10[%c96, %c0_38], %44 {strides = array<i32>} : memref<480x32xf32, #tpu.memory_space<vmem>>, vector<16x32xf32>,
    %46 = vector.extract_strided_slice %39 {offsets = [48, 0], sizes = [16, 32], strides = [1, 1]} : vector<256x32xf32> to vector<16x32xf32>
    %c120 = arith.constant 120 : index
    %c0_39 = arith.constant 0 : index
    %47 = vector.load %arg10[%c120, %c0_39] : memref<480x32xf32, #tpu.memory_space<vmem>>, vector<16x32xf32>
    tpu.vector_store %arg10[%c120, %c0_39], %46 {strides = array<i32>} : memref<480x32xf32, #tpu.memory_space<vmem>>, vector<16x32xf32>,
    %48 = vector.extract_strided_slice %39 {offsets = [64, 0], sizes = [16, 32], strides = [1, 1]} : vector<256x32xf32> to vector<16x32xf32>
    %c144 = arith.constant 144 : index
    %c0_40 = arith.constant 0 : index
    %49 = vector.load %arg10[%c144, %c0_40] : memref<480x32xf32, #tpu.memory_space<vmem>>, vector<16x32xf32>
    tpu.vector_store %arg10[%c144, %c0_40], %48 {strides = array<i32>} : memref<480x32xf32, #tpu.memory_space<vmem>>, vector<16x32xf32>,
    %50 = vector.extract_strided_slice %39 {offsets = [80, 0], sizes = [16, 32], strides = [1, 1]} : vector<256x32xf32> to vector<16x32xf32>
    %c168 = arith.constant 168 : index
    %c0_41 = arith.constant 0 : index
    %51 = vector.load %arg10[%c168, %c0_41] : memref<480x32xf32, #tpu.memory_space<vmem>>, vector<16x32xf32>
    tpu.vector_store %arg10[%c168, %c0_41], %50 {strides = array<i32>} : memref<480x32xf32, #tpu.memory_space<vmem>>, vector<16x32xf32>,
    %52 = vector.extract_strided_slice %39 {offsets = [96, 0], sizes = [16, 32], strides = [1, 1]} : vector<256x32xf32> to vector<16x32xf32>
    %c192 = arith.constant 192 : index
    %c0_42 = arith.constant 0 : index
    %53 = vector.load %arg10[%c192, %c0_42] : memref<480x32xf32, #tpu.memory_space<vmem>>, vector<16x32xf32>
    tpu.vector_store %arg10[%c192, %c0_42], %52 {strides = array<i32>} : memref<480x32xf32, #tpu.memory_space<vmem>>, vector<16x32xf32>,
    %54 = vector.extract_strided_slice %39 {offsets = [112, 0], sizes = [16, 32], strides = [1, 1]} : vector<256x32xf32> to vector<16x32xf32>
    %c216 = arith.constant 216 : index
    %c0_43 = arith.constant 0 : index
    %55 = vector.load %arg10[%c216, %c0_43] : memref<480x32xf32, #tpu.memory_space<vmem>>, vector<16x32xf32>
    tpu.vector_store %arg10[%c216, %c0_43], %54 {strides = array<i32>} : memref<480x32xf32, #tpu.memory_space<vmem>>, vector<16x32xf32>,
    %56 = vector.extract_strided_slice %39 {offsets = [128, 0], sizes = [16, 32], strides = [1, 1]} : vector<256x32xf32> to vector<16x32xf32>
    %c240 = arith.constant 240 : index
    %c0_44 = arith.constant 0 : index
    %57 = vector.load %arg10[%c240, %c0_44] : memref<480x32xf32, #tpu.memory_space<vmem>>, vector<16x32xf32>
    tpu.vector_store %arg10[%c240, %c0_44], %56 {strides = array<i32>} : memref<480x32xf32, #tpu.memory_space<vmem>>, vector<16x32xf32>,
    %58 = vector.extract_strided_slice %39 {offsets = [144, 0], sizes = [16, 32], strides = [1, 1]} : vector<256x32xf32> to vector<16x32xf32>
    %c264 = arith.constant 264 : index
    %c0_45 = arith.constant 0 : index
    %59 = vector.load %arg10[%c264, %c0_45] : memref<480x32xf32, #tpu.memory_space<vmem>>, vector<16x32xf32>
    tpu.vector_store %arg10[%c264, %c0_45], %58 {strides = array<i32>} : memref<480x32xf32, #tpu.memory_space<vmem>>, vector<16x32xf32>,
    %60 = vector.extract_strided_slice %39 {offsets = [160, 0], sizes = [16, 32], strides = [1, 1]} : vector<256x32xf32> to vector<16x32xf32>
    %c288 = arith.constant 288 : index
    %c0_46 = arith.constant 0 : index
    %61 = vector.load %arg10[%c288, %c0_46] : memref<480x32xf32, #tpu.memory_space<vmem>>, vector<16x32xf32>
    tpu.vector_store %arg10[%c288, %c0_46], %60 {strides = array<i32>} : memref<480x32xf32, #tpu.memory_space<vmem>>, vector<16x32xf32>,
    %62 = vector.extract_strided_slice %39 {offsets = [176, 0], sizes = [16, 32], strides = [1, 1]} : vector<256x32xf32> to vector<16x32xf32>
    %c312 = arith.constant 312 : index
    %c0_47 = arith.constant 0 : index
    %63 = vector.load %arg10[%c312, %c0_47] : memref<480x32xf32, #tpu.memory_space<vmem>>, vector<16x32xf32>
    tpu.vector_store %arg10[%c312, %c0_47], %62 {strides = array<i32>} : memref<480x32xf32, #tpu.memory_space<vmem>>, vector<16x32xf32>,
    %64 = vector.extract_strided_slice %39 {offsets = [192, 0], sizes = [16, 32], strides = [1, 1]} : vector<256x32xf32> to vector<16x32xf32>
    %c336 = arith.constant 336 : index
    %c0_48 = arith.constant 0 : index
    %65 = vector.load %arg10[%c336, %c0_48] : memref<480x32xf32, #tpu.memory_space<vmem>>, vector<16x32xf32>
    tpu.vector_store %arg10[%c336, %c0_48], %64 {strides = array<i32>} : memref<480x32xf32, #tpu.memory_space<vmem>>, vector<16x32xf32>,
    %66 = vector.extract_strided_slice %39 {offsets = [208, 0], sizes = [16, 32], strides = [1, 1]} : vector<256x32xf32> to vector<16x32xf32>
    %c360 = arith.constant 360 : index
    %c0_49 = arith.constant 0 : index
    %67 = vector.load %arg10[%c360, %c0_49] : memref<480x32xf32, #tpu.memory_space<vmem>>, vector<16x32xf32>
    tpu.vector_store %arg10[%c360, %c0_49], %66 {strides = array<i32>} : memref<480x32xf32, #tpu.memory_space<vmem>>, vector<16x32xf32>,
    %68 = vector.extract_strided_slice %39 {offsets = [224, 0], sizes = [16, 32], strides = [1, 1]} : vector<256x32xf32> to vector<16x32xf32>
    %c384 = arith.constant 384 : index
    %c0_50 = arith.constant 0 : index
    %69 = vector.load %arg10[%c384, %c0_50] : memref<480x32xf32, #tpu.memory_space<vmem>>, vector<16x32xf32>
    tpu.vector_store %arg10[%c384, %c0_50], %68 {strides = array<i32>} : memref<480x32xf32, #tpu.memory_space<vmem>>, vector<16x32xf32>,
    %70 = vector.extract_strided_slice %39 {offsets = [240, 0], sizes = [16, 32], strides = [1, 1]} : vector<256x32xf32> to vector<16x32xf32>
    %c408 = arith.constant 408 : index
    %c0_51 = arith.constant 0 : index
    %71 = vector.load %arg10[%c408, %c0_51] : memref<480x32xf32, #tpu.memory_space<vmem>>, vector<16x32xf32>
    tpu.vector_store %arg10[%c408, %c0_51], %70 {strides = array<i32>} : memref<480x32xf32, #tpu.memory_space<vmem>>, vector<16x32xf32>,
    %c0_52 = arith.constant 0 : index
    %c0_53 = arith.constant 0 : index
    %c0_54 = arith.constant 0 : index
    %c0_55 = arith.constant 0 : index
    %72 = vector.load %arg3[%c0_52, %c0_53, %c0_54, %c0_55] : memref<1x1x32x8xf32, #tpu.memory_space<vmem>>, vector<1x1x32x8xf32>
    %73 = vector.shape_cast %72 : vector<1x1x32x8xf32> to vector<32x8xf32>
    %c0_56 = arith.constant 0 : index
    %c0_57 = arith.constant 0 : index
    %74 = vector.load %arg4[%c0_56, %c0_57] : memref<1x8xf32, #tpu.memory_space<vmem>>, vector<1x8xf32>
    %75 = vector.broadcast %74 : vector<1x8xf32> to vector<32x8xf32>
    %76 = arith.mulf %73, %75 : vector<32x8xf32>
    %c0_58 = arith.constant 0 : index
    %c0_59 = arith.constant 0 : index
    %77 = vector.load %arg5[%c0_58, %c0_59] : memref<1x8xf32, #tpu.memory_space<vmem>>, vector<1x8xf32>
    %78 = vector.broadcast %77 : vector<1x8xf32> to vector<32x8xf32>
    %79 = arith.addf %76, %78 : vector<32x8xf32>
    %cst_60 = arith.constant 0.000000e+00 : f32
    %80 = vector.broadcast %cst_60 : f32 to vector<32x8xf32>
    %81 = arith.maximumf %79, %80 : vector<32x8xf32>
    %82 = arith.truncf %81 : vector<32x8xf32> to vector<32x8xbf16>
    %c0_61 = arith.constant 0 : index
    %c0_62 = arith.constant 0 : index
    %83 = vector.load %arg6[%c0_61, %c0_62] : memref<8x32xbf16, #tpu.memory_space<vmem>>, vector<8x32xbf16>
    %cst_63 = arith.constant dense<0.000000e+00> : vector<32x32xf32>
    %84 = tpu.matmul %82, %83, %cst_63 {dimension_numbers = #tpu.dot_dimension_numbers<[1], [0], [0], [1], [0, 0, 1, 1], [], []>} : vector<32x8xbf16>, vector<8x32xbf16>, vector<32x32xf32> -> vector<32x32xf32>
    %c0_64 = arith.constant 0 : index
    %c0_65 = arith.constant 0 : index
    %85 = vector.load %arg7[%c0_64, %c0_65] : memref<1x32xf32, #tpu.memory_space<vmem>>, vector<1x32xf32>
    %86 = vector.broadcast %85 : vector<1x32xf32> to vector<32x32xf32>
    %87 = arith.addf %84, %86 : vector<32x32xf32>
    %cst_66 = arith.constant 0.000000e+00 : f32
    %88 = vector.broadcast %cst_66 : f32 to vector<32x32xf32>
    %89 = arith.maximumf %87, %88 : vector<32x32xf32>
    %c0_i32 = arith.constant 0 : i32
    %90 = arith.cmpi sgt, %arg1, %c0_i32 : i32
    %91 = arith.extui %90 : i1 to i32
    %92 = arith.sitofp %91 : i32 to f32
    %c0_i32_67 = arith.constant 0 : i32
    %93 = arith.cmpi slt, %arg1, %c0_i32_67 : i32
    %94 = arith.extui %93 : i1 to i32
    %95 = arith.sitofp %94 : i32 to f32
    %96 = vector.extract_strided_slice %89 {offsets = [0, 0], sizes = [16, 32], strides = [1, 1]} : vector<32x32xf32> to vector<16x32xf32>
    %97 = vector.broadcast %92 : f32 to vector<16x32xf32>
    %98 = arith.mulf %96, %97 : vector<16x32xf32>
    %c24 = arith.constant 24 : index
    %c0_68 = arith.constant 0 : index
    %99 = vector.load %arg10[%c24, %c0_68] : memref<480x32xf32, #tpu.memory_space<vmem>>, vector<16x32xf32>
    tpu.vector_store %arg10[%c24, %c0_68], %98 {strides = array<i32>} : memref<480x32xf32, #tpu.memory_space<vmem>>, vector<16x32xf32>,
    %100 = vector.extract_strided_slice %89 {offsets = [16, 0], sizes = [16, 32], strides = [1, 1]} : vector<32x32xf32> to vector<16x32xf32>
    %101 = vector.broadcast %95 : f32 to vector<16x32xf32>
    %102 = arith.mulf %100, %101 : vector<16x32xf32>
    %c432 = arith.constant 432 : index
    %c0_69 = arith.constant 0 : index
    %103 = vector.load %arg10[%c432, %c0_69] : memref<480x32xf32, #tpu.memory_space<vmem>>, vector<16x32xf32>
    tpu.vector_store %arg10[%c432, %c0_69], %102 {strides = array<i32>} : memref<480x32xf32, #tpu.memory_space<vmem>>, vector<16x32xf32>,
    %c0_70 = arith.constant 0 : index
    %c0_71 = arith.constant 0 : index
    %104 = vector.load %arg10[%c0_70, %c0_71] : memref<480x32xf32, #tpu.memory_space<vmem>>, vector<480x32xf32>
    %105 = arith.truncf %104 : vector<480x32xf32> to vector<480x32xbf16>
    %c0_72 = arith.constant 0 : index
    %c0_73 = arith.constant 0 : index
    %106 = vector.load %arg8[%c0_72, %c0_73] : memref<32x72xbf16, #tpu.memory_space<vmem>>, vector<32x72xbf16>
    %cst_74 = arith.constant dense<0.000000e+00> : vector<480x72xf32>
    %107 = tpu.matmul %105, %106, %cst_74 {dimension_numbers = #tpu.dot_dimension_numbers<[1], [0], [0], [1], [0, 0, 1, 1], [], []>} : vector<480x32xbf16>, vector<32x72xbf16>, vector<480x72xf32> -> vector<480x72xf32>
    %c0_75 = arith.constant 0 : index
    %c0_76 = arith.constant 0 : index
    %108 = vector.load %arg11[%c0_75, %c0_76] : memref<480x72xf32, #tpu.memory_space<vmem>>, vector<480x72xf32>
    tpu.vector_store %arg11[%c0_75, %c0_76], %107 {strides = array<i32>} : memref<480x72xf32, #tpu.memory_space<vmem>>, vector<480x72xf32>,
    %cst_77 = arith.constant 0.000000e+00 : f32
    %109 = vector.broadcast %cst_77 : f32 to vector<384x8xf32>
    %c23 = arith.constant 23 : index
    %c0_78 = arith.constant 0 : index
    %110 = vector.load %arg11[%c23, %c0_78] : memref<480x72xf32, #tpu.memory_space<vmem>>, vector<384x8xf32>
    %111 = arith.addf %109, %110 : vector<384x8xf32>
    %c24_79 = arith.constant 24 : index
    %c8 = arith.constant 8 : index
    %112 = vector.load %arg11[%c24_79, %c8] : memref<480x72xf32, #tpu.memory_space<vmem>>, vector<384x8xf32>
    %113 = arith.addf %111, %112 : vector<384x8xf32>
    %c25 = arith.constant 25 : index
    %c16 = arith.constant 16 : index
    %114 = vector.load %arg11[%c25, %c16] : memref<480x72xf32, #tpu.memory_space<vmem>>, vector<384x8xf32>
    %115 = arith.addf %113, %114 : vector<384x8xf32>
    %c47 = arith.constant 47 : index
    %c24_80 = arith.constant 24 : index
    %116 = vector.load %arg11[%c47, %c24_80] : memref<480x72xf32, #tpu.memory_space<vmem>>, vector<384x8xf32>
    %117 = arith.addf %115, %116 : vector<384x8xf32>
    %c48_81 = arith.constant 48 : index
    %c32 = arith.constant 32 : index
    %118 = vector.load %arg11[%c48_81, %c32] : memref<480x72xf32, #tpu.memory_space<vmem>>, vector<384x8xf32>
    %119 = arith.addf %117, %118 : vector<384x8xf32>
    %c49 = arith.constant 49 : index
    %c40_82 = arith.constant 40 : index
    %120 = vector.load %arg11[%c49, %c40_82] : memref<480x72xf32, #tpu.memory_space<vmem>>, vector<384x8xf32>
    %121 = arith.addf %119, %120 : vector<384x8xf32>
    %c71 = arith.constant 71 : index
    %c48_83 = arith.constant 48 : index
    %122 = vector.load %arg11[%c71, %c48_83] : memref<480x72xf32, #tpu.memory_space<vmem>>, vector<384x8xf32>
    %123 = arith.addf %121, %122 : vector<384x8xf32>
    %c72_84 = arith.constant 72 : index
    %c56 = arith.constant 56 : index
    %124 = vector.load %arg11[%c72_84, %c56] : memref<480x72xf32, #tpu.memory_space<vmem>>, vector<384x8xf32>
    %125 = arith.addf %123, %124 : vector<384x8xf32>
    %c73 = arith.constant 73 : index
    %c64_85 = arith.constant 64 : index
    %126 = vector.load %arg11[%c73, %c64_85] : memref<480x72xf32, #tpu.memory_space<vmem>>, vector<384x8xf32>
    %127 = arith.addf %125, %126 : vector<384x8xf32>
    %c0_86 = arith.constant 0 : index
    %c0_87 = arith.constant 0 : index
    %c0_88 = arith.constant 0 : index
    %c0_89 = arith.constant 0 : index
    %128 = vector.load %arg9[%c0_86, %c0_87, %c0_88, %c0_89] : memref<1x1x384x8xf32, #tpu.memory_space<vmem>>, vector<1x1x384x8xf32>
    %129 = vector.shape_cast %128 : vector<1x1x384x8xf32> to vector<384x8xf32>
    %130 = vector.shape_cast %127 : vector<384x8xf32> to vector<1x1x384x8xf32>
    tpu.vector_store %arg9[%c0_86, %c0_87, %c0_88, %c0_89], %130 {strides = array<i32>} : memref<1x1x384x8xf32, #tpu.memory_space<vmem>>, vector<1x1x384x8xf32>,
    return
  }
  func.func @transform_0(%arg0: i32, %arg1: i32) -> (i32, i32, i32, i32) {
    %c0_i32 = arith.constant 0 : i32
    %c0_i32_0 = arith.constant 0 : i32
    %c0_i32_1 = arith.constant 0 : i32
    return %arg0, %arg1, %c0_i32, %c0_i32_0 : i32, i32, i32, i32
  }
  func.func @transform_1(%arg0: i32, %arg1: i32) -> (i32, i32, i32, i32) {
    %c0_i32 = arith.constant 0 : i32
    %c0_i32_0 = arith.constant 0 : i32
    %c0_i32_1 = arith.constant 0 : i32
    return %arg0, %arg1, %c0_i32, %c0_i32_0 : i32, i32, i32, i32
  }
  func.func @transform_2(%arg0: i32, %arg1: i32) -> (i32, i32) {
    %c0_i32 = arith.constant 0 : i32
    %c0_i32_0 = arith.constant 0 : i32
    %c0_i32_1 = arith.constant 0 : i32
    return %c0_i32, %c0_i32_0 : i32, i32
  }
  func.func @transform_3(%arg0: i32, %arg1: i32) -> (i32, i32) {
    %c0_i32 = arith.constant 0 : i32
    %c0_i32_0 = arith.constant 0 : i32
    %c0_i32_1 = arith.constant 0 : i32
    return %c0_i32, %c0_i32_0 : i32, i32
  }
  func.func @transform_4(%arg0: i32, %arg1: i32) -> (i32, i32) {
    %c0_i32 = arith.constant 0 : i32
    %c0_i32_0 = arith.constant 0 : i32
    %c0_i32_1 = arith.constant 0 : i32
    return %c0_i32, %c0_i32_0 : i32, i32
  }
  func.func @transform_5(%arg0: i32, %arg1: i32) -> (i32, i32) {
    %c0_i32 = arith.constant 0 : i32
    %c0_i32_0 = arith.constant 0 : i32
    %c0_i32_1 = arith.constant 0 : i32
    return %c0_i32, %c0_i32_0 : i32, i32
  }
  func.func @transform_6(%arg0: i32, %arg1: i32) -> (i32, i32) {
    %c0_i32 = arith.constant 0 : i32
    %c0_i32_0 = arith.constant 0 : i32
    %c0_i32_1 = arith.constant 0 : i32
    return %c0_i32, %c0_i32_0 : i32, i32
  }
  func.func @transform_7(%arg0: i32, %arg1: i32) -> (i32, i32, i32, i32) {
    %c0_i32 = arith.constant 0 : i32
    %c0_i32_0 = arith.constant 0 : i32
    %c0_i32_1 = arith.constant 0 : i32
    return %arg0, %arg1, %c0_i32, %c0_i32_0 : i32, i32, i32, i32
  }
}

</mosaic_0001>

<llo_original>
// kernel: dense_layer_forward.1
$region0: #{dense_layer_forward.1}
  #allocation0 [shape = 'u32[]', space=smem, size = 0x4, offset = 0x4, fixed_abs, tag = 'smem constant byte address 0x4 - core index']
  #allocation1 [shape = 'u32[144,128]{1,0:T(1,128)}', space=vmem, size = 0x12000, scoped, tag = 'internal scratch']
  #allocation2 [shape = 'f32[480,32]{1,0:T(8,128)}', space=vmem, size = 0x3c000, scoped, tag = 'scratch operand']
  #allocation3 [shape = 'f32[480,72]{1,0:T(8,128)}', space=vmem, size = 0x3c000, scoped, tag = 'scratch operand']
  %s0 = inlined_call_operand.vmem [shape: f32[2,1,256,8], index: 0, kind: input, shape index: {}]
  %s1 = inlined_call_operand.vmem [shape: f32[2,1,32,8], index: 1, kind: input, shape index: {}]
  %s2 = inlined_call_operand.vmem [shape: f32[1,8], index: 2, kind: input, shape index: {}]
  %s3 = inlined_call_operand.vmem [shape: f32[1,8], index: 3, kind: input, shape index: {}]
  %s4 = inlined_call_operand.vmem [shape: bf16[8,32], index: 4, kind: input, shape index: {}]
  %s5 = inlined_call_operand.vmem [shape: f32[1,32], index: 5, kind: input, shape index: {}]
  %s6 = inlined_call_operand.vmem [shape: bf16[32,72], index: 6, kind: input, shape index: {}]
  %s7 = inlined_call_operand.vmem [shape: f32[2,1,384,8], index: 7, kind: output, shape index: {}]
  %s8 = sld [smem:[#allocation0]]
  $region61: #{dense_layer_forward.1} parent=0
    _
  %s10 = ssub.s32 1, %s8
  %s11 = scalar_select 0, %s10, %s8
  loop: start=0, step=1, limit=4
  $region2: #{dense_layer_forward.1} parent=0 // loop_pre_header
    _
  $region3: #{dense_layer_forward.1} parent=0 // loop_header
    %s13 = sphi 0, %s17
    %p14 = scmp.ge.s32.totalorder %s13, 4
    %s20 = sphi 0, %s32
    %s21 = sphi 0, %s28
    %s22 = sphi 0, %s20
    %s23 = sphi 0, %s21
    %s24 = sphi 0, %s22
    %s25 = sphi 0, %s23
    %s37 = sphi 0, %s39
    %s40 = sphi 0, %s37
    %s41 = sphi 0, %s40
    %s57 = sphi 0, %s41
    %s65 = sphi 0, %s67
    %s68 = sphi 0, %s65
    %s69 = sphi 0, %s68
    %s85 = sphi 0, %s69
    %s89 = sphi 0, %s89
    %s91 = sphi 0, %s89
    %s92 = sphi 0, %s91
    %s106 = sphi 0, %s92
    %s110 = sphi 0, %s110
    %s112 = sphi 0, %s110
    %s113 = sphi 0, %s112
    %s127 = sphi 0, %s113
    %s131 = sphi 0, %s131
    %s133 = sphi 0, %s131
    %s134 = sphi 0, %s133
    %s148 = sphi 0, %s134
    %s152 = sphi 0, %s152
    %s154 = sphi 0, %s152
    %s155 = sphi 0, %s154
    %s169 = sphi 0, %s155
    %s173 = sphi 0, %s173
    %s175 = sphi 0, %s173
    %s176 = sphi 0, %s175
    %s190 = sphi 0, %s176
    %s198 = sphi 0, %s200
    %s201 = sphi 0, %s198
    %s202 = sphi 0, %s201
    %s218 = sphi 0, %s202
  $region4: #{dense_layer_forward.1} parent=0 // loop_header_branch
    %16 = sbr.rel (%p14) target = $region8
  $region5: #{dense_layer_forward.1} parent=0 // loop_body
    %s18 = ssub.s32 %s13, 1
    %s19 = ssub.s32 %s13, 2
    %s26 = sadd.s32 1, %s21
    %p27 = scmp.ge.s32.totalorder %s26, 1
    %s28 = scalar_select %p27, 0, %s26
    %s29 = sadd.s32 1, %s20
    %s30 = scalar_select %p27, %s29, %s20
    %p31 = scmp.ge.s32.totalorder %s30, 2
    %s32 = scalar_select %p31, 0, %s30
    %s33 = ssub.s32 %s20, %s32
    %s34 = ssub.s32 %s21, %s28
    %s35 = sor.u32 %s33, %s34
    %p36 = scmp.eq.s32.totalorder %s35, 0
    %s38 = sadd.s32 %s37, 1
    %s39 = scalar_select %p36, %s37, %s38
    %p42 = pneg %p36
    %p43 = scmp.eq.s32.totalorder %s13, 1
    %p44 = por %p42, %p43
    %p45 = scmp.ne.s32.totalorder %s37, %s40
    %p46 = scmp.eq.s32.totalorder %s13, 0
    %p47 = por %p45, %p46
    %p48 = scmp.ne.s32.totalorder %s37, %s40
    %p49 = scmp.eq.s32.totalorder %s18, 1
    %p50 = por %p48, %p49
    %p51 = scmp.ne.s32.totalorder %s40, %s41
    %p52 = scmp.eq.s32.totalorder %s18, 0
    %p53 = por %p51, %p52
    %p54 = scmp.ne.s32.totalorder %s40, %s41
    %p55 = scmp.eq.s32.totalorder %s19, 1
    %p56 = por %p54, %p55
    %p58 = scmp.ne.s32.totalorder %s41, %s57
    %p59 = scmp.eq.s32.totalorder %s19, 0
    %p60 = por %p58, %p59
    %s61 = ssub.s32 %s20, %s32
    %s62 = ssub.s32 %s21, %s28
    %s63 = sor.u32 %s61, %s62
    %p64 = scmp.eq.s32.totalorder %s63, 0
    %s66 = sadd.s32 %s65, 1
    %s67 = scalar_select %p64, %s65, %s66
    %p70 = pneg %p64
    %p71 = scmp.eq.s32.totalorder %s13, 1
    %p72 = por %p70, %p71
    %p73 = scmp.ne.s32.totalorder %s65, %s68
    %p74 = scmp.eq.s32.totalorder %s13, 0
    %p75 = por %p73, %p74
    %p76 = scmp.ne.s32.totalorder %s65, %s68
    %p77 = scmp.eq.s32.totalorder %s18, 1
    %p78 = por %p76, %p77
    %p79 = scmp.ne.s32.totalorder %s68, %s69
    %p80 = scmp.eq.s32.totalorder %s18, 0
    %p81 = por %p79, %p80
    %p82 = scmp.ne.s32.totalorder %s68, %s69
    %p83 = scmp.eq.s32.totalorder %s19, 1
    %p84 = por %p82, %p83
    %p86 = scmp.ne.s32.totalorder %s69, %s85
    %p87 = scmp.eq.s32.totalorder %s19, 0
    %p88 = por %p86, %p87
    %s90 = sadd.s32 %s89, 1
    %p93 = scmp.eq.s32.totalorder %s13, 1
    %p94 = scmp.ne.s32.totalorder %s89, %s91
    %p95 = scmp.eq.s32.totalorder %s13, 0
    %p96 = por %p94, %p95
    %p97 = scmp.ne.s32.totalorder %s89, %s91
    %p98 = scmp.eq.s32.totalorder %s18, 1
    %p99 = por %p97, %p98
    %p100 = scmp.ne.s32.totalorder %s91, %s92
    %p101 = scmp.eq.s32.totalorder %s18, 0
    %p102 = por %p100, %p101
    %p103 = scmp.ne.s32.totalorder %s91, %s92
    %p104 = scmp.eq.s32.totalorder %s19, 1
    %p105 = por %p103, %p104
    %p107 = scmp.ne.s32.totalorder %s92, %s106
    %p108 = scmp.eq.s32.totalorder %s19, 0
    %p109 = por %p107, %p108
    %s111 = sadd.s32 %s110, 1
    %p114 = scmp.eq.s32.totalorder %s13, 1
    %p115 = scmp.ne.s32.totalorder %s110, %s112
    %p116 = scmp.eq.s32.totalorder %s13, 0
    %p117 = por %p115, %p116
    %p118 = scmp.ne.s32.totalorder %s110, %s112
    %p119 = scmp.eq.s32.totalorder %s18, 1
    %p120 = por %p118, %p119
    %p121 = scmp.ne.s32.totalorder %s112, %s113
    %p122 = scmp.eq.s32.totalorder %s18, 0
    %p123 = por %p121, %p122
    %p124 = scmp.ne.s32.totalorder %s112, %s113
    %p125 = scmp.eq.s32.totalorder %s19, 1
    %p126 = por %p124, %p125
    %p128 = scmp.ne.s32.totalorder %s113, %s127
    %p129 = scmp.eq.s32.totalorder %s19, 0
    %p130 = por %p128, %p129
    %s132 = sadd.s32 %s131, 1
    %p135 = scmp.eq.s32.totalorder %s13, 1
    %p136 = scmp.ne.s32.totalorder %s131, %s133
    %p137 = scmp.eq.s32.totalorder %s13, 0
    %p138 = por %p136, %p137
    %p139 = scmp.ne.s32.totalorder %s131, %s133
    %p140 = scmp.eq.s32.totalorder %s18, 1
    %p141 = por %p139, %p140
    %p142 = scmp.ne.s32.totalorder %s133, %s134
    %p143 = scmp.eq.s32.totalorder %s18, 0
    %p144 = por %p142, %p143
    %p145 = scmp.ne.s32.totalorder %s133, %s134
    %p146 = scmp.eq.s32.totalorder %s19, 1
    %p147 = por %p145, %p146
    %p149 = scmp.ne.s32.totalorder %s134, %s148
    %p150 = scmp.eq.s32.totalorder %s19, 0
    %p151 = por %p149, %p150
    %s153 = sadd.s32 %s152, 1
    %p156 = scmp.eq.s32.totalorder %s13, 1
    %p157 = scmp.ne.s32.totalorder %s152, %s154
    %p158 = scmp.eq.s32.totalorder %s13, 0
    %p159 = por %p157, %p158
    %p160 = scmp.ne.s32.totalorder %s152, %s154
    %p161 = scmp.eq.s32.totalorder %s18, 1
    %p162 = por %p160, %p161
    %p163 = scmp.ne.s32.totalorder %s154, %s155
    %p164 = scmp.eq.s32.totalorder %s18, 0
    %p165 = por %p163, %p164
    %p166 = scmp.ne.s32.totalorder %s154, %s155
    %p167 = scmp.eq.s32.totalorder %s19, 1
    %p168 = por %p166, %p167
    %p170 = scmp.ne.s32.totalorder %s155, %s169
    %p171 = scmp.eq.s32.totalorder %s19, 0
    %p172 = por %p170, %p171
    %s174 = sadd.s32 %s173, 1
    %p177 = scmp.eq.s32.totalorder %s13, 1
    %p178 = scmp.ne.s32.totalorder %s173, %s175
    %p179 = scmp.eq.s32.totalorder %s13, 0
    %p180 = por %p178, %p179
    %p181 = scmp.ne.s32.totalorder %s173, %s175
    %p182 = scmp.eq.s32.totalorder %s18, 1
    %p183 = por %p181, %p182
    %p184 = scmp.ne.s32.totalorder %s175, %s176
    %p185 = scmp.eq.s32.totalorder %s18, 0
    %p186 = por %p184, %p185
    %p187 = scmp.ne.s32.totalorder %s175, %s176
    %p188 = scmp.eq.s32.totalorder %s19, 1
    %p189 = por %p187, %p188
    %p191 = scmp.ne.s32.totalorder %s176, %s190
    %p192 = scmp.eq.s32.totalorder %s19, 0
    %p193 = por %p191, %p192
    %s194 = ssub.s32 %s20, %s32
    %s195 = ssub.s32 %s21, %s28
    %s196 = sor.u32 %s194, %s195
    %p197 = scmp.eq.s32.totalorder %s196, 0
    %s199 = sadd.s32 %s198, 1
    %s200 = scalar_select %p197, %s198, %s199
    %p203 = pneg %p197
    %p204 = scmp.eq.s32.totalorder %s13, 1
    %p205 = por %p203, %p204
    %p206 = scmp.ne.s32.totalorder %s198, %s201
    %p207 = scmp.eq.s32.totalorder %s13, 0
    %p208 = por %p206, %p207
    %p209 = scmp.ne.s32.totalorder %s198, %s201
    %p210 = scmp.eq.s32.totalorder %s18, 1
    %p211 = por %p209, %p210
    %p212 = scmp.ne.s32.totalorder %s201, %s202
    %p213 = scmp.eq.s32.totalorder %s18, 0
    %p214 = por %p212, %p213
    %p215 = scmp.ne.s32.totalorder %s201, %s202
    %p216 = scmp.eq.s32.totalorder %s19, 1
    %p217 = por %p215, %p216
    %p219 = scmp.ne.s32.totalorder %s202, %s218
    %p220 = scmp.eq.s32.totalorder %s19, 0
    %p221 = por %p219, %p220
    %p222 = scmp.le.s32.totalorder 1, %s13
    %p223 = scmp.lt.s32.totalorder %s13, 3
    %p224 = pnand %p222, %p223
    %p225 = pneg %p224
    // Predicated region
    $region9: #{dense_layer_forward.1} parent=5 // pred_check
      _
    $region10: #{dense_layer_forward.1} parent=5 // pred_check_branch
      %227 = sbr.rel (%p224) target = $region12
    $region11: #{dense_layer_forward.1} parent=5 // pred_region
      %s228 = ssub.s32 %s13, 1
      // Predicated region
      $region13: #{dense_layer_forward.1} parent=11 // pred_check
        %p229 = pneg %p102
      $region14: #{dense_layer_forward.1} parent=11 // pred_check_branch
        %231 = sbr.rel (%p229) target = $region16
      $region15: #{dense_layer_forward.1} parent=11 // pred_region
        _
      $region16: #{dense_layer_forward.1} parent=11 // pred_fallthru
        _
      // Predicated region
      $region17: #{dense_layer_forward.1} parent=11 // pred_check
        %p232 = pneg %p123
      $region18: #{dense_layer_forward.1} parent=11 // pred_check_branch
        %234 = sbr.rel (%p232) target = $region20
      $region19: #{dense_layer_forward.1} parent=11 // pred_region
        _
      $region20: #{dense_layer_forward.1} parent=11 // pred_fallthru
        _
      // Predicated region
      $region21: #{dense_layer_forward.1} parent=11 // pred_check
        %p235 = pneg %p144
      $region22: #{dense_layer_forward.1} parent=11 // pred_check_branch
        %237 = sbr.rel (%p235) target = $region24
      $region23: #{dense_layer_forward.1} parent=11 // pred_region
        _
      $region24: #{dense_layer_forward.1} parent=11 // pred_fallthru
        _
      // Predicated region
      $region25: #{dense_layer_forward.1} parent=11 // pred_check
        %p238 = pneg %p165
      $region26: #{dense_layer_forward.1} parent=11 // pred_check_branch
        %240 = sbr.rel (%p238) target = $region28
      $region27: #{dense_layer_forward.1} parent=11 // pred_region
        _
      $region28: #{dense_layer_forward.1} parent=11 // pred_fallthru
        _
      // Predicated region
      $region29: #{dense_layer_forward.1} parent=11 // pred_check
        %p241 = pneg %p186
      $region30: #{dense_layer_forward.1} parent=11 // pred_check_branch
        %243 = sbr.rel (%p241) target = $region32
      $region31: #{dense_layer_forward.1} parent=11 // pred_region
        _
      $region32: #{dense_layer_forward.1} parent=11 // pred_fallthru
        _
    $region12: #{dense_layer_forward.1} parent=5 // pred_fallthru
      _
    %p244 = scmp.lt.s32.totalorder %s13, 2
    // Predicated region
    $region33: #{dense_layer_forward.1} parent=5 // pred_check
      %p245 = pneg %p244
    $region34: #{dense_layer_forward.1} parent=5 // pred_check_branch
      %247 = sbr.rel (%p245) target = $region36
    $region35: #{dense_layer_forward.1} parent=5 // pred_region
      // Predicated region
      $region37: #{dense_layer_forward.1} parent=35 // pred_check
        %p248 = pneg %p47
      $region38: #{dense_layer_forward.1} parent=35 // pred_check_branch
        %250 = sbr.rel (%p248) target = $region40
      $region39: #{dense_layer_forward.1} parent=35 // pred_region
        %p251 = scmp.lt.s32.totalorder %s20, 1
        %s252 = scalar_select %p251, %s20, 1
        %p253 = scmp.lt.s32.totalorder %s21, 0
        %s254 = scalar_select %p253, %s21, 0
        %s255 = smul.addr %s254, 32
        %s256 = smul.addr %s252, 32
        %s257 = sadd.s32 %s255, %s256
        %s258 = smul.addr %s257, 8
        %s259 = scalar_lea.vmem %s0, %s258
      $region40: #{dense_layer_forward.1} parent=35 // pred_fallthru
        _
      // Predicated region
      $region41: #{dense_layer_forward.1} parent=35 // pred_check
        %p260 = pneg %p75
      $region42: #{dense_layer_forward.1} parent=35 // pred_check_branch
        %262 = sbr.rel (%p260) target = $region44
      $region43: #{dense_layer_forward.1} parent=35 // pred_region
        %p263 = scmp.lt.s32.totalorder %s20, 1
        %s264 = scalar_select %p263, %s20, 1
        %p265 = scmp.lt.s32.totalorder %s21, 0
        %s266 = scalar_select %p265, %s21, 0
        %s267 = smul.addr %s266, 4
        %s268 = smul.addr %s264, 4
        %s269 = sadd.s32 %s267, %s268
        %s270 = smul.addr %s269, 8
        %s271 = scalar_lea.vmem %s1, %s270
      $region44: #{dense_layer_forward.1} parent=35 // pred_fallthru
        _
    $region36: #{dense_layer_forward.1} parent=5 // pred_fallthru
      _
    %p272 = scmp.le.s32.totalorder 1, %s13
    %p273 = scmp.lt.s32.totalorder %s13, 3
    %p274 = pnand %p272, %p273
    %p275 = pneg %p274
    // Predicated region
    $region45: #{dense_layer_forward.1} parent=5 // pred_check
      _
    $region46: #{dense_layer_forward.1} parent=5 // pred_check_branch
      %277 = sbr.rel (%p274) target = $region48
    $region47: #{dense_layer_forward.1} parent=5 // pred_region
      %s278 = ssub.s32 %s13, 1
      %p279 = scmp.lt.s32.totalorder %s22, 1
      %s280 = scalar_select %p279, %s22, 1
      %p281 = scmp.lt.s32.totalorder %s23, 0
      %s282 = scalar_select %p281, %s23, 0
      %s283 = smul.addr %s282, 32
      %s284 = smul.addr %s280, 32
      %s285 = sadd.s32 %s283, %s284
      %s286 = smul.addr %s285, 8
      %s287 = scalar_lea.vmem %s0, %s286
      %p288 = pneg %p53
      %p289 = pneg %p50
      %p290 = scmp.lt.s32.totalorder %s22, 1
      %s291 = scalar_select %p290, %s22, 1
      %p292 = scmp.lt.s32.totalorder %s23, 0
      %s293 = scalar_select %p292, %s23, 0
      %s294 = smul.addr %s293, 4
      %s295 = smul.addr %s291, 4
      %s296 = sadd.s32 %s294, %s295
      %s297 = smul.addr %s296, 8
      %s298 = scalar_lea.vmem %s1, %s297
      %p299 = pneg %p81
      %p300 = pneg %p78
      %p301 = pneg %p102
      %p302 = pneg %p99
      %p303 = pneg %p123
      %p304 = pneg %p120
      %p305 = pneg %p144
      %p306 = pneg %p141
      %p307 = pneg %p165
      %p308 = pneg %p162
      %p309 = pneg %p186
      %p310 = pneg %p183
      %p311 = pneg %p214
      %p312 = pneg %p211
      %p313 = scmp.lt.s32.totalorder %s22, 1
      %s314 = scalar_select %p313, %s22, 1
      %p315 = scmp.lt.s32.totalorder %s23, 0
      %s316 = scalar_select %p315, %s23, 0
      %s317 = smul.addr %s316, 48
      %s318 = smul.addr %s314, 48
      %s319 = sadd.s32 %s317, %s318
      %s320 = smul.addr %s319, 8
      %s321 = scalar_lea.vmem %s7, %s320
      %p322 = scmp.lt.s32.totalorder %s22, 1
      %s323 = scalar_select %p322, %s22, 1
      %p324 = scmp.lt.s32.totalorder %s23, 0
      %s325 = scalar_select %p324, %s23, 0
      %s326 = smul.addr %s325, 32
      %s327 = smul.addr %s323, 32
      %s328 = sadd.s32 %s326, %s327
      %s329 = smul.addr %s328, 8
      %s330 = scalar_lea.vmem %s0, %s329
      %p331 = scmp.lt.s32.totalorder %s22, 1
      %s332 = scalar_select %p331, %s22, 1
      %p333 = scmp.lt.s32.totalorder %s23, 0
      %s334 = scalar_select %p333, %s23, 0
      %s335 = smul.addr %s334, 4
      %s336 = smul.addr %s332, 4
      %s337 = sadd.s32 %s335, %s336
      %s338 = smul.addr %s337, 8
      %s339 = scalar_lea.vmem %s1, %s338
      %p340 = scmp.lt.s32.totalorder %s22, 1
      %s341 = scalar_select %p340, %s22, 1
      %p342 = scmp.lt.s32.totalorder %s23, 0
      %s343 = scalar_select %p342, %s23, 0
      %s344 = smul.addr %s343, 48
      %s345 = smul.addr %s341, 48
      %s346 = sadd.s32 %s344, %s345
      %s347 = smul.addr %s346, 8
      %s348 = scalar_lea.vmem %s7, %s347
      %vm350 = vcmask 261120
      %351 = vst.msk [vmem:[#allocation2] sm:$0xff] %vm350, 0.0
      %352 = vst.msk [vmem:[#allocation2 + $0x8] sm:$0xff] %vm350, 0.0
      %353 = vst.msk [vmem:[#allocation2 + $0x10] sm:$0xff] %vm350, 0.0
      %354 = vst.msk [vmem:[#allocation2 + $0x1c8] sm:$0xff] %vm350, 0.0
      %355 = vst.msk [vmem:[#allocation2 + $0x1d0] sm:$0xff] %vm350, 0.0
      %356 = vst.msk [vmem:[#allocation2 + $0x1d8] sm:$0xff] %vm350, 0.0
      %357 = vst.msk [vmem:[#allocation2 + $0x28] sm:$0xff] %vm350, 0.0
      %358 = vst.msk [vmem:[#allocation2 + $0x40] sm:$0xff] %vm350, 0.0
      %359 = vst.msk [vmem:[#allocation2 + $0x58] sm:$0xff] %vm350, 0.0
      %360 = vst.msk [vmem:[#allocation2 + $0x70] sm:$0xff] %vm350, 0.0
      %361 = vst.msk [vmem:[#allocation2 + $0x88] sm:$0xff] %vm350, 0.0
      %362 = vst.msk [vmem:[#allocation2 + $0xa0] sm:$0xff] %vm350, 0.0
      %363 = vst.msk [vmem:[#allocation2 + $0xb8] sm:$0xff] %vm350, 0.0
      %364 = vst.msk [vmem:[#allocation2 + $0xd0] sm:$0xff] %vm350, 0.0
      %365 = vst.msk [vmem:[#allocation2 + $0xe8] sm:$0xff] %vm350, 0.0
      %366 = vst.msk [vmem:[#allocation2 + $0x100] sm:$0xff] %vm350, 0.0
      %367 = vst.msk [vmem:[#allocation2 + $0x118] sm:$0xff] %vm350, 0.0
      %368 = vst.msk [vmem:[#allocation2 + $0x130] sm:$0xff] %vm350, 0.0
      %369 = vst.msk [vmem:[#allocation2 + $0x148] sm:$0xff] %vm350, 0.0
      %370 = vst.msk [vmem:[#allocation2 + $0x160] sm:$0xff] %vm350, 0.0
      %371 = vst.msk [vmem:[#allocation2 + $0x178] sm:$0xff] %vm350, 0.0
      %372 = vst.msk [vmem:[#allocation2 + $0x190] sm:$0xff] %vm350, 0.0
      %373 = vst.msk [vmem:[#allocation2 + $0x1a8] sm:$0xff] %vm350, 0.0
      %374 = vst.msk [vmem:[#allocation2 + $0x1c0] sm:$0xff] %vm350, 0.0
      %v375 = vld [vmem:[%s330] sm:$0xff]
      %v376 = vld [vmem:[%s330 + $0x8] sm:$0xff]
      %v377 = vld [vmem:[%s330 + $0x10] sm:$0xff]
      %v378 = vld [vmem:[%s330 + $0x18] sm:$0xff]
      %v379 = vld [vmem:[%s330 + $0x20] sm:$0xff]
      %v380 = vld [vmem:[%s330 + $0x28] sm:$0xff]
      %v381 = vld [vmem:[%s330 + $0x30] sm:$0xff]
      %v382 = vld [vmem:[%s330 + $0x38] sm:$0xff]
      %v383 = vld [vmem:[%s330 + $0x40] sm:$0xff]
      %v384 = vld [vmem:[%s330 + $0x48] sm:$0xff]
      %v385 = vld [vmem:[%s330 + $0x50] sm:$0xff]
      %v386 = vld [vmem:[%s330 + $0x58] sm:$0xff]
      %v387 = vld [vmem:[%s330 + $0x60] sm:$0xff]
      %v388 = vld [vmem:[%s330 + $0x68] sm:$0xff]
      %v389 = vld [vmem:[%s330 + $0x70] sm:$0xff]
      %v390 = vld [vmem:[%s330 + $0x78] sm:$0xff]
      %v391 = vld [vmem:[%s330 + $0x80] sm:$0xff]
      %v392 = vld [vmem:[%s330 + $0x88] sm:$0xff]
      %v393 = vld [vmem:[%s330 + $0x90] sm:$0xff]
      %v394 = vld [vmem:[%s330 + $0x98] sm:$0xff]
      %v395 = vld [vmem:[%s330 + $0xa0] sm:$0xff]
      %v396 = vld [vmem:[%s330 + $0xa8] sm:$0xff]
      %v397 = vld [vmem:[%s330 + $0xb0] sm:$0xff]
      %v398 = vld [vmem:[%s330 + $0xb8] sm:$0xff]
      %v399 = vld [vmem:[%s330 + $0xc0] sm:$0xff]
      %v400 = vld [vmem:[%s330 + $0xc8] sm:$0xff]
      %v401 = vld [vmem:[%s330 + $0xd0] sm:$0xff]
      %v402 = vld [vmem:[%s330 + $0xd8] sm:$0xff]
      %v403 = vld [vmem:[%s330 + $0xe0] sm:$0xff]
      %v404 = vld [vmem:[%s330 + $0xe8] sm:$0xff]
      %v405 = vld [vmem:[%s330 + $0xf0] sm:$0xff]
      %v406 = vld [vmem:[%s330 + $0xf8] sm:$0xff]
      %v407 = vld [vmem:[%s2] sm:$0x1]
      %v409 = vlaneseq
      %v410 = vshrl.u32 %v409, 7
      %v411 = vsub.s32 0, %v410
      %v412 = vrot.slane %v407, %v411
      %v414 = vmul.f32 %v375, %v412
      %v415 = vmul.f32 %v376, %v412
      %v416 = vmul.f32 %v377, %v412
      %v417 = vmul.f32 %v378, %v412
      %v418 = vmul.f32 %v379, %v412
      %v419 = vmul.f32 %v380, %v412
      %v420 = vmul.f32 %v381, %v412
      %v421 = vmul.f32 %v382, %v412
      %v422 = vmul.f32 %v383, %v412
      %v423 = vmul.f32 %v384, %v412
      %v424 = vmul.f32 %v385, %v412
      %v425 = vmul.f32 %v386, %v412
      %v426 = vmul.f32 %v387, %v412
      %v427 = vmul.f32 %v388, %v412
      %v428 = vmul.f32 %v389, %v412
      %v429 = vmul.f32 %v390, %v412
      %v430 = vmul.f32 %v391, %v412
      %v431 = vmul.f32 %v392, %v412
      %v432 = vmul.f32 %v393, %v412
      %v433 = vmul.f32 %v394, %v412
      %v434 = vmul.f32 %v395, %v412
      %v435 = vmul.f32 %v396, %v412
      %v436 = vmul.f32 %v397, %v412
      %v437 = vmul.f32 %v398, %v412
      %v438 = vmul.f32 %v399, %v412
      %v439 = vmul.f32 %v400, %v412
      %v440 = vmul.f32 %v401, %v412
      %v441 = vmul.f32 %v402, %v412
      %v442 = vmul.f32 %v403, %v412
      %v443 = vmul.f32 %v404, %v412
      %v444 = vmul.f32 %v405, %v412
      %v445 = vmul.f32 %v406, %v412
      %v446 = vld [vmem:[%s3] sm:$0x1]
      %v448 = vlaneseq
      %v449 = vshrl.u32 %v448, 7
      %v450 = vsub.s32 0, %v449
      %v451 = vrot.slane %v446, %v450
      %v453 = vadd.f32 %v414, %v451
      %v454 = vadd.f32 %v415, %v451
      %v455 = vadd.f32 %v416, %v451
      %v456 = vadd.f32 %v417, %v451
      %v457 = vadd.f32 %v418, %v451
      %v458 = vadd.f32 %v419, %v451
      %v459 = vadd.f32 %v420, %v451
      %v460 = vadd.f32 %v421, %v451
      %v461 = vadd.f32 %v422, %v451
      %v462 = vadd.f32 %v423, %v451
      %v463 = vadd.f32 %v424, %v451
      %v464 = vadd.f32 %v425, %v451
      %v465 = vadd.f32 %v426, %v451
      %v466 = vadd.f32 %v427, %v451
      %v467 = vadd.f32 %v428, %v451
      %v468 = vadd.f32 %v429, %v451
      %v469 = vadd.f32 %v430, %v451
      %v470 = vadd.f32 %v431, %v451
      %v471 = vadd.f32 %v432, %v451
      %v472 = vadd.f32 %v433, %v451
      %v473 = vadd.f32 %v434, %v451
      %v474 = vadd.f32 %v435, %v451
      %v475 = vadd.f32 %v436, %v451
      %v476 = vadd.f32 %v437, %v451
      %v477 = vadd.f32 %v438, %v451
      %v478 = vadd.f32 %v439, %v451
      %v479 = vadd.f32 %v440, %v451
      %v480 = vadd.f32 %v441, %v451
      %v481 = vadd.f32 %v442, %v451
      %v482 = vadd.f32 %v443, %v451
      %v483 = vadd.f32 %v444, %v451
      %v484 = vadd.f32 %v445, %v451
      %v485 = vmax.f32 %v453, 0.0
      %v486 = vmax.f32 %v454, 0.0
      %v487 = vmax.f32 %v455, 0.0
      %v488 = vmax.f32 %v456, 0.0
      %v489 = vmax.f32 %v457, 0.0
      %v490 = vmax.f32 %v458, 0.0
      %v491 = vmax.f32 %v459, 0.0
      %v492 = vmax.f32 %v460, 0.0
      %v493 = vmax.f32 %v461, 0.0
      %v494 = vmax.f32 %v462, 0.0
      %v495 = vmax.f32 %v463, 0.0
      %v496 = vmax.f32 %v464, 0.0
      %v497 = vmax.f32 %v465, 0.0
      %v498 = vmax.f32 %v466, 0.0
      %v499 = vmax.f32 %v467, 0.0
      %v500 = vmax.f32 %v468, 0.0
      %v501 = vmax.f32 %v469, 0.0
      %v502 = vmax.f32 %v470, 0.0
      %v503 = vmax.f32 %v471, 0.0
      %v504 = vmax.f32 %v472, 0.0
      %v505 = vmax.f32 %v473, 0.0
      %v506 = vmax.f32 %v474, 0.0
      %v507 = vmax.f32 %v475, 0.0
      %v508 = vmax.f32 %v476, 0.0
      %v509 = vmax.f32 %v477, 0.0
      %v510 = vmax.f32 %v478, 0.0
      %v511 = vmax.f32 %v479, 0.0
      %v512 = vmax.f32 %v480, 0.0
      %v513 = vmax.f32 %v481, 0.0
      %v514 = vmax.f32 %v482, 0.0
      %v515 = vmax.f32 %v483, 0.0
      %v516 = vmax.f32 %v484, 0.0
      %v517 = vpack.c.bf16 %v486, %v485
      %v518 = vpack.c.bf16 %v488, %v487
      %v519 = vpack.c.bf16 %v490, %v489
      %v520 = vpack.c.bf16 %v492, %v491
      %v521 = vpack.c.bf16 %v494, %v493
      %v522 = vpack.c.bf16 %v496, %v495
      %v523 = vpack.c.bf16 %v498, %v497
      %v524 = vpack.c.bf16 %v500, %v499
      %v525 = vpack.c.bf16 %v502, %v501
      %v526 = vpack.c.bf16 %v504, %v503
      %v527 = vpack.c.bf16 %v506, %v505
      %v528 = vpack.c.bf16 %v508, %v507
      %v529 = vpack.c.bf16 %v510, %v509
      %v530 = vpack.c.bf16 %v512, %v511
      %v531 = vpack.c.bf16 %v514, %v513
      %v532 = vpack.c.bf16 %v516, %v515
      %v533 = vld [vmem:[%s4] sm:$0xf]
      %v534 = vld [vmem:[%s5] sm:$0x1]
      %v536 = vlaneseq
      %v537 = vshrl.u32 %v536, 7
      %v538 = vsub.s32 0, %v537
      %v539 = vrot.slane %v534, %v538
      %vm541 = vcmask 64512
      %v543 = vsel %vm541, %v517, 0
      %v546 = vsel %vm541, %v518, 0
      %v549 = vsel %vm541, %v519, 0
      %v552 = vsel %vm541, %v520, 0
      %v555 = vsel %vm541, %v521, 0
      %v558 = vsel %vm541, %v522, 0
      %v561 = vsel %vm541, %v523, 0
      %v564 = vsel %vm541, %v524, 0
      %v567 = vsel %vm541, %v525, 0
      %v570 = vsel %vm541, %v526, 0
      %v573 = vsel %vm541, %v527, 0
      %v576 = vsel %vm541, %v528, 0
      %v579 = vsel %vm541, %v529, 0
      %v582 = vsel %vm541, %v530, 0
      %v585 = vsel %vm541, %v531, 0
      %v588 = vsel %vm541, %v532, 0
      %vm590 = vcmask 1043456
      %v592 = vsel %vm590, %v533, 0
      %594 = vmatprep.subr.bf16.mxu0 0
      %595 = vmatpush1.bf16.msra.mxu0 %v592
      %596 = vmatprep.subr.bf16.mxu0 0
      %597 = vmatpush1.bf16.msra.mxu0 0
      %598 = vmatprep.subr.bf16.mxu0 0
      %599 = vmatpush1.bf16.msra.mxu0 0
      %600 = vmatprep.subr.bf16.mxu0 0
      %601 = vmatpush1.bf16.msra.mxu0 0
      %602 = vmatprep.subr.bf16.mxu0 0
      %603 = vmatpush1.bf16.msra.mxu0 0
      %604 = vmatprep.subr.bf16.mxu0 0
      %605 = vmatpush1.bf16.msra.mxu0 0
      %606 = vmatprep.subr.bf16.mxu0 0
      %607 = vmatpush1.bf16.msra.mxu0 0
      %608 = vmatprep.subr.bf16.mxu0 0
      %609 = vmatpush1.bf16.msra.mxu0 0
      %610 = vmatprep.subr.bf16.mxu0 0
      %611 = vmatpush1.bf16.msra.mxu0 0
      %612 = vmatprep.subr.bf16.mxu0 0
      %613 = vmatpush1.bf16.msra.mxu0 0
      %614 = vmatprep.subr.bf16.mxu0 0
      %615 = vmatpush1.bf16.msra.mxu0 0
      %616 = vmatprep.subr.bf16.mxu0 0
      %617 = vmatpush1.bf16.msra.mxu0 0
      %618 = vmatprep.subr.bf16.mxu0 0
      %619 = vmatpush1.bf16.msra.mxu0 0
      %620 = vmatprep.subr.bf16.mxu0 0
      %621 = vmatpush1.bf16.msra.mxu0 0
      %622 = vmatprep.subr.bf16.mxu0 0
      %623 = vmatpush1.bf16.msra.mxu0 0
      %624 = vmatprep.subr.bf16.mxu0 0
      %625 = vmatpush1.bf16.msra.mxu0 0
      %626 = vmatprep.mubr.bf16.mxu0 0
      %627 = vmatmul.mubr.bf16.gmra.mrb[0].mxu0 %v543
      %v628 = vpop.f32.mrb[0].mxu0
      %v629 = vadd.f32 %v539, %v628
      %v630 = vpop.f32.mrb[0].mxu0
      %v631 = vpop.f32.mrb[0].mxu0
      %v632 = vadd.f32 %v539, %v631
      %v633 = vpop.f32.mrb[0].mxu0
      %634 = vmatprep.mubr.bf16.mxu0 0
      %635 = vmatmul.mubr.bf16.gmra.mrb[0].mxu0 %v546
      %v636 = vpop.f32.mrb[0].mxu0
      %v637 = vadd.f32 %v539, %v636
      %v638 = vpop.f32.mrb[0].mxu0
      %v639 = vpop.f32.mrb[0].mxu0
      %v640 = vadd.f32 %v539, %v639
      %v641 = vpop.f32.mrb[0].mxu0
      %642 = vmatprep.mubr.bf16.mxu0 0
      %643 = vmatmul.mubr.bf16.gmra.mrb[0].mxu0 %v549
      %v644 = vpop.f32.mrb[0].mxu0
      %v645 = vadd.f32 %v539, %v644
      %v646 = vpop.f32.mrb[0].mxu0
      %v647 = vpop.f32.mrb[0].mxu0
      %v648 = vadd.f32 %v539, %v647
      %v649 = vpop.f32.mrb[0].mxu0
      %650 = vmatprep.mubr.bf16.mxu0 0
      %651 = vmatmul.mubr.bf16.gmra.mrb[0].mxu0 %v552
      %v652 = vpop.f32.mrb[0].mxu0
      %v653 = vadd.f32 %v539, %v652
      %v654 = vpop.f32.mrb[0].mxu0
      %v655 = vpop.f32.mrb[0].mxu0
      %v656 = vadd.f32 %v539, %v655
      %v657 = vpop.f32.mrb[0].mxu0
      %658 = vmatprep.mubr.bf16.mxu0 0
      %659 = vmatmul.mubr.bf16.gmra.mrb[0].mxu0 %v555
      %v660 = vpop.f32.mrb[0].mxu0
      %v661 = vadd.f32 %v539, %v660
      %v662 = vpop.f32.mrb[0].mxu0
      %v663 = vpop.f32.mrb[0].mxu0
      %v664 = vadd.f32 %v539, %v663
      %v665 = vpop.f32.mrb[0].mxu0
      %666 = vmatprep.mubr.bf16.mxu0 0
      %667 = vmatmul.mubr.bf16.gmra.mrb[0].mxu0 %v558
      %v668 = vpop.f32.mrb[0].mxu0
      %v669 = vadd.f32 %v539, %v668
      %v670 = vpop.f32.mrb[0].mxu0
      %v671 = vpop.f32.mrb[0].mxu0
      %v672 = vadd.f32 %v539, %v671
      %v673 = vpop.f32.mrb[0].mxu0
      %674 = vmatprep.mubr.bf16.mxu0 0
      %675 = vmatmul.mubr.bf16.gmra.mrb[0].mxu0 %v561
      %v676 = vpop.f32.mrb[0].mxu0
      %v677 = vadd.f32 %v539, %v676
      %v678 = vpop.f32.mrb[0].mxu0
      %v679 = vpop.f32.mrb[0].mxu0
      %v680 = vadd.f32 %v539, %v679
      %v681 = vpop.f32.mrb[0].mxu0
      %682 = vmatprep.mubr.bf16.mxu0 0
      %683 = vmatmul.mubr.bf16.gmra.mrb[0].mxu0 %v564
      %v684 = vpop.f32.mrb[0].mxu0
      %v685 = vadd.f32 %v539, %v684
      %v686 = vpop.f32.mrb[0].mxu0
      %v687 = vpop.f32.mrb[0].mxu0
      %v688 = vadd.f32 %v539, %v687
      %v689 = vpop.f32.mrb[0].mxu0
      %690 = vmatprep.mubr.bf16.mxu0 0
      %691 = vmatmul.mubr.bf16.gmra.mrb[0].mxu0 %v567
      %v692 = vpop.f32.mrb[0].mxu0
      %v693 = vadd.f32 %v539, %v692
      %v694 = vpop.f32.mrb[0].mxu0
      %v695 = vpop.f32.mrb[0].mxu0
      %v696 = vadd.f32 %v539, %v695
      %v697 = vpop.f32.mrb[0].mxu0
      %698 = vmatprep.mubr.bf16.mxu0 0
      %699 = vmatmul.mubr.bf16.gmra.mrb[0].mxu0 %v570
      %v700 = vpop.f32.mrb[0].mxu0
      %v701 = vadd.f32 %v539, %v700
      %v702 = vpop.f32.mrb[0].mxu0
      %v703 = vpop.f32.mrb[0].mxu0
      %v704 = vadd.f32 %v539, %v703
      %v705 = vpop.f32.mrb[0].mxu0
      %706 = vmatprep.mubr.bf16.mxu0 0
      %707 = vmatmul.mubr.bf16.gmra.mrb[0].mxu0 %v573
      %v708 = vpop.f32.mrb[0].mxu0
      %v709 = vadd.f32 %v539, %v708
      %v710 = vpop.f32.mrb[0].mxu0
      %v711 = vpop.f32.mrb[0].mxu0
      %v712 = vadd.f32 %v539, %v711
      %v713 = vpop.f32.mrb[0].mxu0
      %714 = vmatprep.mubr.bf16.mxu0 0
      %715 = vmatmul.mubr.bf16.gmra.mrb[0].mxu0 %v576
      %v716 = vpop.f32.mrb[0].mxu0
      %v717 = vadd.f32 %v539, %v716
      %v718 = vpop.f32.mrb[0].mxu0
      %v719 = vpop.f32.mrb[0].mxu0
      %v720 = vadd.f32 %v539, %v719
      %v721 = vpop.f32.mrb[0].mxu0
      %722 = vmatprep.mubr.bf16.mxu0 0
      %723 = vmatmul.mubr.bf16.gmra.mrb[0].mxu0 %v579
      %v724 = vpop.f32.mrb[0].mxu0
      %v725 = vadd.f32 %v539, %v724
      %v726 = vpop.f32.mrb[0].mxu0
      %v727 = vpop.f32.mrb[0].mxu0
      %v728 = vadd.f32 %v539, %v727
      %v729 = vpop.f32.mrb[0].mxu0
      %730 = vmatprep.mubr.bf16.mxu0 0
      %731 = vmatmul.mubr.bf16.gmra.mrb[0].mxu0 %v582
      %v732 = vpop.f32.mrb[0].mxu0
      %v733 = vadd.f32 %v539, %v732
      %v734 = vpop.f32.mrb[0].mxu0
      %v735 = vpop.f32.mrb[0].mxu0
      %v736 = vadd.f32 %v539, %v735
      %v737 = vpop.f32.mrb[0].mxu0
      %738 = vmatprep.mubr.bf16.mxu0 0
      %739 = vmatmul.mubr.bf16.gmra.mrb[0].mxu0 %v585
      %v740 = vpop.f32.mrb[0].mxu0
      %v741 = vadd.f32 %v539, %v740
      %v742 = vpop.f32.mrb[0].mxu0
      %v743 = vpop.f32.mrb[0].mxu0
      %v744 = vadd.f32 %v539, %v743
      %v745 = vpop.f32.mrb[0].mxu0
      %746 = vmatprep.mubr.bf16.mxu0 0
      %747 = vmatmul.mubr.bf16.gmra.mrb[0].mxu0 %v588
      %v748 = vpop.f32.mrb[0].mxu0
      %v749 = vadd.f32 %v539, %v748
      %v750 = vpop.f32.mrb[0].mxu0
      %v751 = vpop.f32.mrb[0].mxu0
      %v752 = vadd.f32 %v539, %v751
      %v753 = vpop.f32.mrb[0].mxu0
      %754 = vdwg.mxu0
      %v755 = vmax.f32 %v629, 0.0
      %v756 = vmax.f32 %v632, 0.0
      %v757 = vmax.f32 %v637, 0.0
      %v758 = vmax.f32 %v640, 0.0
      %v759 = vmax.f32 %v645, 0.0
      %v760 = vmax.f32 %v648, 0.0
      %v761 = vmax.f32 %v653, 0.0
      %v762 = vmax.f32 %v656, 0.0
      %v763 = vmax.f32 %v661, 0.0
      %v764 = vmax.f32 %v664, 0.0
      %v765 = vmax.f32 %v669, 0.0
      %v766 = vmax.f32 %v672, 0.0
      %v767 = vmax.f32 %v677, 0.0
      %v768 = vmax.f32 %v680, 0.0
      %v769 = vmax.f32 %v685, 0.0
      %v770 = vmax.f32 %v688, 0.0
      %v771 = vmax.f32 %v693, 0.0
      %v772 = vmax.f32 %v696, 0.0
      %v773 = vmax.f32 %v701, 0.0
      %v774 = vmax.f32 %v704, 0.0
      %v775 = vmax.f32 %v709, 0.0
      %v776 = vmax.f32 %v712, 0.0
      %v777 = vmax.f32 %v717, 0.0
      %v778 = vmax.f32 %v720, 0.0
      %v779 = vmax.f32 %v725, 0.0
      %v780 = vmax.f32 %v728, 0.0
      %v781 = vmax.f32 %v733, 0.0
      %v782 = vmax.f32 %v736, 0.0
      %v783 = vmax.f32 %v741, 0.0
      %v784 = vmax.f32 %v744, 0.0
      %v785 = vmax.f32 %v749, 0.0
      %v786 = vmax.f32 %v752, 0.0
      %787 = vst.msk [vmem:[#allocation2 + $0x30] sm:$0xff] %vm350, %v755
      %788 = vst.msk [vmem:[#allocation2 + $0x38] sm:$0xff] %vm350, %v756
      %789 = vst.msk [vmem:[#allocation2 + $0x48] sm:$0xff] %vm350, %v757
      %790 = vst.msk [vmem:[#allocation2 + $0x50] sm:$0xff] %vm350, %v758
      %791 = vst.msk [vmem:[#allocation2 + $0x60] sm:$0xff] %vm350, %v759
      %792 = vst.msk [vmem:[#allocation2 + $0x68] sm:$0xff] %vm350, %v760
      %793 = vst.msk [vmem:[#allocation2 + $0x78] sm:$0xff] %vm350, %v761
      %794 = vst.msk [vmem:[#allocation2 + $0x80] sm:$0xff] %vm350, %v762
      %795 = vst.msk [vmem:[#allocation2 + $0x90] sm:$0xff] %vm350, %v763
      %796 = vst.msk [vmem:[#allocation2 + $0x98] sm:$0xff] %vm350, %v764
      %797 = vst.msk [vmem:[#allocation2 + $0xa8] sm:$0xff] %vm350, %v765
      %798 = vst.msk [vmem:[#allocation2 + $0xb0] sm:$0xff] %vm350, %v766
      %799 = vst.msk [vmem:[#allocation2 + $0xc0] sm:$0xff] %vm350, %v767
      %800 = vst.msk [vmem:[#allocation2 + $0xc8] sm:$0xff] %vm350, %v768
      %801 = vst.msk [vmem:[#allocation2 + $0xd8] sm:$0xff] %vm350, %v769
      %802 = vst.msk [vmem:[#allocation2 + $0xe0] sm:$0xff] %vm350, %v770
      %803 = vst.msk [vmem:[#allocation2 + $0xf0] sm:$0xff] %vm350, %v771
      %804 = vst.msk [vmem:[#allocation2 + $0xf8] sm:$0xff] %vm350, %v772
      %805 = vst.msk [vmem:[#allocation2 + $0x108] sm:$0xff] %vm350, %v773
      %806 = vst.msk [vmem:[#allocation2 + $0x110] sm:$0xff] %vm350, %v774
      %807 = vst.msk [vmem:[#allocation2 + $0x120] sm:$0xff] %vm350, %v775
      %808 = vst.msk [vmem:[#allocation2 + $0x128] sm:$0xff] %vm350, %v776
      %809 = vst.msk [vmem:[#allocation2 + $0x138] sm:$0xff] %vm350, %v777
      %810 = vst.msk [vmem:[#allocation2 + $0x140] sm:$0xff] %vm350, %v778
      %811 = vst.msk [vmem:[#allocation2 + $0x150] sm:$0xff] %vm350, %v779
      %812 = vst.msk [vmem:[#allocation2 + $0x158] sm:$0xff] %vm350, %v780
      %813 = vst.msk [vmem:[#allocation2 + $0x168] sm:$0xff] %vm350, %v781
      %814 = vst.msk [vmem:[#allocation2 + $0x170] sm:$0xff] %vm350, %v782
      %815 = vst.msk [vmem:[#allocation2 + $0x180] sm:$0xff] %vm350, %v783
      %816 = vst.msk [vmem:[#allocation2 + $0x188] sm:$0xff] %vm350, %v784
      %817 = vst.msk [vmem:[#allocation2 + $0x198] sm:$0xff] %vm350, %v785
      %818 = vst.msk [vmem:[#allocation2 + $0x1a0] sm:$0xff] %vm350, %v786
      %v819 = vld [vmem:[%s339] sm:$0xff]
      %v820 = vld [vmem:[%s339 + $0x8] sm:$0xff]
      %v821 = vld [vmem:[%s339 + $0x10] sm:$0xff]
      %v822 = vld [vmem:[%s339 + $0x18] sm:$0xff]
      %v823 = vld [vmem:[%s2] sm:$0x1]
      %v825 = vlaneseq
      %v826 = vshrl.u32 %v825, 7
      %v827 = vsub.s32 0, %v826
      %v828 = vrot.slane %v823, %v827
      %v830 = vmul.f32 %v819, %v828
      %v831 = vmul.f32 %v820, %v828
      %v832 = vmul.f32 %v821, %v828
      %v833 = vmul.f32 %v822, %v828
      %v834 = vld [vmem:[%s3] sm:$0x1]
      %v836 = vlaneseq
      %v837 = vshrl.u32 %v836, 7
      %v838 = vsub.s32 0, %v837
      %v839 = vrot.slane %v834, %v838
      %v841 = vadd.f32 %v830, %v839
      %v842 = vadd.f32 %v831, %v839
      %v843 = vadd.f32 %v832, %v839
      %v844 = vadd.f32 %v833, %v839
      %v845 = vmax.f32 %v841, 0.0
      %v846 = vmax.f32 %v842, 0.0
      %v847 = vmax.f32 %v843, 0.0
      %v848 = vmax.f32 %v844, 0.0
      %v849 = vpack.c.bf16 %v846, %v845
      %v850 = vpack.c.bf16 %v848, %v847
      %v851 = vld [vmem:[%s4] sm:$0xf]
      %v852 = vld [vmem:[%s5] sm:$0x1]
      %v854 = vlaneseq
      %v855 = vshrl.u32 %v854, 7
      %v856 = vsub.s32 0, %v855
      %v857 = vrot.slane %v852, %v856
      %v860 = vsel %vm541, %v849, 0
      %v863 = vsel %vm541, %v850, 0
      %v866 = vsel %vm590, %v851, 0
      %868 = vmatprep.subr.bf16.mxu0 0
      %869 = vmatpush1.bf16.msra.mxu0 %v866
      %870 = vmatprep.subr.bf16.mxu0 0
      %871 = vmatpush1.bf16.msra.mxu0 0
      %872 = vmatprep.subr.bf16.mxu0 0
      %873 = vmatpush1.bf16.msra.mxu0 0
      %874 = vmatprep.subr.bf16.mxu0 0
      %875 = vmatpush1.bf16.msra.mxu0 0
      %876 = vmatprep.subr.bf16.mxu0 0
      %877 = vmatpush1.bf16.msra.mxu0 0
      %878 = vmatprep.subr.bf16.mxu0 0
      %879 = vmatpush1.bf16.msra.mxu0 0
      %880 = vmatprep.subr.bf16.mxu0 0
      %881 = vmatpush1.bf16.msra.mxu0 0
      %882 = vmatprep.subr.bf16.mxu0 0
      %883 = vmatpush1.bf16.msra.mxu0 0
      %884 = vmatprep.subr.bf16.mxu0 0
      %885 = vmatpush1.bf16.msra.mxu0 0
      %886 = vmatprep.subr.bf16.mxu0 0
      %887 = vmatpush1.bf16.msra.mxu0 0
      %888 = vmatprep.subr.bf16.mxu0 0
      %889 = vmatpush1.bf16.msra.mxu0 0
      %890 = vmatprep.subr.bf16.mxu0 0
      %891 = vmatpush1.bf16.msra.mxu0 0
      %892 = vmatprep.subr.bf16.mxu0 0
      %893 = vmatpush1.bf16.msra.mxu0 0
      %894 = vmatprep.subr.bf16.mxu0 0
      %895 = vmatpush1.bf16.msra.mxu0 0
      %896 = vmatprep.subr.bf16.mxu0 0
      %897 = vmatpush1.bf16.msra.mxu0 0
      %898 = vmatprep.subr.bf16.mxu0 0
      %899 = vmatpush1.bf16.msra.mxu0 0
      %900 = vmatprep.mubr.bf16.mxu0 0
      %901 = vmatmul.mubr.bf16.gmra.mrb[0].mxu0 %v860
      %v902 = vpop.f32.mrb[0].mxu0
      %v903 = vadd.f32 %v857, %v902
      %v904 = vpop.f32.mrb[0].mxu0
      %v905 = vpop.f32.mrb[0].mxu0
      %v906 = vadd.f32 %v857, %v905
      %v907 = vpop.f32.mrb[0].mxu0
      %908 = vmatprep.mubr.bf16.mxu0 0
      %909 = vmatmul.mubr.bf16.gmra.mrb[0].mxu0 %v863
      %v910 = vpop.f32.mrb[0].mxu0
      %v911 = vadd.f32 %v857, %v910
      %v912 = vpop.f32.mrb[0].mxu0
      %v913 = vpop.f32.mrb[0].mxu0
      %v914 = vadd.f32 %v857, %v913
      %v915 = vpop.f32.mrb[0].mxu0
      %916 = vdwg.mxu0
      %v917 = vmax.f32 %v903, 0.0
      %v918 = vmax.f32 %v906, 0.0
      %v919 = vmax.f32 %v911, 0.0
      %v920 = vmax.f32 %v914, 0.0
      %p921 = scmp.gt.s32.totalorder %s23, 0
      %s922 = scalar_select %p921, 1, 0
      %s923 = scvt.s32.f32 %s922
      %p924 = scmp.lt.s32.totalorder %s23, 0
      %s925 = scalar_select %p924, 1, 0
      %s926 = scvt.s32.f32 %s925
      %v927 = vstv %s923
      %v928 = vmul.f32 %v917, %v927
      %v929 = vmul.f32 %v918, %v927
      %930 = vst.msk [vmem:[#allocation2 + $0x18] sm:$0xff] %vm350, %v928
      %931 = vst.msk [vmem:[#allocation2 + $0x20] sm:$0xff] %vm350, %v929
      %v932 = vstv %s926
      %v933 = vmul.f32 %v919, %v932
      %v934 = vmul.f32 %v920, %v932
      %935 = vst.msk [vmem:[#allocation2 + $0x1b0] sm:$0xff] %vm350, %v933
      %936 = vst.msk [vmem:[#allocation2 + $0x1b8] sm:$0xff] %vm350, %v934
      %v937 = vld [vmem:[#allocation2] sm:$0xff]
      %v938 = vld [vmem:[#allocation2 + $0x8] sm:$0xff]
      %v939 = vld [vmem:[#allocation2 + $0x10] sm:$0xff]
      %v940 = vld [vmem:[#allocation2 + $0x18] sm:$0xff]
      %v941 = vld [vmem:[#allocation2 + $0x20] sm:$0xff]
      %v942 = vld [vmem:[#allocation2 + $0x28] sm:$0xff]
      %v943 = vld [vmem:[#allocation2 + $0x30] sm:$0xff]
      %v944 = vld [vmem:[#allocation2 + $0x38] sm:$0xff]
      %v945 = vld [vmem:[#allocation2 + $0x40] sm:$0xff]
      %v946 = vld [vmem:[#allocation2 + $0x48] sm:$0xff]
      %v947 = vld [vmem:[#allocation2 + $0x50] sm:$0xff]
      %v948 = vld [vmem:[#allocation2 + $0x58] sm:$0xff]
      %v949 = vld [vmem:[#allocation2 + $0x60] sm:$0xff]
      %v950 = vld [vmem:[#allocation2 + $0x68] sm:$0xff]
      %v951 = vld [vmem:[#allocation2 + $0x70] sm:$0xff]
      %v952 = vld [vmem:[#allocation2 + $0x78] sm:$0xff]
      %v953 = vld [vmem:[#allocation2 + $0x80] sm:$0xff]
      %v954 = vld [vmem:[#allocation2 + $0x88] sm:$0xff]
      %v955 = vld [vmem:[#allocation2 + $0x90] sm:$0xff]
      %v956 = vld [vmem:[#allocation2 + $0x98] sm:$0xff]
      %v957 = vld [vmem:[#allocation2 + $0xa0] sm:$0xff]
      %v958 = vld [vmem:[#allocation2 + $0xa8] sm:$0xff]
      %v959 = vld [vmem:[#allocation2 + $0xb0] sm:$0xff]
      %v960 = vld [vmem:[#allocation2 + $0xb8] sm:$0xff]
      %v961 = vld [vmem:[#allocation2 + $0xc0] sm:$0xff]
      %v962 = vld [vmem:[#allocation2 + $0xc8] sm:$0xff]
      %v963 = vld [vmem:[#allocation2 + $0xd0] sm:$0xff]
      %v964 = vld [vmem:[#allocation2 + $0xd8] sm:$0xff]
      %v965 = vld [vmem:[#allocation2 + $0xe0] sm:$0xff]
      %v966 = vld [vmem:[#allocation2 + $0xe8] sm:$0xff]
      %v967 = vld [vmem:[#allocation2 + $0xf0] sm:$0xff]
      %v968 = vld [vmem:[#allocation2 + $0xf8] sm:$0xff]
      %v969 = vld [vmem:[#allocation2 + $0x100] sm:$0xff]
      %v970 = vld [vmem:[#allocation2 + $0x108] sm:$0xff]
      %v971 = vld [vmem:[#allocation2 + $0x110] sm:$0xff]
      %v972 = vld [vmem:[#allocation2 + $0x118] sm:$0xff]
      %v973 = vld [vmem:[#allocation2 + $0x120] sm:$0xff]
      %v974 = vld [vmem:[#allocation2 + $0x128] sm:$0xff]
      %v975 = vld [vmem:[#allocation2 + $0x130] sm:$0xff]
      %v976 = vld [vmem:[#allocation2 + $0x138] sm:$0xff]
      %v977 = vld [vmem:[#allocation2 + $0x140] sm:$0xff]
      %v978 = vld [vmem:[#allocation2 + $0x148] sm:$0xff]
      %v979 = vld [vmem:[#allocation2 + $0x150] sm:$0xff]
      %v980 = vld [vmem:[#allocation2 + $0x158] sm:$0xff]
      %v981 = vld [vmem:[#allocation2 + $0x160] sm:$0xff]
      %v982 = vld [vmem:[#allocation2 + $0x168] sm:$0xff]
      %v983 = vld [vmem:[#allocation2 + $0x170] sm:$0xff]
      %v984 = vld [vmem:[#allocation2 + $0x178] sm:$0xff]
      %v985 = vld [vmem:[#allocation2 + $0x180] sm:$0xff]
      %v986 = vld [vmem:[#allocation2 + $0x188] sm:$0xff]
      %v987 = vld [vmem:[#allocation2 + $0x190] sm:$0xff]
      %v988 = vld [vmem:[#allocation2 + $0x198] sm:$0xff]
      %v989 = vld [vmem:[#allocation2 + $0x1a0] sm:$0xff]
      %v990 = vld [vmem:[#allocation2 + $0x1a8] sm:$0xff]
      %v991 = vld [vmem:[#allocation2 + $0x1b0] sm:$0xff]
      %v992 = vld [vmem:[#allocation2 + $0x1b8] sm:$0xff]
      %v993 = vld [vmem:[#allocation2 + $0x1c0] sm:$0xff]
      %v994 = vld [vmem:[#allocation2 + $0x1c8] sm:$0xff]
      %v995 = vld [vmem:[#allocation2 + $0x1d0] sm:$0xff]
      %v996 = vld [vmem:[#allocation2 + $0x1d8] sm:$0xff]
      %v997 = vpack.c.bf16 %v938, %v937
      %v998 = vpack.c.bf16 %v940, %v939
      %v999 = vpack.c.bf16 %v942, %v941
      %v1000 = vpack.c.bf16 %v944, %v943
      %v1001 = vpack.c.bf16 %v946, %v945
      %v1002 = vpack.c.bf16 %v948, %v947
      %v1003 = vpack.c.bf16 %v950, %v949
      %v1004 = vpack.c.bf16 %v952, %v951
      %v1005 = vpack.c.bf16 %v954, %v953
      %v1006 = vpack.c.bf16 %v956, %v955
      %v1007 = vpack.c.bf16 %v958, %v957
      %v1008 = vpack.c.bf16 %v960, %v959
      %v1009 = vpack.c.bf16 %v962, %v961
      %v1010 = vpack.c.bf16 %v964, %v963
      %v1011 = vpack.c.bf16 %v966, %v965
      %v1012 = vpack.c.bf16 %v968, %v967
      %v1013 = vpack.c.bf16 %v970, %v969
      %v1014 = vpack.c.bf16 %v972, %v971
      %v1015 = vpack.c.bf16 %v974, %v973
      %v1016 = vpack.c.bf16 %v976, %v975
      %v1017 = vpack.c.bf16 %v978, %v977
      %v1018 = vpack.c.bf16 %v980, %v979
      %v1019 = vpack.c.bf16 %v982, %v981
      %v1020 = vpack.c.bf16 %v984, %v983
      %v1021 = vpack.c.bf16 %v986, %v985
      %v1022 = vpack.c.bf16 %v988, %v987
      %v1023 = vpack.c.bf16 %v990, %v989
      %v1024 = vpack.c.bf16 %v992, %v991
      %v1025 = vpack.c.bf16 %v994, %v993
      %v1026 = vpack.c.bf16 %v996, %v995
      %v1027 = vld [vmem:[%s6] sm:$0xf]
      %v1028 = vld [vmem:[%s6 + $0x4] sm:$0xf]
      %v1029 = vld [vmem:[%s6 + $0x8] sm:$0xf]
      %v1030 = vld [vmem:[%s6 + $0xc] sm:$0xf]
      %v1035 = vunpack.c.l.b16 %v1027
      %v1036 = vunpack.c.l.b16 %v1028
      %v1037 = vunpack.c.l.b16 %v1029
      %v1038 = vunpack.c.l.b16 %v1030
      %v1039 = vpack.c.b16 %v1036, %v1035
      %v1040 = vpack.c.b16 %v1038, %v1037
      %v1044 = vsel %vm350, %v997, 0
      %v1047 = vsel %vm350, %v998, 0
      %v1050 = vsel %vm350, %v999, 0
      %v1053 = vsel %vm350, %v1000, 0
      %v1056 = vsel %vm350, %v1001, 0
      %v1059 = vsel %vm350, %v1002, 0
      %v1062 = vsel %vm350, %v1003, 0
      %v1065 = vsel %vm350, %v1004, 0
      %v1068 = vsel %vm350, %v1005, 0
      %v1071 = vsel %vm350, %v1006, 0
      %v1074 = vsel %vm350, %v1007, 0
      %v1077 = vsel %vm350, %v1008, 0
      %v1080 = vsel %vm350, %v1009, 0
      %v1083 = vsel %vm350, %v1010, 0
      %v1086 = vsel %vm350, %v1011, 0
      %v1089 = vsel %vm350, %v1012, 0
      %v1092 = vsel %vm350, %v1013, 0
      %v1095 = vsel %vm350, %v1014, 0
      %v1098 = vsel %vm350, %v1015, 0
      %v1101 = vsel %vm350, %v1016, 0
      %v1104 = vsel %vm350, %v1017, 0
      %v1107 = vsel %vm350, %v1018, 0
      %v1110 = vsel %vm350, %v1019, 0
      %v1113 = vsel %vm350, %v1020, 0
      %v1116 = vsel %vm350, %v1021, 0
      %v1119 = vsel %vm350, %v1022, 0
      %v1122 = vsel %vm350, %v1023, 0
      %v1125 = vsel %vm350, %v1024, 0
      %v1128 = vsel %vm350, %v1025, 0
      %v1131 = vsel %vm350, %v1026, 0
      %1133 = vmatprep.subr.bf16.mxu0 0
      %1134 = vmatpush1.bf16.msra.mxu0 %v1039
      %1135 = vmatprep.subr.bf16.mxu0 0
      %1136 = vmatpush1.bf16.msra.mxu0 %v1040
      %1137 = vmatprep.subr.bf16.mxu0 0
      %1138 = vmatpush1.bf16.msra.mxu0 0
      %1139 = vmatprep.subr.bf16.mxu0 0
      %1140 = vmatpush1.bf16.msra.mxu0 0
      %1141 = vmatprep.subr.bf16.mxu0 0
      %1142 = vmatpush1.bf16.msra.mxu0 0
      %1143 = vmatprep.subr.bf16.mxu0 0
      %1144 = vmatpush1.bf16.msra.mxu0 0
      %1145 = vmatprep.subr.bf16.mxu0 0
      %1146 = vmatpush1.bf16.msra.mxu0 0
      %1147 = vmatprep.subr.bf16.mxu0 0
      %1148 = vmatpush1.bf16.msra.mxu0 0
      %1149 = vmatprep.subr.bf16.mxu0 0
      %1150 = vmatpush1.bf16.msra.mxu0 0
      %1151 = vmatprep.subr.bf16.mxu0 0
      %1152 = vmatpush1.bf16.msra.mxu0 0
      %1153 = vmatprep.subr.bf16.mxu0 0
      %1154 = vmatpush1.bf16.msra.mxu0 0
      %1155 = vmatprep.subr.bf16.mxu0 0
      %1156 = vmatpush1.bf16.msra.mxu0 0
      %1157 = vmatprep.subr.bf16.mxu0 0
      %1158 = vmatpush1.bf16.msra.mxu0 0
      %1159 = vmatprep.subr.bf16.mxu0 0
      %1160 = vmatpush1.bf16.msra.mxu0 0
      %1161 = vmatprep.subr.bf16.mxu0 0
      %1162 = vmatpush1.bf16.msra.mxu0 0
      %1163 = vmatprep.subr.bf16.mxu0 0
      %1164 = vmatpush1.bf16.msra.mxu0 0
      %1165 = vmatprep.mubr.bf16.mxu0 0
      %1166 = vmatmul.mubr.bf16.gmra.mrb[0].mxu0 %v1044
      %v1167 = vpop.f32.mrb[0].mxu0
      %v1168 = vadd.f32 0.0, %v1167
      %v1169 = vpop.f32.mrb[0].mxu0
      %v1170 = vpop.f32.mrb[0].mxu0
      %v1171 = vadd.f32 0.0, %v1170
      %v1172 = vpop.f32.mrb[0].mxu0
      %1173 = vmatprep.mubr.bf16.mxu0 0
      %1174 = vmatmul.mubr.bf16.gmra.mrb[0].mxu0 %v1047
      %v1175 = vpop.f32.mrb[0].mxu0
      %v1176 = vadd.f32 0.0, %v1175
      %v1177 = vpop.f32.mrb[0].mxu0
      %v1178 = vpop.f32.mrb[0].mxu0
      %v1179 = vadd.f32 0.0, %v1178
      %v1180 = vpop.f32.mrb[0].mxu0
      %1181 = vmatprep.mubr.bf16.mxu0 0
      %1182 = vmatmul.mubr.bf16.gmra.mrb[0].mxu0 %v1050
      %v1183 = vpop.f32.mrb[0].mxu0
      %v1184 = vadd.f32 0.0, %v1183
      %v1185 = vpop.f32.mrb[0].mxu0
      %v1186 = vpop.f32.mrb[0].mxu0
      %v1187 = vadd.f32 0.0, %v1186
      %v1188 = vpop.f32.mrb[0].mxu0
      %1189 = vmatprep.mubr.bf16.mxu0 0
      %1190 = vmatmul.mubr.bf16.gmra.mrb[0].mxu0 %v1053
      %v1191 = vpop.f32.mrb[0].mxu0
      %v1192 = vadd.f32 0.0, %v1191
      %v1193 = vpop.f32.mrb[0].mxu0
      %v1194 = vpop.f32.mrb[0].mxu0
      %v1195 = vadd.f32 0.0, %v1194
      %v1196 = vpop.f32.mrb[0].mxu0
      %1197 = vmatprep.mubr.bf16.mxu0 0
      %1198 = vmatmul.mubr.bf16.gmra.mrb[0].mxu0 %v1056
      %v1199 = vpop.f32.mrb[0].mxu0
      %v1200 = vadd.f32 0.0, %v1199
      %v1201 = vpop.f32.mrb[0].mxu0
      %v1202 = vpop.f32.mrb[0].mxu0
      %v1203 = vadd.f32 0.0, %v1202
      %v1204 = vpop.f32.mrb[0].mxu0
      %1205 = vmatprep.mubr.bf16.mxu0 0
      %1206 = vmatmul.mubr.bf16.gmra.mrb[0].mxu0 %v1059
      %v1207 = vpop.f32.mrb[0].mxu0
      %v1208 = vadd.f32 0.0, %v1207
      %v1209 = vpop.f32.mrb[0].mxu0
      %v1210 = vpop.f32.mrb[0].mxu0
      %v1211 = vadd.f32 0.0, %v1210
      %v1212 = vpop.f32.mrb[0].mxu0
      %1213 = vmatprep.mubr.bf16.mxu0 0
      %1214 = vmatmul.mubr.bf16.gmra.mrb[0].mxu0 %v1062
      %v1215 = vpop.f32.mrb[0].mxu0
      %v1216 = vadd.f32 0.0, %v1215
      %v1217 = vpop.f32.mrb[0].mxu0
      %v1218 = vpop.f32.mrb[0].mxu0
      %v1219 = vadd.f32 0.0, %v1218
      %v1220 = vpop.f32.mrb[0].mxu0
      %1221 = vmatprep.mubr.bf16.mxu0 0
      %1222 = vmatmul.mubr.bf16.gmra.mrb[0].mxu0 %v1065
      %v1223 = vpop.f32.mrb[0].mxu0
      %v1224 = vadd.f32 0.0, %v1223
      %v1225 = vpop.f32.mrb[0].mxu0
      %v1226 = vpop.f32.mrb[0].mxu0
      %v1227 = vadd.f32 0.0, %v1226
      %v1228 = vpop.f32.mrb[0].mxu0
      %1229 = vmatprep.mubr.bf16.mxu0 0
      %1230 = vmatmul.mubr.bf16.gmra.mrb[0].mxu0 %v1068
      %v1231 = vpop.f32.mrb[0].mxu0
      %v1232 = vadd.f32 0.0, %v1231
      %v1233 = vpop.f32.mrb[0].mxu0
      %v1234 = vpop.f32.mrb[0].mxu0
      %v1235 = vadd.f32 0.0, %v1234
      %v1236 = vpop.f32.mrb[0].mxu0
      %1237 = vmatprep.mubr.bf16.mxu0 0
      %1238 = vmatmul.mubr.bf16.gmra.mrb[0].mxu0 %v1071
      %v1239 = vpop.f32.mrb[0].mxu0
      %v1240 = vadd.f32 0.0, %v1239
      %v1241 = vpop.f32.mrb[0].mxu0
      %v1242 = vpop.f32.mrb[0].mxu0
      %v1243 = vadd.f32 0.0, %v1242
      %v1244 = vpop.f32.mrb[0].mxu0
      %1245 = vmatprep.mubr.bf16.mxu0 0
      %1246 = vmatmul.mubr.bf16.gmra.mrb[0].mxu0 %v1074
      %v1247 = vpop.f32.mrb[0].mxu0
      %v1248 = vadd.f32 0.0, %v1247
      %v1249 = vpop.f32.mrb[0].mxu0
      %v1250 = vpop.f32.mrb[0].mxu0
      %v1251 = vadd.f32 0.0, %v1250
      %v1252 = vpop.f32.mrb[0].mxu0
      %1253 = vmatprep.mubr.bf16.mxu0 0
      %1254 = vmatmul.mubr.bf16.gmra.mrb[0].mxu0 %v1077
      %v1255 = vpop.f32.mrb[0].mxu0
      %v1256 = vadd.f32 0.0, %v1255
      %v1257 = vpop.f32.mrb[0].mxu0
      %v1258 = vpop.f32.mrb[0].mxu0
      %v1259 = vadd.f32 0.0, %v1258
      %v1260 = vpop.f32.mrb[0].mxu0
      %1261 = vmatprep.mubr.bf16.mxu0 0
      %1262 = vmatmul.mubr.bf16.gmra.mrb[0].mxu0 %v1080
      %v1263 = vpop.f32.mrb[0].mxu0
      %v1264 = vadd.f32 0.0, %v1263
      %v1265 = vpop.f32.mrb[0].mxu0
      %v1266 = vpop.f32.mrb[0].mxu0
      %v1267 = vadd.f32 0.0, %v1266
      %v1268 = vpop.f32.mrb[0].mxu0
      %1269 = vmatprep.mubr.bf16.mxu0 0
      %1270 = vmatmul.mubr.bf16.gmra.mrb[0].mxu0 %v1083
      %v1271 = vpop.f32.mrb[0].mxu0
      %v1272 = vadd.f32 0.0, %v1271
      %v1273 = vpop.f32.mrb[0].mxu0
      %v1274 = vpop.f32.mrb[0].mxu0
      %v1275 = vadd.f32 0.0, %v1274
      %v1276 = vpop.f32.mrb[0].mxu0
      %1277 = vmatprep.mubr.bf16.mxu0 0
      %1278 = vmatmul.mubr.bf16.gmra.mrb[0].mxu0 %v1086
      %v1279 = vpop.f32.mrb[0].mxu0
      %v1280 = vadd.f32 0.0, %v1279
      %v1281 = vpop.f32.mrb[0].mxu0
      %v1282 = vpop.f32.mrb[0].mxu0
      %v1283 = vadd.f32 0.0, %v1282
      %v1284 = vpop.f32.mrb[0].mxu0
      %1285 = vmatprep.mubr.bf16.mxu0 0
      %1286 = vmatmul.mubr.bf16.gmra.mrb[0].mxu0 %v1089
      %v1287 = vpop.f32.mrb[0].mxu0
      %v1288 = vadd.f32 0.0, %v1287
      %v1289 = vpop.f32.mrb[0].mxu0
      %v1290 = vpop.f32.mrb[0].mxu0
      %v1291 = vadd.f32 0.0, %v1290
      %v1292 = vpop.f32.mrb[0].mxu0
      %1293 = vmatprep.mubr.bf16.mxu0 0
      %1294 = vmatmul.mubr.bf16.gmra.mrb[0].mxu0 %v1092
      %v1295 = vpop.f32.mrb[0].mxu0
      %v1296 = vadd.f32 0.0, %v1295
      %v1297 = vpop.f32.mrb[0].mxu0
      %v1298 = vpop.f32.mrb[0].mxu0
      %v1299 = vadd.f32 0.0, %v1298
      %v1300 = vpop.f32.mrb[0].mxu0
      %1301 = vmatprep.mubr.bf16.mxu0 0
      %1302 = vmatmul.mubr.bf16.gmra.mrb[0].mxu0 %v1095
      %v1303 = vpop.f32.mrb[0].mxu0
      %v1304 = vadd.f32 0.0, %v1303
      %v1305 = vpop.f32.mrb[0].mxu0
      %v1306 = vpop.f32.mrb[0].mxu0
      %v1307 = vadd.f32 0.0, %v1306
      %v1308 = vpop.f32.mrb[0].mxu0
      %1309 = vmatprep.mubr.bf16.mxu0 0
      %1310 = vmatmul.mubr.bf16.gmra.mrb[0].mxu0 %v1098
      %v1311 = vpop.f32.mrb[0].mxu0
      %v1312 = vadd.f32 0.0, %v1311
      %v1313 = vpop.f32.mrb[0].mxu0
      %v1314 = vpop.f32.mrb[0].mxu0
      %v1315 = vadd.f32 0.0, %v1314
      %v1316 = vpop.f32.mrb[0].mxu0
      %1317 = vmatprep.mubr.bf16.mxu0 0
      %1318 = vmatmul.mubr.bf16.gmra.mrb[0].mxu0 %v1101
      %v1319 = vpop.f32.mrb[0].mxu0
      %v1320 = vadd.f32 0.0, %v1319
      %v1321 = vpop.f32.mrb[0].mxu0
      %v1322 = vpop.f32.mrb[0].mxu0
      %v1323 = vadd.f32 0.0, %v1322
      %v1324 = vpop.f32.mrb[0].mxu0
      %1325 = vmatprep.mubr.bf16.mxu0 0
      %1326 = vmatmul.mubr.bf16.gmra.mrb[0].mxu0 %v1104
      %v1327 = vpop.f32.mrb[0].mxu0
      %v1328 = vadd.f32 0.0, %v1327
      %v1329 = vpop.f32.mrb[0].mxu0
      %v1330 = vpop.f32.mrb[0].mxu0
      %v1331 = vadd.f32 0.0, %v1330
      %v1332 = vpop.f32.mrb[0].mxu0
      %1333 = vmatprep.mubr.bf16.mxu0 0
      %1334 = vmatmul.mubr.bf16.gmra.mrb[0].mxu0 %v1107
      %v1335 = vpop.f32.mrb[0].mxu0
      %v1336 = vadd.f32 0.0, %v1335
      %v1337 = vpop.f32.mrb[0].mxu0
      %v1338 = vpop.f32.mrb[0].mxu0
      %v1339 = vadd.f32 0.0, %v1338
      %v1340 = vpop.f32.mrb[0].mxu0
      %1341 = vmatprep.mubr.bf16.mxu0 0
      %1342 = vmatmul.mubr.bf16.gmra.mrb[0].mxu0 %v1110
      %v1343 = vpop.f32.mrb[0].mxu0
      %v1344 = vadd.f32 0.0, %v1343
      %v1345 = vpop.f32.mrb[0].mxu0
      %v1346 = vpop.f32.mrb[0].mxu0
      %v1347 = vadd.f32 0.0, %v1346
      %v1348 = vpop.f32.mrb[0].mxu0
      %1349 = vmatprep.mubr.bf16.mxu0 0
      %1350 = vmatmul.mubr.bf16.gmra.mrb[0].mxu0 %v1113
      %v1351 = vpop.f32.mrb[0].mxu0
      %v1352 = vadd.f32 0.0, %v1351
      %v1353 = vpop.f32.mrb[0].mxu0
      %v1354 = vpop.f32.mrb[0].mxu0
      %v1355 = vadd.f32 0.0, %v1354
      %v1356 = vpop.f32.mrb[0].mxu0
      %1357 = vmatprep.mubr.bf16.mxu0 0
      %1358 = vmatmul.mubr.bf16.gmra.mrb[0].mxu0 %v1116
      %v1359 = vpop.f32.mrb[0].mxu0
      %v1360 = vadd.f32 0.0, %v1359
      %v1361 = vpop.f32.mrb[0].mxu0
      %v1362 = vpop.f32.mrb[0].mxu0
      %v1363 = vadd.f32 0.0, %v1362
      %v1364 = vpop.f32.mrb[0].mxu0
      %1365 = vmatprep.mubr.bf16.mxu0 0
      %1366 = vmatmul.mubr.bf16.gmra.mrb[0].mxu0 %v1119
      %v1367 = vpop.f32.mrb[0].mxu0
      %v1368 = vadd.f32 0.0, %v1367
      %v1369 = vpop.f32.mrb[0].mxu0
      %v1370 = vpop.f32.mrb[0].mxu0
      %v1371 = vadd.f32 0.0, %v1370
      %v1372 = vpop.f32.mrb[0].mxu0
      %1373 = vmatprep.mubr.bf16.mxu0 0
      %1374 = vmatmul.mubr.bf16.gmra.mrb[0].mxu0 %v1122
      %v1375 = vpop.f32.mrb[0].mxu0
      %v1376 = vadd.f32 0.0, %v1375
      %v1377 = vpop.f32.mrb[0].mxu0
      %v1378 = vpop.f32.mrb[0].mxu0
      %v1379 = vadd.f32 0.0, %v1378
      %v1380 = vpop.f32.mrb[0].mxu0
      %1381 = vmatprep.mubr.bf16.mxu0 0
      %1382 = vmatmul.mubr.bf16.gmra.mrb[0].mxu0 %v1125
      %v1383 = vpop.f32.mrb[0].mxu0
      %v1384 = vadd.f32 0.0, %v1383
      %v1385 = vpop.f32.mrb[0].mxu0
      %v1386 = vpop.f32.mrb[0].mxu0
      %v1387 = vadd.f32 0.0, %v1386
      %v1388 = vpop.f32.mrb[0].mxu0
      %1389 = vmatprep.mubr.bf16.mxu0 0
      %1390 = vmatmul.mubr.bf16.gmra.mrb[0].mxu0 %v1128
      %v1391 = vpop.f32.mrb[0].mxu0
      %v1392 = vadd.f32 0.0, %v1391
      %v1393 = vpop.f32.mrb[0].mxu0
      %v1394 = vpop.f32.mrb[0].mxu0
      %v1395 = vadd.f32 0.0, %v1394
      %v1396 = vpop.f32.mrb[0].mxu0
      %1397 = vmatprep.mubr.bf16.mxu0 0
      %1398 = vmatmul.mubr.bf16.gmra.mrb[0].mxu0 %v1131
      %v1399 = vpop.f32.mrb[0].mxu0
      %v1400 = vadd.f32 0.0, %v1399
      %v1401 = vpop.f32.mrb[0].mxu0
      %v1402 = vpop.f32.mrb[0].mxu0
      %v1403 = vadd.f32 0.0, %v1402
      %v1404 = vpop.f32.mrb[0].mxu0
      %1405 = vdwg.mxu0
      %vm1406 = vcmask 588800
      %1407 = vst.msk [vmem:[#allocation3] sm:$0xff] %vm1406, %v1168
      %1408 = vst.msk [vmem:[#allocation3 + $0x8] sm:$0xff] %vm1406, %v1171
      %1409 = vst.msk [vmem:[#allocation3 + $0x10] sm:$0xff] %vm1406, %v1176
      %1410 = vst.msk [vmem:[#allocation3 + $0x18] sm:$0xff] %vm1406, %v1179
      %1411 = vst.msk [vmem:[#allocation3 + $0x20] sm:$0xff] %vm1406, %v1184
      %1412 = vst.msk [vmem:[#allocation3 + $0x28] sm:$0xff] %vm1406, %v1187
      %1413 = vst.msk [vmem:[#allocation3 + $0x30] sm:$0xff] %vm1406, %v1192
      %1414 = vst.msk [vmem:[#allocation3 + $0x38] sm:$0xff] %vm1406, %v1195
      %1415 = vst.msk [vmem:[#allocation3 + $0x40] sm:$0xff] %vm1406, %v1200
      %1416 = vst.msk [vmem:[#allocation3 + $0x48] sm:$0xff] %vm1406, %v1203
      %1417 = vst.msk [vmem:[#allocation3 + $0x50] sm:$0xff] %vm1406, %v1208
      %1418 = vst.msk [vmem:[#allocation3 + $0x58] sm:$0xff] %vm1406, %v1211
      %1419 = vst.msk [vmem:[#allocation3 + $0x60] sm:$0xff] %vm1406, %v1216
      %1420 = vst.msk [vmem:[#allocation3 + $0x68] sm:$0xff] %vm1406, %v1219
      %1421 = vst.msk [vmem:[#allocation3 + $0x70] sm:$0xff] %vm1406, %v1224
      %1422 = vst.msk [vmem:[#allocation3 + $0x78] sm:$0xff] %vm1406, %v1227
      %1423 = vst.msk [vmem:[#allocation3 + $0x80] sm:$0xff] %vm1406, %v1232
      %1424 = vst.msk [vmem:[#allocation3 + $0x88] sm:$0xff] %vm1406, %v1235
      %1425 = vst.msk [vmem:[#allocation3 + $0x90] sm:$0xff] %vm1406, %v1240
      %1426 = vst.msk [vmem:[#allocation3 + $0x98] sm:$0xff] %vm1406, %v1243
      %1427 = vst.msk [vmem:[#allocation3 + $0xa0] sm:$0xff] %vm1406, %v1248
      %1428 = vst.msk [vmem:[#allocation3 + $0xa8] sm:$0xff] %vm1406, %v1251
      %1429 = vst.msk [vmem:[#allocation3 + $0xb0] sm:$0xff] %vm1406, %v1256
      %1430 = vst.msk [vmem:[#allocation3 + $0xb8] sm:$0xff] %vm1406, %v1259
      %1431 = vst.msk [vmem:[#allocation3 + $0xc0] sm:$0xff] %vm1406, %v1264
      %1432 = vst.msk [vmem:[#allocation3 + $0xc8] sm:$0xff] %vm1406, %v1267
      %1433 = vst.msk [vmem:[#allocation3 + $0xd0] sm:$0xff] %vm1406, %v1272
      %1434 = vst.msk [vmem:[#allocation3 + $0xd8] sm:$0xff] %vm1406, %v1275
      %1435 = vst.msk [vmem:[#allocation3 + $0xe0] sm:$0xff] %vm1406, %v1280
      %1436 = vst.msk [vmem:[#allocation3 + $0xe8] sm:$0xff] %vm1406, %v1283
      %1437 = vst.msk [vmem:[#allocation3 + $0xf0] sm:$0xff] %vm1406, %v1288
      %1438 = vst.msk [vmem:[#allocation3 + $0xf8] sm:$0xff] %vm1406, %v1291
      %1439 = vst.msk [vmem:[#allocation3 + $0x100] sm:$0xff] %vm1406, %v1296
      %1440 = vst.msk [vmem:[#allocation3 + $0x108] sm:$0xff] %vm1406, %v1299
      %1441 = vst.msk [vmem:[#allocation3 + $0x110] sm:$0xff] %vm1406, %v1304
      %1442 = vst.msk [vmem:[#allocation3 + $0x118] sm:$0xff] %vm1406, %v1307
      %1443 = vst.msk [vmem:[#allocation3 + $0x120] sm:$0xff] %vm1406, %v1312
      %1444 = vst.msk [vmem:[#allocation3 + $0x128] sm:$0xff] %vm1406, %v1315
      %1445 = vst.msk [vmem:[#allocation3 + $0x130] sm:$0xff] %vm1406, %v1320
      %1446 = vst.msk [vmem:[#allocation3 + $0x138] sm:$0xff] %vm1406, %v1323
      %1447 = vst.msk [vmem:[#allocation3 + $0x140] sm:$0xff] %vm1406, %v1328
      %1448 = vst.msk [vmem:[#allocation3 + $0x148] sm:$0xff] %vm1406, %v1331
      %1449 = vst.msk [vmem:[#allocation3 + $0x150] sm:$0xff] %vm1406, %v1336
      %1450 = vst.msk [vmem:[#allocation3 + $0x158] sm:$0xff] %vm1406, %v1339
      %1451 = vst.msk [vmem:[#allocation3 + $0x160] sm:$0xff] %vm1406, %v1344
      %1452 = vst.msk [vmem:[#allocation3 + $0x168] sm:$0xff] %vm1406, %v1347
      %1453 = vst.msk [vmem:[#allocation3 + $0x170] sm:$0xff] %vm1406, %v1352
      %1454 = vst.msk [vmem:[#allocation3 + $0x178] sm:$0xff] %vm1406, %v1355
      %1455 = vst.msk [vmem:[#allocation3 + $0x180] sm:$0xff] %vm1406, %v1360
      %1456 = vst.msk [vmem:[#allocation3 + $0x188] sm:$0xff] %vm1406, %v1363
      %1457 = vst.msk [vmem:[#allocation3 + $0x190] sm:$0xff] %vm1406, %v1368
      %1458 = vst.msk [vmem:[#allocation3 + $0x198] sm:$0xff] %vm1406, %v1371
      %1459 = vst.msk [vmem:[#allocation3 + $0x1a0] sm:$0xff] %vm1406, %v1376
      %1460 = vst.msk [vmem:[#allocation3 + $0x1a8] sm:$0xff] %vm1406, %v1379
      %1461 = vst.msk [vmem:[#allocation3 + $0x1b0] sm:$0xff] %vm1406, %v1384
      %1462 = vst.msk [vmem:[#allocation3 + $0x1b8] sm:$0xff] %vm1406, %v1387
      %1463 = vst.msk [vmem:[#allocation3 + $0x1c0] sm:$0xff] %vm1406, %v1392
      %1464 = vst.msk [vmem:[#allocation3 + $0x1c8] sm:$0xff] %vm1406, %v1395
      %1465 = vst.msk [vmem:[#allocation3 + $0x1d0] sm:$0xff] %vm1406, %v1400
      %1466 = vst.msk [vmem:[#allocation3 + $0x1d8] sm:$0xff] %vm1406, %v1403
      %v1467 = vld [vmem:[#allocation3 + $0x17] sm:$0xff]
      %v1468 = vld [vmem:[#allocation3 + $0x1f] sm:$0xff]
      %v1469 = vld [vmem:[#allocation3 + $0x27] sm:$0xff]
      %v1470 = vld [vmem:[#allocation3 + $0x2f] sm:$0xff]
      %v1471 = vld [vmem:[#allocation3 + $0x37] sm:$0xff]
      %v1472 = vld [vmem:[#allocation3 + $0x3f] sm:$0xff]
      %v1473 = vld [vmem:[#allocation3 + $0x47] sm:$0xff]
      %v1474 = vld [vmem:[#allocation3 + $0x4f] sm:$0xff]
      %v1475 = vld [vmem:[#allocation3 + $0x57] sm:$0xff]
      %v1476 = vld [vmem:[#allocation3 + $0x5f] sm:$0xff]
      %v1477 = vld [vmem:[#allocation3 + $0x67] sm:$0xff]
      %v1478 = vld [vmem:[#allocation3 + $0x6f] sm:$0xff]
      %v1479 = vld [vmem:[#allocation3 + $0x77] sm:$0xff]
      %v1480 = vld [vmem:[#allocation3 + $0x7f] sm:$0xff]
      %v1481 = vld [vmem:[#allocation3 + $0x87] sm:$0xff]
      %v1482 = vld [vmem:[#allocation3 + $0x8f] sm:$0xff]
      %v1483 = vld [vmem:[#allocation3 + $0x97] sm:$0xff]
      %v1484 = vld [vmem:[#allocation3 + $0x9f] sm:$0xff]
      %v1485 = vld [vmem:[#allocation3 + $0xa7] sm:$0xff]
      %v1486 = vld [vmem:[#allocation3 + $0xaf] sm:$0xff]
      %v1487 = vld [vmem:[#allocation3 + $0xb7] sm:$0xff]
      %v1488 = vld [vmem:[#allocation3 + $0xbf] sm:$0xff]
      %v1489 = vld [vmem:[#allocation3 + $0xc7] sm:$0xff]
      %v1490 = vld [vmem:[#allocation3 + $0xcf] sm:$0xff]
      %v1491 = vld [vmem:[#allocation3 + $0xd7] sm:$0xff]
      %v1492 = vld [vmem:[#allocation3 + $0xdf] sm:$0xff]
      %v1493 = vld [vmem:[#allocation3 + $0xe7] sm:$0xff]
      %v1494 = vld [vmem:[#allocation3 + $0xef] sm:$0xff]
      %v1495 = vld [vmem:[#allocation3 + $0xf7] sm:$0xff]
      %v1496 = vld [vmem:[#allocation3 + $0xff] sm:$0xff]
      %v1497 = vld [vmem:[#allocation3 + $0x107] sm:$0xff]
      %v1498 = vld [vmem:[#allocation3 + $0x10f] sm:$0xff]
      %v1499 = vld [vmem:[#allocation3 + $0x117] sm:$0xff]
      %v1500 = vld [vmem:[#allocation3 + $0x11f] sm:$0xff]
      %v1501 = vld [vmem:[#allocation3 + $0x127] sm:$0xff]
      %v1502 = vld [vmem:[#allocation3 + $0x12f] sm:$0xff]
      %v1503 = vld [vmem:[#allocation3 + $0x137] sm:$0xff]
      %v1504 = vld [vmem:[#allocation3 + $0x13f] sm:$0xff]
      %v1505 = vld [vmem:[#allocation3 + $0x147] sm:$0xff]
      %v1506 = vld [vmem:[#allocation3 + $0x14f] sm:$0xff]
      %v1507 = vld [vmem:[#allocation3 + $0x157] sm:$0xff]
      %v1508 = vld [vmem:[#allocation3 + $0x15f] sm:$0xff]
      %v1509 = vld [vmem:[#allocation3 + $0x167] sm:$0xff]
      %v1510 = vld [vmem:[#allocation3 + $0x16f] sm:$0xff]
      %v1511 = vld [vmem:[#allocation3 + $0x177] sm:$0xff]
      %v1512 = vld [vmem:[#allocation3 + $0x17f] sm:$0xff]
      %v1513 = vld [vmem:[#allocation3 + $0x187] sm:$0xff]
      %v1514 = vld [vmem:[#allocation3 + $0x18f] sm:$0xff]
      %v1515 = vadd.f32 %v1467, 0.0
      %v1516 = vadd.f32 %v1468, 0.0
      %v1517 = vadd.f32 %v1469, 0.0
      %v1518 = vadd.f32 %v1470, 0.0
      %v1519 = vadd.f32 %v1471, 0.0
      %v1520 = vadd.f32 %v1472, 0.0
      %v1521 = vadd.f32 %v1473, 0.0
      %v1522 = vadd.f32 %v1474, 0.0
      %v1523 = vadd.f32 %v1475, 0.0
      %v1524 = vadd.f32 %v1476, 0.0
      %v1525 = vadd.f32 %v1477, 0.0
      %v1526 = vadd.f32 %v1478, 0.0
      %v1527 = vadd.f32 %v1479, 0.0
      %v1528 = vadd.f32 %v1480, 0.0
      %v1529 = vadd.f32 %v1481, 0.0
      %v1530 = vadd.f32 %v1482, 0.0
      %v1531 = vadd.f32 %v1483, 0.0
      %v1532 = vadd.f32 %v1484, 0.0
      %v1533 = vadd.f32 %v1485, 0.0
      %v1534 = vadd.f32 %v1486, 0.0
      %v1535 = vadd.f32 %v1487, 0.0
      %v1536 = vadd.f32 %v1488, 0.0
      %v1537 = vadd.f32 %v1489, 0.0
      %v1538 = vadd.f32 %v1490, 0.0
      %v1539 = vadd.f32 %v1491, 0.0
      %v1540 = vadd.f32 %v1492, 0.0
      %v1541 = vadd.f32 %v1493, 0.0
      %v1542 = vadd.f32 %v1494, 0.0
      %v1543 = vadd.f32 %v1495, 0.0
      %v1544 = vadd.f32 %v1496, 0.0
      %v1545 = vadd.f32 %v1497, 0.0
      %v1546 = vadd.f32 %v1498, 0.0
      %v1547 = vadd.f32 %v1499, 0.0
      %v1548 = vadd.f32 %v1500, 0.0
      %v1549 = vadd.f32 %v1501, 0.0
      %v1550 = vadd.f32 %v1502, 0.0
      %v1551 = vadd.f32 %v1503, 0.0
      %v1552 = vadd.f32 %v1504, 0.0
      %v1553 = vadd.f32 %v1505, 0.0
      %v1554 = vadd.f32 %v1506, 0.0
      %v1555 = vadd.f32 %v1507, 0.0
      %v1556 = vadd.f32 %v1508, 0.0
      %v1557 = vadd.f32 %v1509, 0.0
      %v1558 = vadd.f32 %v1510, 0.0
      %v1559 = vadd.f32 %v1511, 0.0
      %v1560 = vadd.f32 %v1512, 0.0
      %v1561 = vadd.f32 %v1513, 0.0
      %v1562 = vadd.f32 %v1514, 0.0
      %v1563 = vld [vmem:[#allocation3 + $0x18] sm:$0xff]
      %v1564 = vld [vmem:[#allocation3 + $0x20] sm:$0xff]
      %v1565 = vld [vmem:[#allocation3 + $0x28] sm:$0xff]
      %v1566 = vld [vmem:[#allocation3 + $0x30] sm:$0xff]
      %v1567 = vld [vmem:[#allocation3 + $0x38] sm:$0xff]
      %v1568 = vld [vmem:[#allocation3 + $0x40] sm:$0xff]
      %v1569 = vld [vmem:[#allocation3 + $0x48] sm:$0xff]
      %v1570 = vld [vmem:[#allocation3 + $0x50] sm:$0xff]
      %v1571 = vld [vmem:[#allocation3 + $0x58] sm:$0xff]
      %v1572 = vld [vmem:[#allocation3 + $0x60] sm:$0xff]
      %v1573 = vld [vmem:[#allocation3 + $0x68] sm:$0xff]
      %v1574 = vld [vmem:[#allocation3 + $0x70] sm:$0xff]
      %v1575 = vld [vmem:[#allocation3 + $0x78] sm:$0xff]
      %v1576 = vld [vmem:[#allocation3 + $0x80] sm:$0xff]
      %v1577 = vld [vmem:[#allocation3 + $0x88] sm:$0xff]
      %v1578 = vld [vmem:[#allocation3 + $0x90] sm:$0xff]
      %v1579 = vld [vmem:[#allocation3 + $0x98] sm:$0xff]
      %v1580 = vld [vmem:[#allocation3 + $0xa0] sm:$0xff]
      %v1581 = vld [vmem:[#allocation3 + $0xa8] sm:$0xff]
      %v1582 = vld [vmem:[#allocation3 + $0xb0] sm:$0xff]
      %v1583 = vld [vmem:[#allocation3 + $0xb8] sm:$0xff]
      %v1584 = vld [vmem:[#allocation3 + $0xc0] sm:$0xff]
      %v1585 = vld [vmem:[#allocation3 + $0xc8] sm:$0xff]
      %v1586 = vld [vmem:[#allocation3 + $0xd0] sm:$0xff]
      %v1587 = vld [vmem:[#allocation3 + $0xd8] sm:$0xff]
      %v1588 = vld [vmem:[#allocation3 + $0xe0] sm:$0xff]
      %v1589 = vld [vmem:[#allocation3 + $0xe8] sm:$0xff]
      %v1590 = vld [vmem:[#allocation3 + $0xf0] sm:$0xff]
      %v1591 = vld [vmem:[#allocation3 + $0xf8] sm:$0xff]
      %v1592 = vld [vmem:[#allocation3 + $0x100] sm:$0xff]
      %v1593 = vld [vmem:[#allocation3 + $0x108] sm:$0xff]
      %v1594 = vld [vmem:[#allocation3 + $0x110] sm:$0xff]
      %v1595 = vld [vmem:[#allocation3 + $0x118] sm:$0xff]
      %v1596 = vld [vmem:[#allocation3 + $0x120] sm:$0xff]
      %v1597 = vld [vmem:[#allocation3 + $0x128] sm:$0xff]
      %v1598 = vld [vmem:[#allocation3 + $0x130] sm:$0xff]
      %v1599 = vld [vmem:[#allocation3 + $0x138] sm:$0xff]
      %v1600 = vld [vmem:[#allocation3 + $0x140] sm:$0xff]
      %v1601 = vld [vmem:[#allocation3 + $0x148] sm:$0xff]
      %v1602 = vld [vmem:[#allocation3 + $0x150] sm:$0xff]
      %v1603 = vld [vmem:[#allocation3 + $0x158] sm:$0xff]
      %v1604 = vld [vmem:[#allocation3 + $0x160] sm:$0xff]
      %v1605 = vld [vmem:[#allocation3 + $0x168] sm:$0xff]
      %v1606 = vld [vmem:[#allocation3 + $0x170] sm:$0xff]
      %v1607 = vld [vmem:[#allocation3 + $0x178] sm:$0xff]
      %v1608 = vld [vmem:[#allocation3 + $0x180] sm:$0xff]
      %v1609 = vld [vmem:[#allocation3 + $0x188] sm:$0xff]
      %v1610 = vld [vmem:[#allocation3 + $0x190] sm:$0xff]
      %1659 = vrot.lane.b32.xlu0 %v1563, 120
      %v1660 = vpop.permute.xlu0 %1659
      %1661 = vrot.lane.b32.xlu0 %v1564, 120
      %v1662 = vpop.permute.xlu0 %1661
      %1663 = vrot.lane.b32.xlu0 %v1565, 120
      %v1664 = vpop.permute.xlu0 %1663
      %1665 = vrot.lane.b32.xlu0 %v1566, 120
      %v1666 = vpop.permute.xlu0 %1665
      %1667 = vrot.lane.b32.xlu0 %v1567, 120
      %v1668 = vpop.permute.xlu0 %1667
      %1669 = vrot.lane.b32.xlu0 %v1568, 120
      %v1670 = vpop.permute.xlu0 %1669
      %1671 = vrot.lane.b32.xlu0 %v1569, 120
      %v1672 = vpop.permute.xlu0 %1671
      %1673 = vrot.lane.b32.xlu0 %v1570, 120
      %v1674 = vpop.permute.xlu0 %1673
      %1675 = vrot.lane.b32.xlu0 %v1571, 120
      %v1676 = vpop.permute.xlu0 %1675
      %1677 = vrot.lane.b32.xlu0 %v1572, 120
      %v1678 = vpop.permute.xlu0 %1677
      %1679 = vrot.lane.b32.xlu0 %v1573, 120
      %v1680 = vpop.permute.xlu0 %1679
      %1681 = vrot.lane.b32.xlu0 %v1574, 120
      %v1682 = vpop.permute.xlu0 %1681
      %1683 = vrot.lane.b32.xlu0 %v1575, 120
      %v1684 = vpop.permute.xlu0 %1683
      %1685 = vrot.lane.b32.xlu0 %v1576, 120
      %v1686 = vpop.permute.xlu0 %1685
      %1687 = vrot.lane.b32.xlu0 %v1577, 120
      %v1688 = vpop.permute.xlu0 %1687
      %1689 = vrot.lane.b32.xlu0 %v1578, 120
      %v1690 = vpop.permute.xlu0 %1689
      %1691 = vrot.lane.b32.xlu0 %v1579, 120
      %v1692 = vpop.permute.xlu0 %1691
      %1693 = vrot.lane.b32.xlu0 %v1580, 120
      %v1694 = vpop.permute.xlu0 %1693
      %1695 = vrot.lane.b32.xlu0 %v1581, 120
      %v1696 = vpop.permute.xlu0 %1695
      %1697 = vrot.lane.b32.xlu0 %v1582, 120
      %v1698 = vpop.permute.xlu0 %1697
      %1699 = vrot.lane.b32.xlu0 %v1583, 120
      %v1700 = vpop.permute.xlu0 %1699
      %1701 = vrot.lane.b32.xlu0 %v1584, 120
      %v1702 = vpop.permute.xlu0 %1701
      %1703 = vrot.lane.b32.xlu0 %v1585, 120
      %v1704 = vpop.permute.xlu0 %1703
      %1705 = vrot.lane.b32.xlu0 %v1586, 120
      %v1706 = vpop.permute.xlu0 %1705
      %1707 = vrot.lane.b32.xlu0 %v1587, 120
      %v1708 = vpop.permute.xlu0 %1707
      %1709 = vrot.lane.b32.xlu0 %v1588, 120
      %v1710 = vpop.permute.xlu0 %1709
      %1711 = vrot.lane.b32.xlu0 %v1589, 120
      %v1712 = vpop.permute.xlu0 %1711
      %1713 = vrot.lane.b32.xlu0 %v1590, 120
      %v1714 = vpop.permute.xlu0 %1713
      %1715 = vrot.lane.b32.xlu0 %v1591, 120
      %v1716 = vpop.permute.xlu0 %1715
      %1717 = vrot.lane.b32.xlu0 %v1592, 120
      %v1718 = vpop.permute.xlu0 %1717
      %1719 = vrot.lane.b32.xlu0 %v1593, 120
      %v1720 = vpop.permute.xlu0 %1719
      %1721 = vrot.lane.b32.xlu0 %v1594, 120
      %v1722 = vpop.permute.xlu0 %1721
      %1723 = vrot.lane.b32.xlu0 %v1595, 120
      %v1724 = vpop.permute.xlu0 %1723
      %1725 = vrot.lane.b32.xlu0 %v1596, 120
      %v1726 = vpop.permute.xlu0 %1725
      %1727 = vrot.lane.b32.xlu0 %v1597, 120
      %v1728 = vpop.permute.xlu0 %1727
      %1729 = vrot.lane.b32.xlu0 %v1598, 120
      %v1730 = vpop.permute.xlu0 %1729
      %1731 = vrot.lane.b32.xlu0 %v1599, 120
      %v1732 = vpop.permute.xlu0 %1731
      %1733 = vrot.lane.b32.xlu0 %v1600, 120
      %v1734 = vpop.permute.xlu0 %1733
      %1735 = vrot.lane.b32.xlu0 %v1601, 120
      %v1736 = vpop.permute.xlu0 %1735
      %1737 = vrot.lane.b32.xlu0 %v1602, 120
      %v1738 = vpop.permute.xlu0 %1737
      %1739 = vrot.lane.b32.xlu0 %v1603, 120
      %v1740 = vpop.permute.xlu0 %1739
      %1741 = vrot.lane.b32.xlu0 %v1604, 120
      %v1742 = vpop.permute.xlu0 %1741
      %1743 = vrot.lane.b32.xlu0 %v1605, 120
      %v1744 = vpop.permute.xlu0 %1743
      %1745 = vrot.lane.b32.xlu0 %v1606, 120
      %v1746 = vpop.permute.xlu0 %1745
      %1747 = vrot.lane.b32.xlu0 %v1607, 120
      %v1748 = vpop.permute.xlu0 %1747
      %1749 = vrot.lane.b32.xlu0 %v1608, 120
      %v1750 = vpop.permute.xlu0 %1749
      %1751 = vrot.lane.b32.xlu0 %v1609, 120
      %v1752 = vpop.permute.xlu0 %1751
      %1753 = vrot.lane.b32.xlu0 %v1610, 120
      %v1754 = vpop.permute.xlu0 %1753
      %v1803 = vadd.f32 %v1515, %v1660
      %v1804 = vadd.f32 %v1516, %v1662
      %v1805 = vadd.f32 %v1517, %v1664
      %v1806 = vadd.f32 %v1518, %v1666
      %v1807 = vadd.f32 %v1519, %v1668
      %v1808 = vadd.f32 %v1520, %v1670
      %v1809 = vadd.f32 %v1521, %v1672
      %v1810 = vadd.f32 %v1522, %v1674
      %v1811 = vadd.f32 %v1523, %v1676
      %v1812 = vadd.f32 %v1524, %v1678
      %v1813 = vadd.f32 %v1525, %v1680
      %v1814 = vadd.f32 %v1526, %v1682
      %v1815 = vadd.f32 %v1527, %v1684
      %v1816 = vadd.f32 %v1528, %v1686
      %v1817 = vadd.f32 %v1529, %v1688
      %v1818 = vadd.f32 %v1530, %v1690
      %v1819 = vadd.f32 %v1531, %v1692
      %v1820 = vadd.f32 %v1532, %v1694
      %v1821 = vadd.f32 %v1533, %v1696
      %v1822 = vadd.f32 %v1534, %v1698
      %v1823 = vadd.f32 %v1535, %v1700
      %v1824 = vadd.f32 %v1536, %v1702
      %v1825 = vadd.f32 %v1537, %v1704
      %v1826 = vadd.f32 %v1538, %v1706
      %v1827 = vadd.f32 %v1539, %v1708
      %v1828 = vadd.f32 %v1540, %v1710
      %v1829 = vadd.f32 %v1541, %v1712
      %v1830 = vadd.f32 %v1542, %v1714
      %v1831 = vadd.f32 %v1543, %v1716
      %v1832 = vadd.f32 %v1544, %v1718
      %v1833 = vadd.f32 %v1545, %v1720
      %v1834 = vadd.f32 %v1546, %v1722
      %v1835 = vadd.f32 %v1547, %v1724
      %v1836 = vadd.f32 %v1548, %v1726
      %v1837 = vadd.f32 %v1549, %v1728
      %v1838 = vadd.f32 %v1550, %v1730
      %v1839 = vadd.f32 %v1551, %v1732
      %v1840 = vadd.f32 %v1552, %v1734
      %v1841 = vadd.f32 %v1553, %v1736
      %v1842 = vadd.f32 %v1554, %v1738
      %v1843 = vadd.f32 %v1555, %v1740
      %v1844 = vadd.f32 %v1556, %v1742
      %v1845 = vadd.f32 %v1557, %v1744
      %v1846 = vadd.f32 %v1558, %v1746
      %v1847 = vadd.f32 %v1559, %v1748
      %v1848 = vadd.f32 %v1560, %v1750
      %v1849 = vadd.f32 %v1561, %v1752
      %v1850 = vadd.f32 %v1562, %v1754
      %v1851 = vld [vmem:[#allocation3 + $0x19] sm:$0xff]
      %v1852 = vld [vmem:[#allocation3 + $0x21] sm:$0xff]
      %v1853 = vld [vmem:[#allocation3 + $0x29] sm:$0xff]
      %v1854 = vld [vmem:[#allocation3 + $0x31] sm:$0xff]
      %v1855 = vld [vmem:[#allocation3 + $0x39] sm:$0xff]
      %v1856 = vld [vmem:[#allocation3 + $0x41] sm:$0xff]
      %v1857 = vld [vmem:[#allocation3 + $0x49] sm:$0xff]
      %v1858 = vld [vmem:[#allocation3 + $0x51] sm:$0xff]
      %v1859 = vld [vmem:[#allocation3 + $0x59] sm:$0xff]
      %v1860 = vld [vmem:[#allocation3 + $0x61] sm:$0xff]
      %v1861 = vld [vmem:[#allocation3 + $0x69] sm:$0xff]
      %v1862 = vld [vmem:[#allocation3 + $0x71] sm:$0xff]
      %v1863 = vld [vmem:[#allocation3 + $0x79] sm:$0xff]
      %v1864 = vld [vmem:[#allocation3 + $0x81] sm:$0xff]
      %v1865 = vld [vmem:[#allocation3 + $0x89] sm:$0xff]
      %v1866 = vld [vmem:[#allocation3 + $0x91] sm:$0xff]
      %v1867 = vld [vmem:[#allocation3 + $0x99] sm:$0xff]
      %v1868 = vld [vmem:[#allocation3 + $0xa1] sm:$0xff]
      %v1869 = vld [vmem:[#allocation3 + $0xa9] sm:$0xff]
      %v1870 = vld [vmem:[#allocation3 + $0xb1] sm:$0xff]
      %v1871 = vld [vmem:[#allocation3 + $0xb9] sm:$0xff]
      %v1872 = vld [vmem:[#allocation3 + $0xc1] sm:$0xff]
      %v1873 = vld [vmem:[#allocation3 + $0xc9] sm:$0xff]
      %v1874 = vld [vmem:[#allocation3 + $0xd1] sm:$0xff]
      %v1875 = vld [vmem:[#allocation3 + $0xd9] sm:$0xff]
      %v1876 = vld [vmem:[#allocation3 + $0xe1] sm:$0xff]
      %v1877 = vld [vmem:[#allocation3 + $0xe9] sm:$0xff]
      %v1878 = vld [vmem:[#allocation3 + $0xf1] sm:$0xff]
      %v1879 = vld [vmem:[#allocation3 + $0xf9] sm:$0xff]
      %v1880 = vld [vmem:[#allocation3 + $0x101] sm:$0xff]
      %v1881 = vld [vmem:[#allocation3 + $0x109] sm:$0xff]
      %v1882 = vld [vmem:[#allocation3 + $0x111] sm:$0xff]
      %v1883 = vld [vmem:[#allocation3 + $0x119] sm:$0xff]
      %v1884 = vld [vmem:[#allocation3 + $0x121] sm:$0xff]
      %v1885 = vld [vmem:[#allocation3 + $0x129] sm:$0xff]
      %v1886 = vld [vmem:[#allocation3 + $0x131] sm:$0xff]
      %v1887 = vld [vmem:[#allocation3 + $0x139] sm:$0xff]
      %v1888 = vld [vmem:[#allocation3 + $0x141] sm:$0xff]
      %v1889 = vld [vmem:[#allocation3 + $0x149] sm:$0xff]
      %v1890 = vld [vmem:[#allocation3 + $0x151] sm:$0xff]
      %v1891 = vld [vmem:[#allocation3 + $0x159] sm:$0xff]
      %v1892 = vld [vmem:[#allocation3 + $0x161] sm:$0xff]
      %v1893 = vld [vmem:[#allocation3 + $0x169] sm:$0xff]
      %v1894 = vld [vmem:[#allocation3 + $0x171] sm:$0xff]
      %v1895 = vld [vmem:[#allocation3 + $0x179] sm:$0xff]
      %v1896 = vld [vmem:[#allocation3 + $0x181] sm:$0xff]
      %v1897 = vld [vmem:[#allocation3 + $0x189] sm:$0xff]
      %v1898 = vld [vmem:[#allocation3 + $0x191] sm:$0xff]
      %1947 = vrot.lane.b32.xlu0 %v1851, 112
      %v1948 = vpop.permute.xlu0 %1947
      %1949 = vrot.lane.b32.xlu0 %v1852, 112
      %v1950 = vpop.permute.xlu0 %1949
      %1951 = vrot.lane.b32.xlu0 %v1853, 112
      %v1952 = vpop.permute.xlu0 %1951
      %1953 = vrot.lane.b32.xlu0 %v1854, 112
      %v1954 = vpop.permute.xlu0 %1953
      %1955 = vrot.lane.b32.xlu0 %v1855, 112
      %v1956 = vpop.permute.xlu0 %1955
      %1957 = vrot.lane.b32.xlu0 %v1856, 112
      %v1958 = vpop.permute.xlu0 %1957
      %1959 = vrot.lane.b32.xlu0 %v1857, 112
      %v1960 = vpop.permute.xlu0 %1959
      %1961 = vrot.lane.b32.xlu0 %v1858, 112
      %v1962 = vpop.permute.xlu0 %1961
      %1963 = vrot.lane.b32.xlu0 %v1859, 112
      %v1964 = vpop.permute.xlu0 %1963
      %1965 = vrot.lane.b32.xlu0 %v1860, 112
      %v1966 = vpop.permute.xlu0 %1965
      %1967 = vrot.lane.b32.xlu0 %v1861, 112
      %v1968 = vpop.permute.xlu0 %1967
      %1969 = vrot.lane.b32.xlu0 %v1862, 112
      %v1970 = vpop.permute.xlu0 %1969
      %1971 = vrot.lane.b32.xlu0 %v1863, 112
      %v1972 = vpop.permute.xlu0 %1971
      %1973 = vrot.lane.b32.xlu0 %v1864, 112
      %v1974 = vpop.permute.xlu0 %1973
      %1975 = vrot.lane.b32.xlu0 %v1865, 112
      %v1976 = vpop.permute.xlu0 %1975
      %1977 = vrot.lane.b32.xlu0 %v1866, 112
      %v1978 = vpop.permute.xlu0 %1977
      %1979 = vrot.lane.b32.xlu0 %v1867, 112
      %v1980 = vpop.permute.xlu0 %1979
      %1981 = vrot.lane.b32.xlu0 %v1868, 112
      %v1982 = vpop.permute.xlu0 %1981
      %1983 = vrot.lane.b32.xlu0 %v1869, 112
      %v1984 = vpop.permute.xlu0 %1983
      %1985 = vrot.lane.b32.xlu0 %v1870, 112
      %v1986 = vpop.permute.xlu0 %1985
      %1987 = vrot.lane.b32.xlu0 %v1871, 112
      %v1988 = vpop.permute.xlu0 %1987
      %1989 = vrot.lane.b32.xlu0 %v1872, 112
      %v1990 = vpop.permute.xlu0 %1989
      %1991 = vrot.lane.b32.xlu0 %v1873, 112
      %v1992 = vpop.permute.xlu0 %1991
      %1993 = vrot.lane.b32.xlu0 %v1874, 112
      %v1994 = vpop.permute.xlu0 %1993
      %1995 = vrot.lane.b32.xlu0 %v1875, 112
      %v1996 = vpop.permute.xlu0 %1995
      %1997 = vrot.lane.b32.xlu0 %v1876, 112
      %v1998 = vpop.permute.xlu0 %1997
      %1999 = vrot.lane.b32.xlu0 %v1877, 112
      %v2000 = vpop.permute.xlu0 %1999
      %2001 = vrot.lane.b32.xlu0 %v1878, 112
      %v2002 = vpop.permute.xlu0 %2001
      %2003 = vrot.lane.b32.xlu0 %v1879, 112
      %v2004 = vpop.permute.xlu0 %2003
      %2005 = vrot.lane.b32.xlu0 %v1880, 112
      %v2006 = vpop.permute.xlu0 %2005
      %2007 = vrot.lane.b32.xlu0 %v1881, 112
      %v2008 = vpop.permute.xlu0 %2007
      %2009 = vrot.lane.b32.xlu0 %v1882, 112
      %v2010 = vpop.permute.xlu0 %2009
      %2011 = vrot.lane.b32.xlu0 %v1883, 112
      %v2012 = vpop.permute.xlu0 %2011
      %2013 = vrot.lane.b32.xlu0 %v1884, 112
      %v2014 = vpop.permute.xlu0 %2013
      %2015 = vrot.lane.b32.xlu0 %v1885, 112
      %v2016 = vpop.permute.xlu0 %2015
      %2017 = vrot.lane.b32.xlu0 %v1886, 112
      %v2018 = vpop.permute.xlu0 %2017
      %2019 = vrot.lane.b32.xlu0 %v1887, 112
      %v2020 = vpop.permute.xlu0 %2019
      %2021 = vrot.lane.b32.xlu0 %v1888, 112
      %v2022 = vpop.permute.xlu0 %2021
      %2023 = vrot.lane.b32.xlu0 %v1889, 112
      %v2024 = vpop.permute.xlu0 %2023
      %2025 = vrot.lane.b32.xlu0 %v1890, 112
      %v2026 = vpop.permute.xlu0 %2025
      %2027 = vrot.lane.b32.xlu0 %v1891, 112
      %v2028 = vpop.permute.xlu0 %2027
      %2029 = vrot.lane.b32.xlu0 %v1892, 112
      %v2030 = vpop.permute.xlu0 %2029
      %2031 = vrot.lane.b32.xlu0 %v1893, 112
      %v2032 = vpop.permute.xlu0 %2031
      %2033 = vrot.lane.b32.xlu0 %v1894, 112
      %v2034 = vpop.permute.xlu0 %2033
      %2035 = vrot.lane.b32.xlu0 %v1895, 112
      %v2036 = vpop.permute.xlu0 %2035
      %2037 = vrot.lane.b32.xlu0 %v1896, 112
      %v2038 = vpop.permute.xlu0 %2037
      %2039 = vrot.lane.b32.xlu0 %v1897, 112
      %v2040 = vpop.permute.xlu0 %2039
      %2041 = vrot.lane.b32.xlu0 %v1898, 112
      %v2042 = vpop.permute.xlu0 %2041
      %v2091 = vadd.f32 %v1803, %v1948
      %v2092 = vadd.f32 %v1804, %v1950
      %v2093 = vadd.f32 %v1805, %v1952
      %v2094 = vadd.f32 %v1806, %v1954
      %v2095 = vadd.f32 %v1807, %v1956
      %v2096 = vadd.f32 %v1808, %v1958
      %v2097 = vadd.f32 %v1809, %v1960
      %v2098 = vadd.f32 %v1810, %v1962
      %v2099 = vadd.f32 %v1811, %v1964
      %v2100 = vadd.f32 %v1812, %v1966
      %v2101 = vadd.f32 %v1813, %v1968
      %v2102 = vadd.f32 %v1814, %v1970
      %v2103 = vadd.f32 %v1815, %v1972
      %v2104 = vadd.f32 %v1816, %v1974
      %v2105 = vadd.f32 %v1817, %v1976
      %v2106 = vadd.f32 %v1818, %v1978
      %v2107 = vadd.f32 %v1819, %v1980
      %v2108 = vadd.f32 %v1820, %v1982
      %v2109 = vadd.f32 %v1821, %v1984
      %v2110 = vadd.f32 %v1822, %v1986
      %v2111 = vadd.f32 %v1823, %v1988
      %v2112 = vadd.f32 %v1824, %v1990
      %v2113 = vadd.f32 %v1825, %v1992
      %v2114 = vadd.f32 %v1826, %v1994
      %v2115 = vadd.f32 %v1827, %v1996
      %v2116 = vadd.f32 %v1828, %v1998
      %v2117 = vadd.f32 %v1829, %v2000
      %v2118 = vadd.f32 %v1830, %v2002
      %v2119 = vadd.f32 %v1831, %v2004
      %v2120 = vadd.f32 %v1832, %v2006
      %v2121 = vadd.f32 %v1833, %v2008
      %v2122 = vadd.f32 %v1834, %v2010
      %v2123 = vadd.f32 %v1835, %v2012
      %v2124 = vadd.f32 %v1836, %v2014
      %v2125 = vadd.f32 %v1837, %v2016
      %v2126 = vadd.f32 %v1838, %v2018
      %v2127 = vadd.f32 %v1839, %v2020
      %v2128 = vadd.f32 %v1840, %v2022
      %v2129 = vadd.f32 %v1841, %v2024
      %v2130 = vadd.f32 %v1842, %v2026
      %v2131 = vadd.f32 %v1843, %v2028
      %v2132 = vadd.f32 %v1844, %v2030
      %v2133 = vadd.f32 %v1845, %v2032
      %v2134 = vadd.f32 %v1846, %v2034
      %v2135 = vadd.f32 %v1847, %v2036
      %v2136 = vadd.f32 %v1848, %v2038
      %v2137 = vadd.f32 %v1849, %v2040
      %v2138 = vadd.f32 %v1850, %v2042
      %v2139 = vld [vmem:[#allocation3 + $0x197] sm:$0xff]
      %v2140 = vld [vmem:[#allocation3 + $0x19f] sm:$0xff]
      %v2141 = vld [vmem:[#allocation3 + $0x1a7] sm:$0xff]
      %2190 = vrot.lane.b32.xlu0 %v1470, 104
      %v2191 = vpop.permute.xlu0 %2190
      %2192 = vrot.lane.b32.xlu0 %v1471, 104
      %v2193 = vpop.permute.xlu0 %2192
      %2194 = vrot.lane.b32.xlu0 %v1472, 104
      %v2195 = vpop.permute.xlu0 %2194
      %2196 = vrot.lane.b32.xlu0 %v1473, 104
      %v2197 = vpop.permute.xlu0 %2196
      %2198 = vrot.lane.b32.xlu0 %v1474, 104
      %v2199 = vpop.permute.xlu0 %2198
      %2200 = vrot.lane.b32.xlu0 %v1475, 104
      %v2201 = vpop.permute.xlu0 %2200
      %2202 = vrot.lane.b32.xlu0 %v1476, 104
      %v2203 = vpop.permute.xlu0 %2202
      %2204 = vrot.lane.b32.xlu0 %v1477, 104
      %v2205 = vpop.permute.xlu0 %2204
      %2206 = vrot.lane.b32.xlu0 %v1478, 104
      %v2207 = vpop.permute.xlu0 %2206
      %2208 = vrot.lane.b32.xlu0 %v1479, 104
      %v2209 = vpop.permute.xlu0 %2208
      %2210 = vrot.lane.b32.xlu0 %v1480, 104
      %v2211 = vpop.permute.xlu0 %2210
      %2212 = vrot.lane.b32.xlu0 %v1481, 104
      %v2213 = vpop.permute.xlu0 %2212
      %2214 = vrot.lane.b32.xlu0 %v1482, 104
      %v2215 = vpop.permute.xlu0 %2214
      %2216 = vrot.lane.b32.xlu0 %v1483, 104
      %v2217 = vpop.permute.xlu0 %2216
      %2218 = vrot.lane.b32.xlu0 %v1484, 104
      %v2219 = vpop.permute.xlu0 %2218
      %2220 = vrot.lane.b32.xlu0 %v1485, 104
      %v2221 = vpop.permute.xlu0 %2220
      %2222 = vrot.lane.b32.xlu0 %v1486, 104
      %v2223 = vpop.permute.xlu0 %2222
      %2224 = vrot.lane.b32.xlu0 %v1487, 104
      %v2225 = vpop.permute.xlu0 %2224
      %2226 = vrot.lane.b32.xlu0 %v1488, 104
      %v2227 = vpop.permute.xlu0 %2226
      %2228 = vrot.lane.b32.xlu0 %v1489, 104
      %v2229 = vpop.permute.xlu0 %2228
      %2230 = vrot.lane.b32.xlu0 %v1490, 104
      %v2231 = vpop.permute.xlu0 %2230
      %2232 = vrot.lane.b32.xlu0 %v1491, 104
      %v2233 = vpop.permute.xlu0 %2232
      %2234 = vrot.lane.b32.xlu0 %v1492, 104
      %v2235 = vpop.permute.xlu0 %2234
      %2236 = vrot.lane.b32.xlu0 %v1493, 104
      %v2237 = vpop.permute.xlu0 %2236
      %2238 = vrot.lane.b32.xlu0 %v1494, 104
      %v2239 = vpop.permute.xlu0 %2238
      %2240 = vrot.lane.b32.xlu0 %v1495, 104
      %v2241 = vpop.permute.xlu0 %2240
      %2242 = vrot.lane.b32.xlu0 %v1496, 104
      %v2243 = vpop.permute.xlu0 %2242
      %2244 = vrot.lane.b32.xlu0 %v1497, 104
      %v2245 = vpop.permute.xlu0 %2244
      %2246 = vrot.lane.b32.xlu0 %v1498, 104
      %v2247 = vpop.permute.xlu0 %2246
      %2248 = vrot.lane.b32.xlu0 %v1499, 104
      %v2249 = vpop.permute.xlu0 %2248
      %2250 = vrot.lane.b32.xlu0 %v1500, 104
      %v2251 = vpop.permute.xlu0 %2250
      %2252 = vrot.lane.b32.xlu0 %v1501, 104
      %v2253 = vpop.permute.xlu0 %2252
      %2254 = vrot.lane.b32.xlu0 %v1502, 104
      %v2255 = vpop.permute.xlu0 %2254
      %2256 = vrot.lane.b32.xlu0 %v1503, 104
      %v2257 = vpop.permute.xlu0 %2256
      %2258 = vrot.lane.b32.xlu0 %v1504, 104
      %v2259 = vpop.permute.xlu0 %2258
      %2260 = vrot.lane.b32.xlu0 %v1505, 104
      %v2261 = vpop.permute.xlu0 %2260
      %2262 = vrot.lane.b32.xlu0 %v1506, 104
      %v2263 = vpop.permute.xlu0 %2262
      %2264 = vrot.lane.b32.xlu0 %v1507, 104
      %v2265 = vpop.permute.xlu0 %2264
      %2266 = vrot.lane.b32.xlu0 %v1508, 104
      %v2267 = vpop.permute.xlu0 %2266
      %2268 = vrot.lane.b32.xlu0 %v1509, 104
      %v2269 = vpop.permute.xlu0 %2268
      %2270 = vrot.lane.b32.xlu0 %v1510, 104
      %v2271 = vpop.permute.xlu0 %2270
      %2272 = vrot.lane.b32.xlu0 %v1511, 104
      %v2273 = vpop.permute.xlu0 %2272
      %2274 = vrot.lane.b32.xlu0 %v1512, 104
      %v2275 = vpop.permute.xlu0 %2274
      %2276 = vrot.lane.b32.xlu0 %v1513, 104
      %v2277 = vpop.permute.xlu0 %2276
      %2278 = vrot.lane.b32.xlu0 %v1514, 104
      %v2279 = vpop.permute.xlu0 %2278
      %2280 = vrot.lane.b32.xlu0 %v2139, 104
      %v2281 = vpop.permute.xlu0 %2280
      %2282 = vrot.lane.b32.xlu0 %v2140, 104
      %v2283 = vpop.permute.xlu0 %2282
      %2284 = vrot.lane.b32.xlu0 %v2141, 104
      %v2285 = vpop.permute.xlu0 %2284
      %v2334 = vadd.f32 %v2091, %v2191
      %v2335 = vadd.f32 %v2092, %v2193
      %v2336 = vadd.f32 %v2093, %v2195
      %v2337 = vadd.f32 %v2094, %v2197
      %v2338 = vadd.f32 %v2095, %v2199
      %v2339 = vadd.f32 %v2096, %v2201
      %v2340 = vadd.f32 %v2097, %v2203
      %v2341 = vadd.f32 %v2098, %v2205
      %v2342 = vadd.f32 %v2099, %v2207
      %v2343 = vadd.f32 %v2100, %v2209
      %v2344 = vadd.f32 %v2101, %v2211
      %v2345 = vadd.f32 %v2102, %v2213
      %v2346 = vadd.f32 %v2103, %v2215
      %v2347 = vadd.f32 %v2104, %v2217
      %v2348 = vadd.f32 %v2105, %v2219
      %v2349 = vadd.f32 %v2106, %v2221
      %v2350 = vadd.f32 %v2107, %v2223
      %v2351 = vadd.f32 %v2108, %v2225
      %v2352 = vadd.f32 %v2109, %v2227
      %v2353 = vadd.f32 %v2110, %v2229
      %v2354 = vadd.f32 %v2111, %v2231
      %v2355 = vadd.f32 %v2112, %v2233
      %v2356 = vadd.f32 %v2113, %v2235
      %v2357 = vadd.f32 %v2114, %v2237
      %v2358 = vadd.f32 %v2115, %v2239
      %v2359 = vadd.f32 %v2116, %v2241
      %v2360 = vadd.f32 %v2117, %v2243
      %v2361 = vadd.f32 %v2118, %v2245
      %v2362 = vadd.f32 %v2119, %v2247
      %v2363 = vadd.f32 %v2120, %v2249
      %v2364 = vadd.f32 %v2121, %v2251
      %v2365 = vadd.f32 %v2122, %v2253
      %v2366 = vadd.f32 %v2123, %v2255
      %v2367 = vadd.f32 %v2124, %v2257
      %v2368 = vadd.f32 %v2125, %v2259
      %v2369 = vadd.f32 %v2126, %v2261
      %v2370 = vadd.f32 %v2127, %v2263
      %v2371 = vadd.f32 %v2128, %v2265
      %v2372 = vadd.f32 %v2129, %v2267
      %v2373 = vadd.f32 %v2130, %v2269
      %v2374 = vadd.f32 %v2131, %v2271
      %v2375 = vadd.f32 %v2132, %v2273
      %v2376 = vadd.f32 %v2133, %v2275
      %v2377 = vadd.f32 %v2134, %v2277
      %v2378 = vadd.f32 %v2135, %v2279
      %v2379 = vadd.f32 %v2136, %v2281
      %v2380 = vadd.f32 %v2137, %v2283
      %v2381 = vadd.f32 %v2138, %v2285
      %v2382 = vld [vmem:[#allocation3 + $0x198] sm:$0xff]
      %v2383 = vld [vmem:[#allocation3 + $0x1a0] sm:$0xff]
      %v2384 = vld [vmem:[#allocation3 + $0x1a8] sm:$0xff]
      %2388 = vrot.lane.b32.xlu0 %v1566, 96
      %v2389 = vpop.permute.xlu0 %2388
      %2390 = vrot.lane.b32.xlu0 %v1567, 96
      %v2391 = vpop.permute.xlu0 %2390
      %2392 = vrot.lane.b32.xlu0 %v1568, 96
      %v2393 = vpop.permute.xlu0 %2392
      %2394 = vrot.lane.b32.xlu0 %v1569, 96
      %v2395 = vpop.permute.xlu0 %2394
      %2396 = vrot.lane.b32.xlu0 %v1570, 96
      %v2397 = vpop.permute.xlu0 %2396
      %2398 = vrot.lane.b32.xlu0 %v1571, 96
      %v2399 = vpop.permute.xlu0 %2398
      %2400 = vrot.lane.b32.xlu0 %v1572, 96
      %v2401 = vpop.permute.xlu0 %2400
      %2402 = vrot.lane.b32.xlu0 %v1573, 96
      %v2403 = vpop.permute.xlu0 %2402
      %2404 = vrot.lane.b32.xlu0 %v1574, 96
      %v2405 = vpop.permute.xlu0 %2404
      %2406 = vrot.lane.b32.xlu0 %v1575, 96
      %v2407 = vpop.permute.xlu0 %2406
      %2408 = vrot.lane.b32.xlu0 %v1576, 96
      %v2409 = vpop.permute.xlu0 %2408
      %2410 = vrot.lane.b32.xlu0 %v1577, 96
      %v2411 = vpop.permute.xlu0 %2410
      %2412 = vrot.lane.b32.xlu0 %v1578, 96
      %v2413 = vpop.permute.xlu0 %2412
      %2414 = vrot.lane.b32.xlu0 %v1579, 96
      %v2415 = vpop.permute.xlu0 %2414
      %2416 = vrot.lane.b32.xlu0 %v1580, 96
      %v2417 = vpop.permute.xlu0 %2416
      %2418 = vrot.lane.b32.xlu0 %v1581, 96
      %v2419 = vpop.permute.xlu0 %2418
      %2420 = vrot.lane.b32.xlu0 %v1582, 96
      %v2421 = vpop.permute.xlu0 %2420
      %2422 = vrot.lane.b32.xlu0 %v1583, 96
      %v2423 = vpop.permute.xlu0 %2422
      %2424 = vrot.lane.b32.xlu0 %v1584, 96
      %v2425 = vpop.permute.xlu0 %2424
      %2426 = vrot.lane.b32.xlu0 %v1585, 96
      %v2427 = vpop.permute.xlu0 %2426
      %2428 = vrot.lane.b32.xlu0 %v1586, 96
      %v2429 = vpop.permute.xlu0 %2428
      %2430 = vrot.lane.b32.xlu0 %v1587, 96
      %v2431 = vpop.permute.xlu0 %2430
      %2432 = vrot.lane.b32.xlu0 %v1588, 96
      %v2433 = vpop.permute.xlu0 %2432
      %2434 = vrot.lane.b32.xlu0 %v1589, 96
      %v2435 = vpop.permute.xlu0 %2434
      %2436 = vrot.lane.b32.xlu0 %v1590, 96
      %v2437 = vpop.permute.xlu0 %2436
      %2438 = vrot.lane.b32.xlu0 %v1591, 96
      %v2439 = vpop.permute.xlu0 %2438
      %2440 = vrot.lane.b32.xlu0 %v1592, 96
      %v2441 = vpop.permute.xlu0 %2440
      %2442 = vrot.lane.b32.xlu0 %v1593, 96
      %v2443 = vpop.permute.xlu0 %2442
      %2444 = vrot.lane.b32.xlu0 %v1594, 96
      %v2445 = vpop.permute.xlu0 %2444
      %2446 = vrot.lane.b32.xlu0 %v1595, 96
      %v2447 = vpop.permute.xlu0 %2446
      %2448 = vrot.lane.b32.xlu0 %v1596, 96
      %v2449 = vpop.permute.xlu0 %2448
      %2450 = vrot.lane.b32.xlu0 %v1597, 96
      %v2451 = vpop.permute.xlu0 %2450
      %2452 = vrot.lane.b32.xlu0 %v1598, 96
      %v2453 = vpop.permute.xlu0 %2452
      %2454 = vrot.lane.b32.xlu0 %v1599, 96
      %v2455 = vpop.permute.xlu0 %2454
      %2456 = vrot.lane.b32.xlu0 %v1600, 96
      %v2457 = vpop.permute.xlu0 %2456
      %2458 = vrot.lane.b32.xlu0 %v1601, 96
      %v2459 = vpop.permute.xlu0 %2458
      %2460 = vrot.lane.b32.xlu0 %v1602, 96
      %v2461 = vpop.permute.xlu0 %2460
      %2462 = vrot.lane.b32.xlu0 %v1603, 96
      %v2463 = vpop.permute.xlu0 %2462
      %2464 = vrot.lane.b32.xlu0 %v1604, 96
      %v2465 = vpop.permute.xlu0 %2464
      %2466 = vrot.lane.b32.xlu0 %v1605, 96
      %v2467 = vpop.permute.xlu0 %2466
      %2468 = vrot.lane.b32.xlu0 %v1606, 96
      %v2469 = vpop.permute.xlu0 %2468
      %2470 = vrot.lane.b32.xlu0 %v1607, 96
      %v2471 = vpop.permute.xlu0 %2470
      %2472 = vrot.lane.b32.xlu0 %v1608, 96
      %v2473 = vpop.permute.xlu0 %2472
      %2474 = vrot.lane.b32.xlu0 %v1609, 96
      %v2475 = vpop.permute.xlu0 %2474
      %2476 = vrot.lane.b32.xlu0 %v1610, 96
      %v2477 = vpop.permute.xlu0 %2476
      %2478 = vrot.lane.b32.xlu0 %v2382, 96
      %v2479 = vpop.permute.xlu0 %2478
      %2480 = vrot.lane.b32.xlu0 %v2383, 96
      %v2481 = vpop.permute.xlu0 %2480
      %2482 = vrot.lane.b32.xlu0 %v2384, 96
      %v2483 = vpop.permute.xlu0 %2482
      %v2532 = vadd.f32 %v2334, %v2389
      %v2533 = vadd.f32 %v2335, %v2391
      %v2534 = vadd.f32 %v2336, %v2393
      %v2535 = vadd.f32 %v2337, %v2395
      %v2536 = vadd.f32 %v2338, %v2397
      %v2537 = vadd.f32 %v2339, %v2399
      %v2538 = vadd.f32 %v2340, %v2401
      %v2539 = vadd.f32 %v2341, %v2403
      %v2540 = vadd.f32 %v2342, %v2405
      %v2541 = vadd.f32 %v2343, %v2407
      %v2542 = vadd.f32 %v2344, %v2409
      %v2543 = vadd.f32 %v2345, %v2411
      %v2544 = vadd.f32 %v2346, %v2413
      %v2545 = vadd.f32 %v2347, %v2415
      %v2546 = vadd.f32 %v2348, %v2417
      %v2547 = vadd.f32 %v2349, %v2419
      %v2548 = vadd.f32 %v2350, %v2421
      %v2549 = vadd.f32 %v2351, %v2423
      %v2550 = vadd.f32 %v2352, %v2425
      %v2551 = vadd.f32 %v2353, %v2427
      %v2552 = vadd.f32 %v2354, %v2429
      %v2553 = vadd.f32 %v2355, %v2431
      %v2554 = vadd.f32 %v2356, %v2433
      %v2555 = vadd.f32 %v2357, %v2435
      %v2556 = vadd.f32 %v2358, %v2437
      %v2557 = vadd.f32 %v2359, %v2439
      %v2558 = vadd.f32 %v2360, %v2441
      %v2559 = vadd.f32 %v2361, %v2443
      %v2560 = vadd.f32 %v2362, %v2445
      %v2561 = vadd.f32 %v2363, %v2447
      %v2562 = vadd.f32 %v2364, %v2449
      %v2563 = vadd.f32 %v2365, %v2451
      %v2564 = vadd.f32 %v2366, %v2453
      %v2565 = vadd.f32 %v2367, %v2455
      %v2566 = vadd.f32 %v2368, %v2457
      %v2567 = vadd.f32 %v2369, %v2459
      %v2568 = vadd.f32 %v2370, %v2461
      %v2569 = vadd.f32 %v2371, %v2463
      %v2570 = vadd.f32 %v2372, %v2465
      %v2571 = vadd.f32 %v2373, %v2467
      %v2572 = vadd.f32 %v2374, %v2469
      %v2573 = vadd.f32 %v2375, %v2471
      %v2574 = vadd.f32 %v2376, %v2473
      %v2575 = vadd.f32 %v2377, %v2475
      %v2576 = vadd.f32 %v2378, %v2477
      %v2577 = vadd.f32 %v2379, %v2479
      %v2578 = vadd.f32 %v2380, %v2481
      %v2579 = vadd.f32 %v2381, %v2483
      %v2580 = vld [vmem:[#allocation3 + $0x199] sm:$0xff]
      %v2581 = vld [vmem:[#allocation3 + $0x1a1] sm:$0xff]
      %v2582 = vld [vmem:[#allocation3 + $0x1a9] sm:$0xff]
      %2586 = vrot.lane.b32.xlu0 %v1854, 88
      %v2587 = vpop.permute.xlu0 %2586
      %2588 = vrot.lane.b32.xlu0 %v1855, 88
      %v2589 = vpop.permute.xlu0 %2588
      %2590 = vrot.lane.b32.xlu0 %v1856, 88
      %v2591 = vpop.permute.xlu0 %2590
      %2592 = vrot.lane.b32.xlu0 %v1857, 88
      %v2593 = vpop.permute.xlu0 %2592
      %2594 = vrot.lane.b32.xlu0 %v1858, 88
      %v2595 = vpop.permute.xlu0 %2594
      %2596 = vrot.lane.b32.xlu0 %v1859, 88
      %v2597 = vpop.permute.xlu0 %2596
      %2598 = vrot.lane.b32.xlu0 %v1860, 88
      %v2599 = vpop.permute.xlu0 %2598
      %2600 = vrot.lane.b32.xlu0 %v1861, 88
      %v2601 = vpop.permute.xlu0 %2600
      %2602 = vrot.lane.b32.xlu0 %v1862, 88
      %v2603 = vpop.permute.xlu0 %2602
      %2604 = vrot.lane.b32.xlu0 %v1863, 88
      %v2605 = vpop.permute.xlu0 %2604
      %2606 = vrot.lane.b32.xlu0 %v1864, 88
      %v2607 = vpop.permute.xlu0 %2606
      %2608 = vrot.lane.b32.xlu0 %v1865, 88
      %v2609 = vpop.permute.xlu0 %2608
      %2610 = vrot.lane.b32.xlu0 %v1866, 88
      %v2611 = vpop.permute.xlu0 %2610
      %2612 = vrot.lane.b32.xlu0 %v1867, 88
      %v2613 = vpop.permute.xlu0 %2612
      %2614 = vrot.lane.b32.xlu0 %v1868, 88
      %v2615 = vpop.permute.xlu0 %2614
      %2616 = vrot.lane.b32.xlu0 %v1869, 88
      %v2617 = vpop.permute.xlu0 %2616
      %2618 = vrot.lane.b32.xlu0 %v1870, 88
      %v2619 = vpop.permute.xlu0 %2618
      %2620 = vrot.lane.b32.xlu0 %v1871, 88
      %v2621 = vpop.permute.xlu0 %2620
      %2622 = vrot.lane.b32.xlu0 %v1872, 88
      %v2623 = vpop.permute.xlu0 %2622
      %2624 = vrot.lane.b32.xlu0 %v1873, 88
      %v2625 = vpop.permute.xlu0 %2624
      %2626 = vrot.lane.b32.xlu0 %v1874, 88
      %v2627 = vpop.permute.xlu0 %2626
      %2628 = vrot.lane.b32.xlu0 %v1875, 88
      %v2629 = vpop.permute.xlu0 %2628
      %2630 = vrot.lane.b32.xlu0 %v1876, 88
      %v2631 = vpop.permute.xlu0 %2630
      %2632 = vrot.lane.b32.xlu0 %v1877, 88
      %v2633 = vpop.permute.xlu0 %2632
      %2634 = vrot.lane.b32.xlu0 %v1878, 88
      %v2635 = vpop.permute.xlu0 %2634
      %2636 = vrot.lane.b32.xlu0 %v1879, 88
      %v2637 = vpop.permute.xlu0 %2636
      %2638 = vrot.lane.b32.xlu0 %v1880, 88
      %v2639 = vpop.permute.xlu0 %2638
      %2640 = vrot.lane.b32.xlu0 %v1881, 88
      %v2641 = vpop.permute.xlu0 %2640
      %2642 = vrot.lane.b32.xlu0 %v1882, 88
      %v2643 = vpop.permute.xlu0 %2642
      %2644 = vrot.lane.b32.xlu0 %v1883, 88
      %v2645 = vpop.permute.xlu0 %2644
      %2646 = vrot.lane.b32.xlu0 %v1884, 88
      %v2647 = vpop.permute.xlu0 %2646
      %2648 = vrot.lane.b32.xlu0 %v1885, 88
      %v2649 = vpop.permute.xlu0 %2648
      %2650 = vrot.lane.b32.xlu0 %v1886, 88
      %v2651 = vpop.permute.xlu0 %2650
      %2652 = vrot.lane.b32.xlu0 %v1887, 88
      %v2653 = vpop.permute.xlu0 %2652
      %2654 = vrot.lane.b32.xlu0 %v1888, 88
      %v2655 = vpop.permute.xlu0 %2654
      %2656 = vrot.lane.b32.xlu0 %v1889, 88
      %v2657 = vpop.permute.xlu0 %2656
      %2658 = vrot.lane.b32.xlu0 %v1890, 88
      %v2659 = vpop.permute.xlu0 %2658
      %2660 = vrot.lane.b32.xlu0 %v1891, 88
      %v2661 = vpop.permute.xlu0 %2660
      %2662 = vrot.lane.b32.xlu0 %v1892, 88
      %v2663 = vpop.permute.xlu0 %2662
      %2664 = vrot.lane.b32.xlu0 %v1893, 88
      %v2665 = vpop.permute.xlu0 %2664
      %2666 = vrot.lane.b32.xlu0 %v1894, 88
      %v2667 = vpop.permute.xlu0 %2666
      %2668 = vrot.lane.b32.xlu0 %v1895, 88
      %v2669 = vpop.permute.xlu0 %2668
      %2670 = vrot.lane.b32.xlu0 %v1896, 88
      %v2671 = vpop.permute.xlu0 %2670
      %2672 = vrot.lane.b32.xlu0 %v1897, 88
      %v2673 = vpop.permute.xlu0 %2672
      %2674 = vrot.lane.b32.xlu0 %v1898, 88
      %v2675 = vpop.permute.xlu0 %2674
      %2676 = vrot.lane.b32.xlu0 %v2580, 88
      %v2677 = vpop.permute.xlu0 %2676
      %2678 = vrot.lane.b32.xlu0 %v2581, 88
      %v2679 = vpop.permute.xlu0 %2678
      %2680 = vrot.lane.b32.xlu0 %v2582, 88
      %v2681 = vpop.permute.xlu0 %2680
      %v2730 = vadd.f32 %v2532, %v2587
      %v2731 = vadd.f32 %v2533, %v2589
      %v2732 = vadd.f32 %v2534, %v2591
      %v2733 = vadd.f32 %v2535, %v2593
      %v2734 = vadd.f32 %v2536, %v2595
      %v2735 = vadd.f32 %v2537, %v2597
      %v2736 = vadd.f32 %v2538, %v2599
      %v2737 = vadd.f32 %v2539, %v2601
      %v2738 = vadd.f32 %v2540, %v2603
      %v2739 = vadd.f32 %v2541, %v2605
      %v2740 = vadd.f32 %v2542, %v2607
      %v2741 = vadd.f32 %v2543, %v2609
      %v2742 = vadd.f32 %v2544, %v2611
      %v2743 = vadd.f32 %v2545, %v2613
      %v2744 = vadd.f32 %v2546, %v2615
      %v2745 = vadd.f32 %v2547, %v2617
      %v2746 = vadd.f32 %v2548, %v2619
      %v2747 = vadd.f32 %v2549, %v2621
      %v2748 = vadd.f32 %v2550, %v2623
      %v2749 = vadd.f32 %v2551, %v2625
      %v2750 = vadd.f32 %v2552, %v2627
      %v2751 = vadd.f32 %v2553, %v2629
      %v2752 = vadd.f32 %v2554, %v2631
      %v2753 = vadd.f32 %v2555, %v2633
      %v2754 = vadd.f32 %v2556, %v2635
      %v2755 = vadd.f32 %v2557, %v2637
      %v2756 = vadd.f32 %v2558, %v2639
      %v2757 = vadd.f32 %v2559, %v2641
      %v2758 = vadd.f32 %v2560, %v2643
      %v2759 = vadd.f32 %v2561, %v2645
      %v2760 = vadd.f32 %v2562, %v2647
      %v2761 = vadd.f32 %v2563, %v2649
      %v2762 = vadd.f32 %v2564, %v2651
      %v2763 = vadd.f32 %v2565, %v2653
      %v2764 = vadd.f32 %v2566, %v2655
      %v2765 = vadd.f32 %v2567, %v2657
      %v2766 = vadd.f32 %v2568, %v2659
      %v2767 = vadd.f32 %v2569, %v2661
      %v2768 = vadd.f32 %v2570, %v2663
      %v2769 = vadd.f32 %v2571, %v2665
      %v2770 = vadd.f32 %v2572, %v2667
      %v2771 = vadd.f32 %v2573, %v2669
      %v2772 = vadd.f32 %v2574, %v2671
      %v2773 = vadd.f32 %v2575, %v2673
      %v2774 = vadd.f32 %v2576, %v2675
      %v2775 = vadd.f32 %v2577, %v2677
      %v2776 = vadd.f32 %v2578, %v2679
      %v2777 = vadd.f32 %v2579, %v2681
      %v2778 = vld [vmem:[#allocation3 + $0x1af] sm:$0xff]
      %v2779 = vld [vmem:[#allocation3 + $0x1b7] sm:$0xff]
      %v2780 = vld [vmem:[#allocation3 + $0x1bf] sm:$0xff]
      %2784 = vrot.lane.b32.xlu0 %v1473, 80
      %v2785 = vpop.permute.xlu0 %2784
      %2786 = vrot.lane.b32.xlu0 %v1474, 80
      %v2787 = vpop.permute.xlu0 %2786
      %2788 = vrot.lane.b32.xlu0 %v1475, 80
      %v2789 = vpop.permute.xlu0 %2788
      %2790 = vrot.lane.b32.xlu0 %v1476, 80
      %v2791 = vpop.permute.xlu0 %2790
      %2792 = vrot.lane.b32.xlu0 %v1477, 80
      %v2793 = vpop.permute.xlu0 %2792
      %2794 = vrot.lane.b32.xlu0 %v1478, 80
      %v2795 = vpop.permute.xlu0 %2794
      %2796 = vrot.lane.b32.xlu0 %v1479, 80
      %v2797 = vpop.permute.xlu0 %2796
      %2798 = vrot.lane.b32.xlu0 %v1480, 80
      %v2799 = vpop.permute.xlu0 %2798
      %2800 = vrot.lane.b32.xlu0 %v1481, 80
      %v2801 = vpop.permute.xlu0 %2800
      %2802 = vrot.lane.b32.xlu0 %v1482, 80
      %v2803 = vpop.permute.xlu0 %2802
      %2804 = vrot.lane.b32.xlu0 %v1483, 80
      %v2805 = vpop.permute.xlu0 %2804
      %2806 = vrot.lane.b32.xlu0 %v1484, 80
      %v2807 = vpop.permute.xlu0 %2806
      %2808 = vrot.lane.b32.xlu0 %v1485, 80
      %v2809 = vpop.permute.xlu0 %2808
      %2810 = vrot.lane.b32.xlu0 %v1486, 80
      %v2811 = vpop.permute.xlu0 %2810
      %2812 = vrot.lane.b32.xlu0 %v1487, 80
      %v2813 = vpop.permute.xlu0 %2812
      %2814 = vrot.lane.b32.xlu0 %v1488, 80
      %v2815 = vpop.permute.xlu0 %2814
      %2816 = vrot.lane.b32.xlu0 %v1489, 80
      %v2817 = vpop.permute.xlu0 %2816
      %2818 = vrot.lane.b32.xlu0 %v1490, 80
      %v2819 = vpop.permute.xlu0 %2818
      %2820 = vrot.lane.b32.xlu0 %v1491, 80
      %v2821 = vpop.permute.xlu0 %2820
      %2822 = vrot.lane.b32.xlu0 %v1492, 80
      %v2823 = vpop.permute.xlu0 %2822
      %2824 = vrot.lane.b32.xlu0 %v1493, 80
      %v2825 = vpop.permute.xlu0 %2824
      %2826 = vrot.lane.b32.xlu0 %v1494, 80
      %v2827 = vpop.permute.xlu0 %2826
      %2828 = vrot.lane.b32.xlu0 %v1495, 80
      %v2829 = vpop.permute.xlu0 %2828
      %2830 = vrot.lane.b32.xlu0 %v1496, 80
      %v2831 = vpop.permute.xlu0 %2830
      %2832 = vrot.lane.b32.xlu0 %v1497, 80
      %v2833 = vpop.permute.xlu0 %2832
      %2834 = vrot.lane.b32.xlu0 %v1498, 80
      %v2835 = vpop.permute.xlu0 %2834
      %2836 = vrot.lane.b32.xlu0 %v1499, 80
      %v2837 = vpop.permute.xlu0 %2836
      %2838 = vrot.lane.b32.xlu0 %v1500, 80
      %v2839 = vpop.permute.xlu0 %2838
      %2840 = vrot.lane.b32.xlu0 %v1501, 80
      %v2841 = vpop.permute.xlu0 %2840
      %2842 = vrot.lane.b32.xlu0 %v1502, 80
      %v2843 = vpop.permute.xlu0 %2842
      %2844 = vrot.lane.b32.xlu0 %v1503, 80
      %v2845 = vpop.permute.xlu0 %2844
      %2846 = vrot.lane.b32.xlu0 %v1504, 80
      %v2847 = vpop.permute.xlu0 %2846
      %2848 = vrot.lane.b32.xlu0 %v1505, 80
      %v2849 = vpop.permute.xlu0 %2848
      %2850 = vrot.lane.b32.xlu0 %v1506, 80
      %v2851 = vpop.permute.xlu0 %2850
      %2852 = vrot.lane.b32.xlu0 %v1507, 80
      %v2853 = vpop.permute.xlu0 %2852
      %2854 = vrot.lane.b32.xlu0 %v1508, 80
      %v2855 = vpop.permute.xlu0 %2854
      %2856 = vrot.lane.b32.xlu0 %v1509, 80
      %v2857 = vpop.permute.xlu0 %2856
      %2858 = vrot.lane.b32.xlu0 %v1510, 80
      %v2859 = vpop.permute.xlu0 %2858
      %2860 = vrot.lane.b32.xlu0 %v1511, 80
      %v2861 = vpop.permute.xlu0 %2860
      %2862 = vrot.lane.b32.xlu0 %v1512, 80
      %v2863 = vpop.permute.xlu0 %2862
      %2864 = vrot.lane.b32.xlu0 %v1513, 80
      %v2865 = vpop.permute.xlu0 %2864
      %2866 = vrot.lane.b32.xlu0 %v1514, 80
      %v2867 = vpop.permute.xlu0 %2866
      %2868 = vrot.lane.b32.xlu0 %v2139, 80
      %v2869 = vpop.permute.xlu0 %2868
      %2870 = vrot.lane.b32.xlu0 %v2140, 80
      %v2871 = vpop.permute.xlu0 %2870
      %2872 = vrot.lane.b32.xlu0 %v2141, 80
      %v2873 = vpop.permute.xlu0 %2872
      %2874 = vrot.lane.b32.xlu0 %v2778, 80
      %v2875 = vpop.permute.xlu0 %2874
      %2876 = vrot.lane.b32.xlu0 %v2779, 80
      %v2877 = vpop.permute.xlu0 %2876
      %2878 = vrot.lane.b32.xlu0 %v2780, 80
      %v2879 = vpop.permute.xlu0 %2878
      %v2928 = vadd.f32 %v2730, %v2785
      %v2929 = vadd.f32 %v2731, %v2787
      %v2930 = vadd.f32 %v2732, %v2789
      %v2931 = vadd.f32 %v2733, %v2791
      %v2932 = vadd.f32 %v2734, %v2793
      %v2933 = vadd.f32 %v2735, %v2795
      %v2934 = vadd.f32 %v2736, %v2797
      %v2935 = vadd.f32 %v2737, %v2799
      %v2936 = vadd.f32 %v2738, %v2801
      %v2937 = vadd.f32 %v2739, %v2803
      %v2938 = vadd.f32 %v2740, %v2805
      %v2939 = vadd.f32 %v2741, %v2807
      %v2940 = vadd.f32 %v2742, %v2809
      %v2941 = vadd.f32 %v2743, %v2811
      %v2942 = vadd.f32 %v2744, %v2813
      %v2943 = vadd.f32 %v2745, %v2815
      %v2944 = vadd.f32 %v2746, %v2817
      %v2945 = vadd.f32 %v2747, %v2819
      %v2946 = vadd.f32 %v2748, %v2821
      %v2947 = vadd.f32 %v2749, %v2823
      %v2948 = vadd.f32 %v2750, %v2825
      %v2949 = vadd.f32 %v2751, %v2827
      %v2950 = vadd.f32 %v2752, %v2829
      %v2951 = vadd.f32 %v2753, %v2831
      %v2952 = vadd.f32 %v2754, %v2833
      %v2953 = vadd.f32 %v2755, %v2835
      %v2954 = vadd.f32 %v2756, %v2837
      %v2955 = vadd.f32 %v2757, %v2839
      %v2956 = vadd.f32 %v2758, %v2841
      %v2957 = vadd.f32 %v2759, %v2843
      %v2958 = vadd.f32 %v2760, %v2845
      %v2959 = vadd.f32 %v2761, %v2847
      %v2960 = vadd.f32 %v2762, %v2849
      %v2961 = vadd.f32 %v2763, %v2851
      %v2962 = vadd.f32 %v2764, %v2853
      %v2963 = vadd.f32 %v2765, %v2855
      %v2964 = vadd.f32 %v2766, %v2857
      %v2965 = vadd.f32 %v2767, %v2859
      %v2966 = vadd.f32 %v2768, %v2861
      %v2967 = vadd.f32 %v2769, %v2863
      %v2968 = vadd.f32 %v2770, %v2865
      %v2969 = vadd.f32 %v2771, %v2867
      %v2970 = vadd.f32 %v2772, %v2869
      %v2971 = vadd.f32 %v2773, %v2871
      %v2972 = vadd.f32 %v2774, %v2873
      %v2973 = vadd.f32 %v2775, %v2875
      %v2974 = vadd.f32 %v2776, %v2877
      %v2975 = vadd.f32 %v2777, %v2879
      %v2976 = vld [vmem:[#allocation3 + $0x1b0] sm:$0xff]
      %v2977 = vld [vmem:[#allocation3 + $0x1b8] sm:$0xff]
      %v2978 = vld [vmem:[#allocation3 + $0x1c0] sm:$0xff]
      %2982 = vrot.lane.b32.xlu0 %v1569, 72
      %v2983 = vpop.permute.xlu0 %2982
      %2984 = vrot.lane.b32.xlu0 %v1570, 72
      %v2985 = vpop.permute.xlu0 %2984
      %2986 = vrot.lane.b32.xlu0 %v1571, 72
      %v2987 = vpop.permute.xlu0 %2986
      %2988 = vrot.lane.b32.xlu0 %v1572, 72
      %v2989 = vpop.permute.xlu0 %2988
      %2990 = vrot.lane.b32.xlu0 %v1573, 72
      %v2991 = vpop.permute.xlu0 %2990
      %2992 = vrot.lane.b32.xlu0 %v1574, 72
      %v2993 = vpop.permute.xlu0 %2992
      %2994 = vrot.lane.b32.xlu0 %v1575, 72
      %v2995 = vpop.permute.xlu0 %2994
      %2996 = vrot.lane.b32.xlu0 %v1576, 72
      %v2997 = vpop.permute.xlu0 %2996
      %2998 = vrot.lane.b32.xlu0 %v1577, 72
      %v2999 = vpop.permute.xlu0 %2998
      %3000 = vrot.lane.b32.xlu0 %v1578, 72
      %v3001 = vpop.permute.xlu0 %3000
      %3002 = vrot.lane.b32.xlu0 %v1579, 72
      %v3003 = vpop.permute.xlu0 %3002
      %3004 = vrot.lane.b32.xlu0 %v1580, 72
      %v3005 = vpop.permute.xlu0 %3004
      %3006 = vrot.lane.b32.xlu0 %v1581, 72
      %v3007 = vpop.permute.xlu0 %3006
      %3008 = vrot.lane.b32.xlu0 %v1582, 72
      %v3009 = vpop.permute.xlu0 %3008
      %3010 = vrot.lane.b32.xlu0 %v1583, 72
      %v3011 = vpop.permute.xlu0 %3010
      %3012 = vrot.lane.b32.xlu0 %v1584, 72
      %v3013 = vpop.permute.xlu0 %3012
      %3014 = vrot.lane.b32.xlu0 %v1585, 72
      %v3015 = vpop.permute.xlu0 %3014
      %3016 = vrot.lane.b32.xlu0 %v1586, 72
      %v3017 = vpop.permute.xlu0 %3016
      %3018 = vrot.lane.b32.xlu0 %v1587, 72
      %v3019 = vpop.permute.xlu0 %3018
      %3020 = vrot.lane.b32.xlu0 %v1588, 72
      %v3021 = vpop.permute.xlu0 %3020
      %3022 = vrot.lane.b32.xlu0 %v1589, 72
      %v3023 = vpop.permute.xlu0 %3022
      %3024 = vrot.lane.b32.xlu0 %v1590, 72
      %v3025 = vpop.permute.xlu0 %3024
      %3026 = vrot.lane.b32.xlu0 %v1591, 72
      %v3027 = vpop.permute.xlu0 %3026
      %3028 = vrot.lane.b32.xlu0 %v1592, 72
      %v3029 = vpop.permute.xlu0 %3028
      %3030 = vrot.lane.b32.xlu0 %v1593, 72
      %v3031 = vpop.permute.xlu0 %3030
      %3032 = vrot.lane.b32.xlu0 %v1594, 72
      %v3033 = vpop.permute.xlu0 %3032
      %3034 = vrot.lane.b32.xlu0 %v1595, 72
      %v3035 = vpop.permute.xlu0 %3034
      %3036 = vrot.lane.b32.xlu0 %v1596, 72
      %v3037 = vpop.permute.xlu0 %3036
      %3038 = vrot.lane.b32.xlu0 %v1597, 72
      %v3039 = vpop.permute.xlu0 %3038
      %3040 = vrot.lane.b32.xlu0 %v1598, 72
      %v3041 = vpop.permute.xlu0 %3040
      %3042 = vrot.lane.b32.xlu0 %v1599, 72
      %v3043 = vpop.permute.xlu0 %3042
      %3044 = vrot.lane.b32.xlu0 %v1600, 72
      %v3045 = vpop.permute.xlu0 %3044
      %3046 = vrot.lane.b32.xlu0 %v1601, 72
      %v3047 = vpop.permute.xlu0 %3046
      %3048 = vrot.lane.b32.xlu0 %v1602, 72
      %v3049 = vpop.permute.xlu0 %3048
      %3050 = vrot.lane.b32.xlu0 %v1603, 72
      %v3051 = vpop.permute.xlu0 %3050
      %3052 = vrot.lane.b32.xlu0 %v1604, 72
      %v3053 = vpop.permute.xlu0 %3052
      %3054 = vrot.lane.b32.xlu0 %v1605, 72
      %v3055 = vpop.permute.xlu0 %3054
      %3056 = vrot.lane.b32.xlu0 %v1606, 72
      %v3057 = vpop.permute.xlu0 %3056
      %3058 = vrot.lane.b32.xlu0 %v1607, 72
      %v3059 = vpop.permute.xlu0 %3058
      %3060 = vrot.lane.b32.xlu0 %v1608, 72
      %v3061 = vpop.permute.xlu0 %3060
      %3062 = vrot.lane.b32.xlu0 %v1609, 72
      %v3063 = vpop.permute.xlu0 %3062
      %3064 = vrot.lane.b32.xlu0 %v1610, 72
      %v3065 = vpop.permute.xlu0 %3064
      %3066 = vrot.lane.b32.xlu0 %v2382, 72
      %v3067 = vpop.permute.xlu0 %3066
      %3068 = vrot.lane.b32.xlu0 %v2383, 72
      %v3069 = vpop.permute.xlu0 %3068
      %3070 = vrot.lane.b32.xlu0 %v2384, 72
      %v3071 = vpop.permute.xlu0 %3070
      %3072 = vrot.lane.b32.xlu0 %v2976, 72
      %v3073 = vpop.permute.xlu0 %3072
      %3074 = vrot.lane.b32.xlu0 %v2977, 72
      %v3075 = vpop.permute.xlu0 %3074
      %3076 = vrot.lane.b32.xlu0 %v2978, 72
      %v3077 = vpop.permute.xlu0 %3076
      %v3126 = vadd.f32 %v2928, %v2983
      %v3127 = vadd.f32 %v2929, %v2985
      %v3128 = vadd.f32 %v2930, %v2987
      %v3129 = vadd.f32 %v2931, %v2989
      %v3130 = vadd.f32 %v2932, %v2991
      %v3131 = vadd.f32 %v2933, %v2993
      %v3132 = vadd.f32 %v2934, %v2995
      %v3133 = vadd.f32 %v2935, %v2997
      %v3134 = vadd.f32 %v2936, %v2999
      %v3135 = vadd.f32 %v2937, %v3001
      %v3136 = vadd.f32 %v2938, %v3003
      %v3137 = vadd.f32 %v2939, %v3005
      %v3138 = vadd.f32 %v2940, %v3007
      %v3139 = vadd.f32 %v2941, %v3009
      %v3140 = vadd.f32 %v2942, %v3011
      %v3141 = vadd.f32 %v2943, %v3013
      %v3142 = vadd.f32 %v2944, %v3015
      %v3143 = vadd.f32 %v2945, %v3017
      %v3144 = vadd.f32 %v2946, %v3019
      %v3145 = vadd.f32 %v2947, %v3021
      %v3146 = vadd.f32 %v2948, %v3023
      %v3147 = vadd.f32 %v2949, %v3025
      %v3148 = vadd.f32 %v2950, %v3027
      %v3149 = vadd.f32 %v2951, %v3029
      %v3150 = vadd.f32 %v2952, %v3031
      %v3151 = vadd.f32 %v2953, %v3033
      %v3152 = vadd.f32 %v2954, %v3035
      %v3153 = vadd.f32 %v2955, %v3037
      %v3154 = vadd.f32 %v2956, %v3039
      %v3155 = vadd.f32 %v2957, %v3041
      %v3156 = vadd.f32 %v2958, %v3043
      %v3157 = vadd.f32 %v2959, %v3045
      %v3158 = vadd.f32 %v2960, %v3047
      %v3159 = vadd.f32 %v2961, %v3049
      %v3160 = vadd.f32 %v2962, %v3051
      %v3161 = vadd.f32 %v2963, %v3053
      %v3162 = vadd.f32 %v2964, %v3055
      %v3163 = vadd.f32 %v2965, %v3057
      %v3164 = vadd.f32 %v2966, %v3059
      %v3165 = vadd.f32 %v2967, %v3061
      %v3166 = vadd.f32 %v2968, %v3063
      %v3167 = vadd.f32 %v2969, %v3065
      %v3168 = vadd.f32 %v2970, %v3067
      %v3169 = vadd.f32 %v2971, %v3069
      %v3170 = vadd.f32 %v2972, %v3071
      %v3171 = vadd.f32 %v2973, %v3073
      %v3172 = vadd.f32 %v2974, %v3075
      %v3173 = vadd.f32 %v2975, %v3077
      %v3174 = vld [vmem:[#allocation3 + $0x1b1] sm:$0xff]
      %v3175 = vld [vmem:[#allocation3 + $0x1b9] sm:$0xff]
      %v3176 = vld [vmem:[#allocation3 + $0x1c1] sm:$0xff]
      %3180 = vrot.lane.b32.xlu0 %v1857, 64
      %v3181 = vpop.permute.xlu0 %3180
      %3182 = vrot.lane.b32.xlu0 %v1858, 64
      %v3183 = vpop.permute.xlu0 %3182
      %3184 = vrot.lane.b32.xlu0 %v1859, 64
      %v3185 = vpop.permute.xlu0 %3184
      %3186 = vrot.lane.b32.xlu0 %v1860, 64
      %v3187 = vpop.permute.xlu0 %3186
      %3188 = vrot.lane.b32.xlu0 %v1861, 64
      %v3189 = vpop.permute.xlu0 %3188
      %3190 = vrot.lane.b32.xlu0 %v1862, 64
      %v3191 = vpop.permute.xlu0 %3190
      %3192 = vrot.lane.b32.xlu0 %v1863, 64
      %v3193 = vpop.permute.xlu0 %3192
      %3194 = vrot.lane.b32.xlu0 %v1864, 64
      %v3195 = vpop.permute.xlu0 %3194
      %3196 = vrot.lane.b32.xlu0 %v1865, 64
      %v3197 = vpop.permute.xlu0 %3196
      %3198 = vrot.lane.b32.xlu0 %v1866, 64
      %v3199 = vpop.permute.xlu0 %3198
      %3200 = vrot.lane.b32.xlu0 %v1867, 64
      %v3201 = vpop.permute.xlu0 %3200
      %3202 = vrot.lane.b32.xlu0 %v1868, 64
      %v3203 = vpop.permute.xlu0 %3202
      %3204 = vrot.lane.b32.xlu0 %v1869, 64
      %v3205 = vpop.permute.xlu0 %3204
      %3206 = vrot.lane.b32.xlu0 %v1870, 64
      %v3207 = vpop.permute.xlu0 %3206
      %3208 = vrot.lane.b32.xlu0 %v1871, 64
      %v3209 = vpop.permute.xlu0 %3208
      %3210 = vrot.lane.b32.xlu0 %v1872, 64
      %v3211 = vpop.permute.xlu0 %3210
      %3212 = vrot.lane.b32.xlu0 %v1873, 64
      %v3213 = vpop.permute.xlu0 %3212
      %3214 = vrot.lane.b32.xlu0 %v1874, 64
      %v3215 = vpop.permute.xlu0 %3214
      %3216 = vrot.lane.b32.xlu0 %v1875, 64
      %v3217 = vpop.permute.xlu0 %3216
      %3218 = vrot.lane.b32.xlu0 %v1876, 64
      %v3219 = vpop.permute.xlu0 %3218
      %3220 = vrot.lane.b32.xlu0 %v1877, 64
      %v3221 = vpop.permute.xlu0 %3220
      %3222 = vrot.lane.b32.xlu0 %v1878, 64
      %v3223 = vpop.permute.xlu0 %3222
      %3224 = vrot.lane.b32.xlu0 %v1879, 64
      %v3225 = vpop.permute.xlu0 %3224
      %3226 = vrot.lane.b32.xlu0 %v1880, 64
      %v3227 = vpop.permute.xlu0 %3226
      %3228 = vrot.lane.b32.xlu0 %v1881, 64
      %v3229 = vpop.permute.xlu0 %3228
      %3230 = vrot.lane.b32.xlu0 %v1882, 64
      %v3231 = vpop.permute.xlu0 %3230
      %3232 = vrot.lane.b32.xlu0 %v1883, 64
      %v3233 = vpop.permute.xlu0 %3232
      %3234 = vrot.lane.b32.xlu0 %v1884, 64
      %v3235 = vpop.permute.xlu0 %3234
      %3236 = vrot.lane.b32.xlu0 %v1885, 64
      %v3237 = vpop.permute.xlu0 %3236
      %3238 = vrot.lane.b32.xlu0 %v1886, 64
      %v3239 = vpop.permute.xlu0 %3238
      %3240 = vrot.lane.b32.xlu0 %v1887, 64
      %v3241 = vpop.permute.xlu0 %3240
      %3242 = vrot.lane.b32.xlu0 %v1888, 64
      %v3243 = vpop.permute.xlu0 %3242
      %3244 = vrot.lane.b32.xlu0 %v1889, 64
      %v3245 = vpop.permute.xlu0 %3244
      %3246 = vrot.lane.b32.xlu0 %v1890, 64
      %v3247 = vpop.permute.xlu0 %3246
      %3248 = vrot.lane.b32.xlu0 %v1891, 64
      %v3249 = vpop.permute.xlu0 %3248
      %3250 = vrot.lane.b32.xlu0 %v1892, 64
      %v3251 = vpop.permute.xlu0 %3250
      %3252 = vrot.lane.b32.xlu0 %v1893, 64
      %v3253 = vpop.permute.xlu0 %3252
      %3254 = vrot.lane.b32.xlu0 %v1894, 64
      %v3255 = vpop.permute.xlu0 %3254
      %3256 = vrot.lane.b32.xlu0 %v1895, 64
      %v3257 = vpop.permute.xlu0 %3256
      %3258 = vrot.lane.b32.xlu0 %v1896, 64
      %v3259 = vpop.permute.xlu0 %3258
      %3260 = vrot.lane.b32.xlu0 %v1897, 64
      %v3261 = vpop.permute.xlu0 %3260
      %3262 = vrot.lane.b32.xlu0 %v1898, 64
      %v3263 = vpop.permute.xlu0 %3262
      %3264 = vrot.lane.b32.xlu0 %v2580, 64
      %v3265 = vpop.permute.xlu0 %3264
      %3266 = vrot.lane.b32.xlu0 %v2581, 64
      %v3267 = vpop.permute.xlu0 %3266
      %3268 = vrot.lane.b32.xlu0 %v2582, 64
      %v3269 = vpop.permute.xlu0 %3268
      %3270 = vrot.lane.b32.xlu0 %v3174, 64
      %v3271 = vpop.permute.xlu0 %3270
      %3272 = vrot.lane.b32.xlu0 %v3175, 64
      %v3273 = vpop.permute.xlu0 %3272
      %3274 = vrot.lane.b32.xlu0 %v3176, 64
      %v3275 = vpop.permute.xlu0 %3274
      %v3324 = vadd.f32 %v3126, %v3181
      %v3325 = vadd.f32 %v3127, %v3183
      %v3326 = vadd.f32 %v3128, %v3185
      %v3327 = vadd.f32 %v3129, %v3187
      %v3328 = vadd.f32 %v3130, %v3189
      %v3329 = vadd.f32 %v3131, %v3191
      %v3330 = vadd.f32 %v3132, %v3193
      %v3331 = vadd.f32 %v3133, %v3195
      %v3332 = vadd.f32 %v3134, %v3197
      %v3333 = vadd.f32 %v3135, %v3199
      %v3334 = vadd.f32 %v3136, %v3201
      %v3335 = vadd.f32 %v3137, %v3203
      %v3336 = vadd.f32 %v3138, %v3205
      %v3337 = vadd.f32 %v3139, %v3207
      %v3338 = vadd.f32 %v3140, %v3209
      %v3339 = vadd.f32 %v3141, %v3211
      %v3340 = vadd.f32 %v3142, %v3213
      %v3341 = vadd.f32 %v3143, %v3215
      %v3342 = vadd.f32 %v3144, %v3217
      %v3343 = vadd.f32 %v3145, %v3219
      %v3344 = vadd.f32 %v3146, %v3221
      %v3345 = vadd.f32 %v3147, %v3223
      %v3346 = vadd.f32 %v3148, %v3225
      %v3347 = vadd.f32 %v3149, %v3227
      %v3348 = vadd.f32 %v3150, %v3229
      %v3349 = vadd.f32 %v3151, %v3231
      %v3350 = vadd.f32 %v3152, %v3233
      %v3351 = vadd.f32 %v3153, %v3235
      %v3352 = vadd.f32 %v3154, %v3237
      %v3353 = vadd.f32 %v3155, %v3239
      %v3354 = vadd.f32 %v3156, %v3241
      %v3355 = vadd.f32 %v3157, %v3243
      %v3356 = vadd.f32 %v3158, %v3245
      %v3357 = vadd.f32 %v3159, %v3247
      %v3358 = vadd.f32 %v3160, %v3249
      %v3359 = vadd.f32 %v3161, %v3251
      %v3360 = vadd.f32 %v3162, %v3253
      %v3361 = vadd.f32 %v3163, %v3255
      %v3362 = vadd.f32 %v3164, %v3257
      %v3363 = vadd.f32 %v3165, %v3259
      %v3364 = vadd.f32 %v3166, %v3261
      %v3365 = vadd.f32 %v3167, %v3263
      %v3366 = vadd.f32 %v3168, %v3265
      %v3367 = vadd.f32 %v3169, %v3267
      %v3368 = vadd.f32 %v3170, %v3269
      %v3369 = vadd.f32 %v3171, %v3271
      %v3370 = vadd.f32 %v3172, %v3273
      %v3371 = vadd.f32 %v3173, %v3275
      %3372 = vst.msk [vmem:[%s348] sm:$0xff] %vm541, %v3324
      %3373 = vst.msk [vmem:[%s348 + $0x8] sm:$0xff] %vm541, %v3325
      %3374 = vst.msk [vmem:[%s348 + $0x10] sm:$0xff] %vm541, %v3326
      %3375 = vst.msk [vmem:[%s348 + $0x18] sm:$0xff] %vm541, %v3327
      %3376 = vst.msk [vmem:[%s348 + $0x20] sm:$0xff] %vm541, %v3328
      %3377 = vst.msk [vmem:[%s348 + $0x28] sm:$0xff] %vm541, %v3329
      %3378 = vst.msk [vmem:[%s348 + $0x30] sm:$0xff] %vm541, %v3330
      %3379 = vst.msk [vmem:[%s348 + $0x38] sm:$0xff] %vm541, %v3331
      %3380 = vst.msk [vmem:[%s348 + $0x40] sm:$0xff] %vm541, %v3332
      %3381 = vst.msk [vmem:[%s348 + $0x48] sm:$0xff] %vm541, %v3333
      %3382 = vst.msk [vmem:[%s348 + $0x50] sm:$0xff] %vm541, %v3334
      %3383 = vst.msk [vmem:[%s348 + $0x58] sm:$0xff] %vm541, %v3335
      %3384 = vst.msk [vmem:[%s348 + $0x60] sm:$0xff] %vm541, %v3336
      %3385 = vst.msk [vmem:[%s348 + $0x68] sm:$0xff] %vm541, %v3337
      %3386 = vst.msk [vmem:[%s348 + $0x70] sm:$0xff] %vm541, %v3338
      %3387 = vst.msk [vmem:[%s348 + $0x78] sm:$0xff] %vm541, %v3339
      %3388 = vst.msk [vmem:[%s348 + $0x80] sm:$0xff] %vm541, %v3340
      %3389 = vst.msk [vmem:[%s348 + $0x88] sm:$0xff] %vm541, %v3341
      %3390 = vst.msk [vmem:[%s348 + $0x90] sm:$0xff] %vm541, %v3342
      %3391 = vst.msk [vmem:[%s348 + $0x98] sm:$0xff] %vm541, %v3343
      %3392 = vst.msk [vmem:[%s348 + $0xa0] sm:$0xff] %vm541, %v3344
      %3393 = vst.msk [vmem:[%s348 + $0xa8] sm:$0xff] %vm541, %v3345
      %3394 = vst.msk [vmem:[%s348 + $0xb0] sm:$0xff] %vm541, %v3346
      %3395 = vst.msk [vmem:[%s348 + $0xb8] sm:$0xff] %vm541, %v3347
      %3396 = vst.msk [vmem:[%s348 + $0xc0] sm:$0xff] %vm541, %v3348
      %3397 = vst.msk [vmem:[%s348 + $0xc8] sm:$0xff] %vm541, %v3349
      %3398 = vst.msk [vmem:[%s348 + $0xd0] sm:$0xff] %vm541, %v3350
      %3399 = vst.msk [vmem:[%s348 + $0xd8] sm:$0xff] %vm541, %v3351
      %3400 = vst.msk [vmem:[%s348 + $0xe0] sm:$0xff] %vm541, %v3352
      %3401 = vst.msk [vmem:[%s348 + $0xe8] sm:$0xff] %vm541, %v3353
      %3402 = vst.msk [vmem:[%s348 + $0xf0] sm:$0xff] %vm541, %v3354
      %3403 = vst.msk [vmem:[%s348 + $0xf8] sm:$0xff] %vm541, %v3355
      %3404 = vst.msk [vmem:[%s348 + $0x100] sm:$0xff] %vm541, %v3356
      %3405 = vst.msk [vmem:[%s348 + $0x108] sm:$0xff] %vm541, %v3357
      %3406 = vst.msk [vmem:[%s348 + $0x110] sm:$0xff] %vm541, %v3358
      %3407 = vst.msk [vmem:[%s348 + $0x118] sm:$0xff] %vm541, %v3359
      %3408 = vst.msk [vmem:[%s348 + $0x120] sm:$0xff] %vm541, %v3360
      %3409 = vst.msk [vmem:[%s348 + $0x128] sm:$0xff] %vm541, %v3361
      %3410 = vst.msk [vmem:[%s348 + $0x130] sm:$0xff] %vm541, %v3362
      %3411 = vst.msk [vmem:[%s348 + $0x138] sm:$0xff] %vm541, %v3363
      %3412 = vst.msk [vmem:[%s348 + $0x140] sm:$0xff] %vm541, %v3364
      %3413 = vst.msk [vmem:[%s348 + $0x148] sm:$0xff] %vm541, %v3365
      %3414 = vst.msk [vmem:[%s348 + $0x150] sm:$0xff] %vm541, %v3366
      %3415 = vst.msk [vmem:[%s348 + $0x158] sm:$0xff] %vm541, %v3367
      %3416 = vst.msk [vmem:[%s348 + $0x160] sm:$0xff] %vm541, %v3368
      %3417 = vst.msk [vmem:[%s348 + $0x168] sm:$0xff] %vm541, %v3369
      %3418 = vst.msk [vmem:[%s348 + $0x170] sm:$0xff] %vm541, %v3370
      %3419 = vst.msk [vmem:[%s348 + $0x178] sm:$0xff] %vm541, %v3371
      %p3420 = scmp.lt.s32.totalorder %s22, 1
      %s3421 = scalar_select %p3420, %s22, 1
      %p3422 = scmp.lt.s32.totalorder %s23, 0
      %s3423 = scalar_select %p3422, %s23, 0
      %s3424 = smul.addr %s3423, 48
      %s3425 = smul.addr %s3421, 48
      %s3426 = sadd.s32 %s3424, %s3425
      %s3427 = smul.addr %s3426, 8
      %s3428 = scalar_lea.vmem %s7, %s3427
      // Predicated region
      $region49: #{dense_layer_forward.1} parent=47 // pred_check
        %p3429 = pneg %p211
      $region50: #{dense_layer_forward.1} parent=47 // pred_check_branch
        %3431 = sbr.rel (%p3429) target = $region52
      $region51: #{dense_layer_forward.1} parent=47 // pred_region
        _
      $region52: #{dense_layer_forward.1} parent=47 // pred_fallthru
        _
    $region48: #{dense_layer_forward.1} parent=5 // pred_fallthru
      _
    %p3432 = scmp.le.s32.totalorder 2, %s13
    // Predicated region
    $region53: #{dense_layer_forward.1} parent=5 // pred_check
      %p3433 = pneg %p3432
    $region54: #{dense_layer_forward.1} parent=5 // pred_check_branch
      %3435 = sbr.rel (%p3433) target = $region56
    $region55: #{dense_layer_forward.1} parent=5 // pred_region
      %s3436 = ssub.s32 %s13, 2
      // Predicated region
      $region57: #{dense_layer_forward.1} parent=55 // pred_check
        %p3437 = pneg %p217
      $region58: #{dense_layer_forward.1} parent=55 // pred_check_branch
        %3439 = sbr.rel (%p3437) target = $region60
      $region59: #{dense_layer_forward.1} parent=55 // pred_region
        %p3440 = scmp.lt.s32.totalorder %s24, 1
        %s3441 = scalar_select %p3440, %s24, 1
        %p3442 = scmp.lt.s32.totalorder %s25, 0
        %s3443 = scalar_select %p3442, %s25, 0
        %s3444 = smul.addr %s3443, 48
        %s3445 = smul.addr %s3441, 48
        %s3446 = sadd.s32 %s3444, %s3445
        %s3447 = smul.addr %s3446, 8
        %s3448 = scalar_lea.vmem %s7, %s3447
      $region60: #{dense_layer_forward.1} parent=55 // pred_fallthru
        _
    $region56: #{dense_layer_forward.1} parent=5 // pred_fallthru
      _
  $region6: #{dense_layer_forward.1} parent=0 // loop_footer
    %s17 = sadd.s32 1, %s13
  $region7: #{dense_layer_forward.1} parent=0 // loop_footer_branch
    %12 = sbr.rel target = $region3
  $region8: #{dense_layer_forward.1} parent=0 // loop_exit
    _

</llo_original>
